<compile_context>
chip_gen: v6e
topology: v6e:2x2x1
jax: 0.10.0
libtpu: 0.0.40
codegen_flags: <defaults>
</compile_context>

<pallas_src>
import functools

import jax
import jax.numpy as jnp
import numpy as np
from jax.experimental import pallas as pl
from jax.experimental.pallas import tpu as pltpu


def _sigmoid(x):
    # sigmoid(x) = 0.5*(1 + tanh(x/2)): EUP tanh only, no divide / inf intermediate.
    return 0.5 * jnp.tanh(0.5 * x) + 0.5


# ----------------------------------------------------------------------------
# Single fused kernel: ReLU + LSTM layer 0 + LSTM layer 1 + hidden2tag +
# log_softmax over the time axis.  All arrays are small enough to live fully
# in VMEM; rows are time-major flat (row = t*B + b).
# ----------------------------------------------------------------------------
def _decoder_kernel(x_ref, wih0_ref, whh0_ref, b0_ref,
                    wih1_ref, whh1_ref, b1_ref,
                    wtag_ref, btag_ref,
                    y_ref, tag_ref, hn_ref, cn_ref,
                    y1_sc, *, seq_len, batch, hidden):
    T, B, H = seq_len, batch, hidden

    def run_layer(gates_x, whh, y_store):
        """gates_x: (T*B, 4H) = x @ W_ih + b precomputed; serial part is h @ W_hh only."""
        h = jnp.zeros((B, H), jnp.float32)
        c = jnp.zeros((B, H), jnp.float32)
        for t in range(T):                                # static unroll (T small)
            r = t * B
            g = gates_x[r:r + B, :] + jnp.dot(
                h, whh, preferred_element_type=jnp.float32)        # (B, 4H)
            i_g = _sigmoid(g[:, 0 * H:1 * H])
            f_g = _sigmoid(g[:, 1 * H:2 * H])
            g_g = jnp.tanh(g[:, 2 * H:3 * H])
            o_g = _sigmoid(g[:, 3 * H:4 * H])
            c = f_g * c + i_g * g_g
            h = o_g * jnp.tanh(c)
            y_store[r:r + B, :] = h
        return h, c

    # ---- layer 0: fused ReLU + hoisted input-gate matmul (one matmul, M = T*B) ----
    x = jnp.maximum(x_ref[...], 0.0)                               # (T*B, H)
    gx0 = jnp.dot(x, wih0_ref[...],
                  preferred_element_type=jnp.float32) + b0_ref[...]
    h0, c0 = run_layer(gx0, whh0_ref[...], y1_sc)
    hn_ref[0] = h0
    cn_ref[0] = c0

    # ---- layer 1 (eval: inter-layer dropout is a no-op) ----
    gx1 = jnp.dot(y1_sc[...], wih1_ref[...],
                  preferred_element_type=jnp.float32) + b1_ref[...]
    h1, c1 = run_layer(gx1, whh1_ref[...], y_ref)
    hn_ref[1] = h1
    cn_ref[1] = c1

    # ---- hidden2tag + log_softmax over the *time* axis (PyTorch dim=1, batch_first) ----
    logits = jnp.dot(y_ref[...], wtag_ref[...],
                     preferred_element_type=jnp.float32) + btag_ref[...]   # (T*B, K)
    m = logits[0:B, :]
    for t in range(1, T):
        m = jnp.maximum(m, logits[t * B:(t + 1) * B, :])
    s = jnp.zeros_like(m)
    for t in range(T):
        s = s + jnp.exp(logits[t * B:(t + 1) * B, :] - m)
    lse = m + jnp.log(s)                                           # (B, K)
    for t in range(T):
        r = t * B
        tag_ref[r:r + B, :] = logits[r:r + B, :] - lse


# ----------------------------------------------------------------------------
# Wrapper: weight prep + layout plumbing around the single fused pallas_call.
# ----------------------------------------------------------------------------
@jax.jit
def decoder_rnn_forward(x_bth, params):
    B, T, H = x_bth.shape
    K = params["w_tag"].shape[0]
    f32 = jnp.float32

    # time-major flat (row = t*B + b): per-timestep rows are contiguous.
    x2d = jnp.transpose(x_bth, (1, 0, 2)).reshape(T * B, H).astype(f32)

    wih0 = params["w_ih_l0"].T.astype(f32)                         # (H, 4H)
    whh0 = params["w_hh_l0"].T.astype(f32)                         # (H, 4H)
    b0 = (params["b_ih_l0"] + params["b_hh_l0"]).reshape(1, 4 * H).astype(f32)
    wih1 = params["w_ih_l1"].T.astype(f32)
    whh1 = params["w_hh_l1"].T.astype(f32)
    b1 = (params["b_ih_l1"] + params["b_hh_l1"]).reshape(1, 4 * H).astype(f32)
    wtag = params["w_tag"].T.astype(f32)                           # (H, K)
    btag = params["b_tag"].reshape(1, K).astype(f32)

    kernel = functools.partial(_decoder_kernel, seq_len=T, batch=B, hidden=H)
    vmem = pl.BlockSpec(memory_space=pltpu.MemorySpace.VMEM)
    y2d, tag2d, h_n, c_n = pl.pallas_call(
        kernel,
        out_shape=(jax.ShapeDtypeStruct((T * B, H), f32),
                   jax.ShapeDtypeStruct((T * B, K), f32),
                   jax.ShapeDtypeStruct((2, B, H), f32),
                   jax.ShapeDtypeStruct((2, B, H), f32)),
        in_specs=[vmem] * 9,
        out_specs=(vmem, vmem, vmem, vmem),
        scratch_shapes=[pltpu.VMEM((T * B, H), f32)],
    )(x2d, wih0, whh0, b0, wih1, whh1, b1, wtag, btag)

    output = jnp.transpose(y2d.reshape(T, B, H), (1, 0, 2))        # (B, T, H)
    output_tag = jnp.transpose(tag2d.reshape(T, B, K), (1, 0, 2))  # (B, T, K)
    return output, output_tag, (h_n, c_n)


# ----------------------------------------------------------------------------
# Pure-JAX reference for verification.
# ----------------------------------------------------------------------------
def _ref_lstm_layer(x_tbh, w_ih, w_hh, b_ih, b_hh):
    B = x_tbh.shape[1]
    H = w_hh.shape[1]

    def step(carry, xt):
        h, c = carry
        gates = xt @ w_ih.T + b_ih + h @ w_hh.T + b_hh
        i, f, g, o = jnp.split(gates, 4, axis=-1)
        i, f, o = jax.nn.sigmoid(i), jax.nn.sigmoid(f), jax.nn.sigmoid(o)
        g = jnp.tanh(g)
        c = f * c + i * g
        h = o * jnp.tanh(c)
        return (h, c), h

    (hN, cN), ys = jax.lax.scan(step, (jnp.zeros((B, H)), jnp.zeros((B, H))), x_tbh)
    return ys, hN, cN


def _ref_forward(x_bth, p):
    x = jnp.transpose(jnp.maximum(x_bth, 0.0), (1, 0, 2))
    y1, h1, c1 = _ref_lstm_layer(x, p["w_ih_l0"], p["w_hh_l0"], p["b_ih_l0"], p["b_hh_l0"])
    y2, h2, c2 = _ref_lstm_layer(y1, p["w_ih_l1"], p["w_hh_l1"], p["b_ih_l1"], p["b_hh_l1"])
    logits = jnp.einsum("tbh,kh->tbk", y2, p["w_tag"]) + p["b_tag"]
    tag = jax.nn.log_softmax(logits, axis=0)                       # softmax over seq axis
    return (jnp.transpose(y2, (1, 0, 2)),
            jnp.transpose(tag, (1, 0, 2)),
            (jnp.stack([h1, h2], 0), jnp.stack([c1, c2], 0)))


# ----------------------------------------------------------------------------
if __name__ == "__main__":
    B, T, H = 2, 8, 32          # batchsize, seq_len, hidden_dim
    TAGS = 9                    # entity_tag_size (8) + 1

    key = jax.random.PRNGKey(0)
    ks = jax.random.split(key, 16)
    k = 1.0 / np.sqrt(H)

    def u(key, shape):
        return jax.random.uniform(key, shape, jnp.float32, -k, k)

    params = {
        "w_ih_l0": u(ks[0], (4 * H, H)), "w_hh_l0": u(ks[1], (4 * H, H)),
        "b_ih_l0": u(ks[2], (4 * H,)),   "b_hh_l0": u(ks[3], (4 * H,)),
        "w_ih_l1": u(ks[4], (4 * H, H)), "w_hh_l1": u(ks[5], (4 * H, H)),
        "b_ih_l1": u(ks[6], (4 * H,)),   "b_hh_l1": u(ks[7], (4 * H,)),
        "w_tag":   u(ks[8], (TAGS, H)),  "b_tag":   u(ks[9], (TAGS,)),
    }

    x = jax.random.normal(ks[10], (B, T, H), jnp.float32)

    out, out_tag, (h_n, c_n) = jax.block_until_ready(decoder_rnn_forward(x, params))

    r_out, r_tag, (r_h, r_c) = _ref_forward(x, params)
    np.testing.assert_allclose(np.asarray(out), np.asarray(r_out), atol=1e-5, rtol=1e-5)
    np.testing.assert_allclose(np.asarray(out_tag), np.asarray(r_tag), atol=1e-5, rtol=1e-5)
    np.testing.assert_allclose(np.asarray(h_n), np.asarray(r_h), atol=1e-5, rtol=1e-5)
    np.testing.assert_allclose(np.asarray(c_n), np.asarray(r_c), atol=1e-5, rtol=1e-5)

    print("KERNEL_OK")
</pallas_src>

<mosaic_0001>
module attributes {stable_mosaic.version = 11 : i64} {
  func.func @_decoder_kernel(%arg0: memref<16x32xf32, #tpu.memory_space<vmem>>, %arg1: memref<32x128xf32, #tpu.memory_space<vmem>>, %arg2: memref<32x128xf32, #tpu.memory_space<vmem>>, %arg3: memref<1x128xf32, #tpu.memory_space<vmem>>, %arg4: memref<32x128xf32, #tpu.memory_space<vmem>>, %arg5: memref<32x128xf32, #tpu.memory_space<vmem>>, %arg6: memref<1x128xf32, #tpu.memory_space<vmem>>, %arg7: memref<32x9xf32, #tpu.memory_space<vmem>>, %arg8: memref<1x9xf32, #tpu.memory_space<vmem>>, %arg9: memref<16x32xf32, #tpu.memory_space<vmem>>, %arg10: memref<16x9xf32, #tpu.memory_space<vmem>>, %arg11: memref<2x2x32xf32, #tpu.memory_space<vmem>>, %arg12: memref<2x2x32xf32, #tpu.memory_space<vmem>>, %arg13: memref<16x32xf32, #tpu.memory_space<vmem>>) attributes {dimension_semantics = [], scalar_prefetch = 0 : i64, scratch_operands = 1 : i64, tpu.core_type = #tpu.core_type<tc>} {
    %c0 = arith.constant 0 : index
    %c0_0 = arith.constant 0 : index
    %0 = vector.load %arg0[%c0, %c0_0] : memref<16x32xf32, #tpu.memory_space<vmem>>, vector<16x32xf32>
    %cst = arith.constant 0.000000e+00 : f32
    %1 = vector.broadcast %cst : f32 to vector<16x32xf32>
    %2 = arith.maximumf %0, %1 : vector<16x32xf32>
    %c0_1 = arith.constant 0 : index
    %c0_2 = arith.constant 0 : index
    %3 = vector.load %arg1[%c0_1, %c0_2] : memref<32x128xf32, #tpu.memory_space<vmem>>, vector<32x128xf32>
    %cst_3 = arith.constant dense<0.000000e+00> : vector<16x128xf32>
    %4 = tpu.matmul %2, %3, %cst_3 {dimension_numbers = #tpu.dot_dimension_numbers<[1], [0], [0], [1], [0, 0, 1, 1], [], []>} : vector<16x32xf32>, vector<32x128xf32>, vector<16x128xf32> -> vector<16x128xf32>
    %c0_4 = arith.constant 0 : index
    %c0_5 = arith.constant 0 : index
    %5 = vector.load %arg3[%c0_4, %c0_5] : memref<1x128xf32, #tpu.memory_space<vmem>>, vector<1x128xf32>
    %6 = vector.broadcast %5 : vector<1x128xf32> to vector<16x128xf32>
    %7 = arith.addf %4, %6 : vector<16x128xf32>
    %c0_6 = arith.constant 0 : index
    %c0_7 = arith.constant 0 : index
    %8 = vector.load %arg2[%c0_6, %c0_7] : memref<32x128xf32, #tpu.memory_space<vmem>>, vector<32x128xf32>
    %cst_8 = arith.constant 0.000000e+00 : f32
    %9 = vector.broadcast %cst_8 : f32 to vector<2x32xf32>
    %cst_9 = arith.constant 0.000000e+00 : f32
    %10 = vector.broadcast %cst_9 : f32 to vector<2x32xf32>
    %11 = vector.extract_strided_slice %7 {offsets = [0, 0], sizes = [2, 128], strides = [1, 1]} : vector<16x128xf32> to vector<2x128xf32>
    %cst_10 = arith.constant dense<0.000000e+00> : vector<2x128xf32>
    %12 = tpu.matmul %9, %8, %cst_10 {dimension_numbers = #tpu.dot_dimension_numbers<[1], [0], [0], [1], [0, 0, 1, 1], [], []>} : vector<2x32xf32>, vector<32x128xf32>, vector<2x128xf32> -> vector<2x128xf32>
    %13 = arith.addf %11, %12 : vector<2x128xf32>
    %14 = vector.extract_strided_slice %13 {offsets = [0, 0], sizes = [2, 32], strides = [1, 1]} : vector<2x128xf32> to vector<2x32xf32>
    %cst_11 = arith.constant 5.000000e-01 : f32
    %15 = vector.broadcast %cst_11 : f32 to vector<2x32xf32>
    %16 = arith.mulf %15, %14 : vector<2x32xf32>
    %17 = math.tanh %16 : vector<2x32xf32>
    %cst_12 = arith.constant 5.000000e-01 : f32
    %18 = vector.broadcast %cst_12 : f32 to vector<2x32xf32>
    %19 = arith.mulf %18, %17 : vector<2x32xf32>
    %cst_13 = arith.constant 5.000000e-01 : f32
    %20 = vector.broadcast %cst_13 : f32 to vector<2x32xf32>
    %21 = arith.addf %19, %20 : vector<2x32xf32>
    %22 = vector.extract_strided_slice %13 {offsets = [0, 32], sizes = [2, 32], strides = [1, 1]} : vector<2x128xf32> to vector<2x32xf32>
    %cst_14 = arith.constant 5.000000e-01 : f32
    %23 = vector.broadcast %cst_14 : f32 to vector<2x32xf32>
    %24 = arith.mulf %23, %22 : vector<2x32xf32>
    %25 = math.tanh %24 : vector<2x32xf32>
    %cst_15 = arith.constant 5.000000e-01 : f32
    %26 = vector.broadcast %cst_15 : f32 to vector<2x32xf32>
    %27 = arith.mulf %26, %25 : vector<2x32xf32>
    %cst_16 = arith.constant 5.000000e-01 : f32
    %28 = vector.broadcast %cst_16 : f32 to vector<2x32xf32>
    %29 = arith.addf %27, %28 : vector<2x32xf32>
    %30 = vector.extract_strided_slice %13 {offsets = [0, 64], sizes = [2, 32], strides = [1, 1]} : vector<2x128xf32> to vector<2x32xf32>
    %31 = math.tanh %30 : vector<2x32xf32>
    %32 = vector.extract_strided_slice %13 {offsets = [0, 96], sizes = [2, 32], strides = [1, 1]} : vector<2x128xf32> to vector<2x32xf32>
    %cst_17 = arith.constant 5.000000e-01 : f32
    %33 = vector.broadcast %cst_17 : f32 to vector<2x32xf32>
    %34 = arith.mulf %33, %32 : vector<2x32xf32>
    %35 = math.tanh %34 : vector<2x32xf32>
    %cst_18 = arith.constant 5.000000e-01 : f32
    %36 = vector.broadcast %cst_18 : f32 to vector<2x32xf32>
    %37 = arith.mulf %36, %35 : vector<2x32xf32>
    %cst_19 = arith.constant 5.000000e-01 : f32
    %38 = vector.broadcast %cst_19 : f32 to vector<2x32xf32>
    %39 = arith.addf %37, %38 : vector<2x32xf32>
    %40 = arith.mulf %29, %10 : vector<2x32xf32>
    %41 = arith.mulf %21, %31 : vector<2x32xf32>
    %42 = arith.addf %40, %41 : vector<2x32xf32>
    %43 = math.tanh %42 : vector<2x32xf32>
    %44 = arith.mulf %39, %43 : vector<2x32xf32>
    %c0_20 = arith.constant 0 : index
    %c0_21 = arith.constant 0 : index
    %45 = vector.load %arg13[%c0_20, %c0_21] : memref<16x32xf32, #tpu.memory_space<vmem>>, vector<2x32xf32>
    tpu.vector_store %arg13[%c0_20, %c0_21], %44 {strides = array<i32>} : memref<16x32xf32, #tpu.memory_space<vmem>>, vector<2x32xf32>,
    %46 = vector.extract_strided_slice %7 {offsets = [2, 0], sizes = [2, 128], strides = [1, 1]} : vector<16x128xf32> to vector<2x128xf32>
    %cst_22 = arith.constant dense<0.000000e+00> : vector<2x128xf32>
    %47 = tpu.matmul %44, %8, %cst_22 {dimension_numbers = #tpu.dot_dimension_numbers<[1], [0], [0], [1], [0, 0, 1, 1], [], []>} : vector<2x32xf32>, vector<32x128xf32>, vector<2x128xf32> -> vector<2x128xf32>
    %48 = arith.addf %46, %47 : vector<2x128xf32>
    %49 = vector.extract_strided_slice %48 {offsets = [0, 0], sizes = [2, 32], strides = [1, 1]} : vector<2x128xf32> to vector<2x32xf32>
    %cst_23 = arith.constant 5.000000e-01 : f32
    %50 = vector.broadcast %cst_23 : f32 to vector<2x32xf32>
    %51 = arith.mulf %50, %49 : vector<2x32xf32>
    %52 = math.tanh %51 : vector<2x32xf32>
    %cst_24 = arith.constant 5.000000e-01 : f32
    %53 = vector.broadcast %cst_24 : f32 to vector<2x32xf32>
    %54 = arith.mulf %53, %52 : vector<2x32xf32>
    %cst_25 = arith.constant 5.000000e-01 : f32
    %55 = vector.broadcast %cst_25 : f32 to vector<2x32xf32>
    %56 = arith.addf %54, %55 : vector<2x32xf32>
    %57 = vector.extract_strided_slice %48 {offsets = [0, 32], sizes = [2, 32], strides = [1, 1]} : vector<2x128xf32> to vector<2x32xf32>
    %cst_26 = arith.constant 5.000000e-01 : f32
    %58 = vector.broadcast %cst_26 : f32 to vector<2x32xf32>
    %59 = arith.mulf %58, %57 : vector<2x32xf32>
    %60 = math.tanh %59 : vector<2x32xf32>
    %cst_27 = arith.constant 5.000000e-01 : f32
    %61 = vector.broadcast %cst_27 : f32 to vector<2x32xf32>
    %62 = arith.mulf %61, %60 : vector<2x32xf32>
    %cst_28 = arith.constant 5.000000e-01 : f32
    %63 = vector.broadcast %cst_28 : f32 to vector<2x32xf32>
    %64 = arith.addf %62, %63 : vector<2x32xf32>
    %65 = vector.extract_strided_slice %48 {offsets = [0, 64], sizes = [2, 32], strides = [1, 1]} : vector<2x128xf32> to vector<2x32xf32>
    %66 = math.tanh %65 : vector<2x32xf32>
    %67 = vector.extract_strided_slice %48 {offsets = [0, 96], sizes = [2, 32], strides = [1, 1]} : vector<2x128xf32> to vector<2x32xf32>
    %cst_29 = arith.constant 5.000000e-01 : f32
    %68 = vector.broadcast %cst_29 : f32 to vector<2x32xf32>
    %69 = arith.mulf %68, %67 : vector<2x32xf32>
    %70 = math.tanh %69 : vector<2x32xf32>
    %cst_30 = arith.constant 5.000000e-01 : f32
    %71 = vector.broadcast %cst_30 : f32 to vector<2x32xf32>
    %72 = arith.mulf %71, %70 : vector<2x32xf32>
    %cst_31 = arith.constant 5.000000e-01 : f32
    %73 = vector.broadcast %cst_31 : f32 to vector<2x32xf32>
    %74 = arith.addf %72, %73 : vector<2x32xf32>
    %75 = arith.mulf %64, %42 : vector<2x32xf32>
    %76 = arith.mulf %56, %66 : vector<2x32xf32>
    %77 = arith.addf %75, %76 : vector<2x32xf32>
    %78 = math.tanh %77 : vector<2x32xf32>
    %79 = arith.mulf %74, %78 : vector<2x32xf32>
    %c2 = arith.constant 2 : index
    %c0_32 = arith.constant 0 : index
    %80 = vector.load %arg13[%c2, %c0_32] : memref<16x32xf32, #tpu.memory_space<vmem>>, vector<2x32xf32>
    tpu.vector_store %arg13[%c2, %c0_32], %79 {strides = array<i32>} : memref<16x32xf32, #tpu.memory_space<vmem>>, vector<2x32xf32>,
    %81 = vector.extract_strided_slice %7 {offsets = [4, 0], sizes = [2, 128], strides = [1, 1]} : vector<16x128xf32> to vector<2x128xf32>
    %cst_33 = arith.constant dense<0.000000e+00> : vector<2x128xf32>
    %82 = tpu.matmul %79, %8, %cst_33 {dimension_numbers = #tpu.dot_dimension_numbers<[1], [0], [0], [1], [0, 0, 1, 1], [], []>} : vector<2x32xf32>, vector<32x128xf32>, vector<2x128xf32> -> vector<2x128xf32>
    %83 = arith.addf %81, %82 : vector<2x128xf32>
    %84 = vector.extract_strided_slice %83 {offsets = [0, 0], sizes = [2, 32], strides = [1, 1]} : vector<2x128xf32> to vector<2x32xf32>
    %cst_34 = arith.constant 5.000000e-01 : f32
    %85 = vector.broadcast %cst_34 : f32 to vector<2x32xf32>
    %86 = arith.mulf %85, %84 : vector<2x32xf32>
    %87 = math.tanh %86 : vector<2x32xf32>
    %cst_35 = arith.constant 5.000000e-01 : f32
    %88 = vector.broadcast %cst_35 : f32 to vector<2x32xf32>
    %89 = arith.mulf %88, %87 : vector<2x32xf32>
    %cst_36 = arith.constant 5.000000e-01 : f32
    %90 = vector.broadcast %cst_36 : f32 to vector<2x32xf32>
    %91 = arith.addf %89, %90 : vector<2x32xf32>
    %92 = vector.extract_strided_slice %83 {offsets = [0, 32], sizes = [2, 32], strides = [1, 1]} : vector<2x128xf32> to vector<2x32xf32>
    %cst_37 = arith.constant 5.000000e-01 : f32
    %93 = vector.broadcast %cst_37 : f32 to vector<2x32xf32>
    %94 = arith.mulf %93, %92 : vector<2x32xf32>
    %95 = math.tanh %94 : vector<2x32xf32>
    %cst_38 = arith.constant 5.000000e-01 : f32
    %96 = vector.broadcast %cst_38 : f32 to vector<2x32xf32>
    %97 = arith.mulf %96, %95 : vector<2x32xf32>
    %cst_39 = arith.constant 5.000000e-01 : f32
    %98 = vector.broadcast %cst_39 : f32 to vector<2x32xf32>
    %99 = arith.addf %97, %98 : vector<2x32xf32>
    %100 = vector.extract_strided_slice %83 {offsets = [0, 64], sizes = [2, 32], strides = [1, 1]} : vector<2x128xf32> to vector<2x32xf32>
    %101 = math.tanh %100 : vector<2x32xf32>
    %102 = vector.extract_strided_slice %83 {offsets = [0, 96], sizes = [2, 32], strides = [1, 1]} : vector<2x128xf32> to vector<2x32xf32>
    %cst_40 = arith.constant 5.000000e-01 : f32
    %103 = vector.broadcast %cst_40 : f32 to vector<2x32xf32>
    %104 = arith.mulf %103, %102 : vector<2x32xf32>
    %105 = math.tanh %104 : vector<2x32xf32>
    %cst_41 = arith.constant 5.000000e-01 : f32
    %106 = vector.broadcast %cst_41 : f32 to vector<2x32xf32>
    %107 = arith.mulf %106, %105 : vector<2x32xf32>
    %cst_42 = arith.constant 5.000000e-01 : f32
    %108 = vector.broadcast %cst_42 : f32 to vector<2x32xf32>
    %109 = arith.addf %107, %108 : vector<2x32xf32>
    %110 = arith.mulf %99, %77 : vector<2x32xf32>
    %111 = arith.mulf %91, %101 : vector<2x32xf32>
    %112 = arith.addf %110, %111 : vector<2x32xf32>
    %113 = math.tanh %112 : vector<2x32xf32>
    %114 = arith.mulf %109, %113 : vector<2x32xf32>
    %c4 = arith.constant 4 : index
    %c0_43 = arith.constant 0 : index
    %115 = vector.load %arg13[%c4, %c0_43] : memref<16x32xf32, #tpu.memory_space<vmem>>, vector<2x32xf32>
    tpu.vector_store %arg13[%c4, %c0_43], %114 {strides = array<i32>} : memref<16x32xf32, #tpu.memory_space<vmem>>, vector<2x32xf32>,
    %116 = vector.extract_strided_slice %7 {offsets = [6, 0], sizes = [2, 128], strides = [1, 1]} : vector<16x128xf32> to vector<2x128xf32>
    %cst_44 = arith.constant dense<0.000000e+00> : vector<2x128xf32>
    %117 = tpu.matmul %114, %8, %cst_44 {dimension_numbers = #tpu.dot_dimension_numbers<[1], [0], [0], [1], [0, 0, 1, 1], [], []>} : vector<2x32xf32>, vector<32x128xf32>, vector<2x128xf32> -> vector<2x128xf32>
    %118 = arith.addf %116, %117 : vector<2x128xf32>
    %119 = vector.extract_strided_slice %118 {offsets = [0, 0], sizes = [2, 32], strides = [1, 1]} : vector<2x128xf32> to vector<2x32xf32>
    %cst_45 = arith.constant 5.000000e-01 : f32
    %120 = vector.broadcast %cst_45 : f32 to vector<2x32xf32>
    %121 = arith.mulf %120, %119 : vector<2x32xf32>
    %122 = math.tanh %121 : vector<2x32xf32>
    %cst_46 = arith.constant 5.000000e-01 : f32
    %123 = vector.broadcast %cst_46 : f32 to vector<2x32xf32>
    %124 = arith.mulf %123, %122 : vector<2x32xf32>
    %cst_47 = arith.constant 5.000000e-01 : f32
    %125 = vector.broadcast %cst_47 : f32 to vector<2x32xf32>
    %126 = arith.addf %124, %125 : vector<2x32xf32>
    %127 = vector.extract_strided_slice %118 {offsets = [0, 32], sizes = [2, 32], strides = [1, 1]} : vector<2x128xf32> to vector<2x32xf32>
    %cst_48 = arith.constant 5.000000e-01 : f32
    %128 = vector.broadcast %cst_48 : f32 to vector<2x32xf32>
    %129 = arith.mulf %128, %127 : vector<2x32xf32>
    %130 = math.tanh %129 : vector<2x32xf32>
    %cst_49 = arith.constant 5.000000e-01 : f32
    %131 = vector.broadcast %cst_49 : f32 to vector<2x32xf32>
    %132 = arith.mulf %131, %130 : vector<2x32xf32>
    %cst_50 = arith.constant 5.000000e-01 : f32
    %133 = vector.broadcast %cst_50 : f32 to vector<2x32xf32>
    %134 = arith.addf %132, %133 : vector<2x32xf32>
    %135 = vector.extract_strided_slice %118 {offsets = [0, 64], sizes = [2, 32], strides = [1, 1]} : vector<2x128xf32> to vector<2x32xf32>
    %136 = math.tanh %135 : vector<2x32xf32>
    %137 = vector.extract_strided_slice %118 {offsets = [0, 96], sizes = [2, 32], strides = [1, 1]} : vector<2x128xf32> to vector<2x32xf32>
    %cst_51 = arith.constant 5.000000e-01 : f32
    %138 = vector.broadcast %cst_51 : f32 to vector<2x32xf32>
    %139 = arith.mulf %138, %137 : vector<2x32xf32>
    %140 = math.tanh %139 : vector<2x32xf32>
    %cst_52 = arith.constant 5.000000e-01 : f32
    %141 = vector.broadcast %cst_52 : f32 to vector<2x32xf32>
    %142 = arith.mulf %141, %140 : vector<2x32xf32>
    %cst_53 = arith.constant 5.000000e-01 : f32
    %143 = vector.broadcast %cst_53 : f32 to vector<2x32xf32>
    %144 = arith.addf %142, %143 : vector<2x32xf32>
    %145 = arith.mulf %134, %112 : vector<2x32xf32>
    %146 = arith.mulf %126, %136 : vector<2x32xf32>
    %147 = arith.addf %145, %146 : vector<2x32xf32>
    %148 = math.tanh %147 : vector<2x32xf32>
    %149 = arith.mulf %144, %148 : vector<2x32xf32>
    %c6 = arith.constant 6 : index
    %c0_54 = arith.constant 0 : index
    %150 = vector.load %arg13[%c6, %c0_54] : memref<16x32xf32, #tpu.memory_space<vmem>>, vector<2x32xf32>
    tpu.vector_store %arg13[%c6, %c0_54], %149 {strides = array<i32>} : memref<16x32xf32, #tpu.memory_space<vmem>>, vector<2x32xf32>,
    %151 = vector.extract_strided_slice %7 {offsets = [8, 0], sizes = [2, 128], strides = [1, 1]} : vector<16x128xf32> to vector<2x128xf32>
    %cst_55 = arith.constant dense<0.000000e+00> : vector<2x128xf32>
    %152 = tpu.matmul %149, %8, %cst_55 {dimension_numbers = #tpu.dot_dimension_numbers<[1], [0], [0], [1], [0, 0, 1, 1], [], []>} : vector<2x32xf32>, vector<32x128xf32>, vector<2x128xf32> -> vector<2x128xf32>
    %153 = arith.addf %151, %152 : vector<2x128xf32>
    %154 = vector.extract_strided_slice %153 {offsets = [0, 0], sizes = [2, 32], strides = [1, 1]} : vector<2x128xf32> to vector<2x32xf32>
    %cst_56 = arith.constant 5.000000e-01 : f32
    %155 = vector.broadcast %cst_56 : f32 to vector<2x32xf32>
    %156 = arith.mulf %155, %154 : vector<2x32xf32>
    %157 = math.tanh %156 : vector<2x32xf32>
    %cst_57 = arith.constant 5.000000e-01 : f32
    %158 = vector.broadcast %cst_57 : f32 to vector<2x32xf32>
    %159 = arith.mulf %158, %157 : vector<2x32xf32>
    %cst_58 = arith.constant 5.000000e-01 : f32
    %160 = vector.broadcast %cst_58 : f32 to vector<2x32xf32>
    %161 = arith.addf %159, %160 : vector<2x32xf32>
    %162 = vector.extract_strided_slice %153 {offsets = [0, 32], sizes = [2, 32], strides = [1, 1]} : vector<2x128xf32> to vector<2x32xf32>
    %cst_59 = arith.constant 5.000000e-01 : f32
    %163 = vector.broadcast %cst_59 : f32 to vector<2x32xf32>
    %164 = arith.mulf %163, %162 : vector<2x32xf32>
    %165 = math.tanh %164 : vector<2x32xf32>
    %cst_60 = arith.constant 5.000000e-01 : f32
    %166 = vector.broadcast %cst_60 : f32 to vector<2x32xf32>
    %167 = arith.mulf %166, %165 : vector<2x32xf32>
    %cst_61 = arith.constant 5.000000e-01 : f32
    %168 = vector.broadcast %cst_61 : f32 to vector<2x32xf32>
    %169 = arith.addf %167, %168 : vector<2x32xf32>
    %170 = vector.extract_strided_slice %153 {offsets = [0, 64], sizes = [2, 32], strides = [1, 1]} : vector<2x128xf32> to vector<2x32xf32>
    %171 = math.tanh %170 : vector<2x32xf32>
    %172 = vector.extract_strided_slice %153 {offsets = [0, 96], sizes = [2, 32], strides = [1, 1]} : vector<2x128xf32> to vector<2x32xf32>
    %cst_62 = arith.constant 5.000000e-01 : f32
    %173 = vector.broadcast %cst_62 : f32 to vector<2x32xf32>
    %174 = arith.mulf %173, %172 : vector<2x32xf32>
    %175 = math.tanh %174 : vector<2x32xf32>
    %cst_63 = arith.constant 5.000000e-01 : f32
    %176 = vector.broadcast %cst_63 : f32 to vector<2x32xf32>
    %177 = arith.mulf %176, %175 : vector<2x32xf32>
    %cst_64 = arith.constant 5.000000e-01 : f32
    %178 = vector.broadcast %cst_64 : f32 to vector<2x32xf32>
    %179 = arith.addf %177, %178 : vector<2x32xf32>
    %180 = arith.mulf %169, %147 : vector<2x32xf32>
    %181 = arith.mulf %161, %171 : vector<2x32xf32>
    %182 = arith.addf %180, %181 : vector<2x32xf32>
    %183 = math.tanh %182 : vector<2x32xf32>
    %184 = arith.mulf %179, %183 : vector<2x32xf32>
    %c8 = arith.constant 8 : index
    %c0_65 = arith.constant 0 : index
    %185 = vector.load %arg13[%c8, %c0_65] : memref<16x32xf32, #tpu.memory_space<vmem>>, vector<2x32xf32>
    tpu.vector_store %arg13[%c8, %c0_65], %184 {strides = array<i32>} : memref<16x32xf32, #tpu.memory_space<vmem>>, vector<2x32xf32>,
    %186 = vector.extract_strided_slice %7 {offsets = [10, 0], sizes = [2, 128], strides = [1, 1]} : vector<16x128xf32> to vector<2x128xf32>
    %cst_66 = arith.constant dense<0.000000e+00> : vector<2x128xf32>
    %187 = tpu.matmul %184, %8, %cst_66 {dimension_numbers = #tpu.dot_dimension_numbers<[1], [0], [0], [1], [0, 0, 1, 1], [], []>} : vector<2x32xf32>, vector<32x128xf32>, vector<2x128xf32> -> vector<2x128xf32>
    %188 = arith.addf %186, %187 : vector<2x128xf32>
    %189 = vector.extract_strided_slice %188 {offsets = [0, 0], sizes = [2, 32], strides = [1, 1]} : vector<2x128xf32> to vector<2x32xf32>
    %cst_67 = arith.constant 5.000000e-01 : f32
    %190 = vector.broadcast %cst_67 : f32 to vector<2x32xf32>
    %191 = arith.mulf %190, %189 : vector<2x32xf32>
    %192 = math.tanh %191 : vector<2x32xf32>
    %cst_68 = arith.constant 5.000000e-01 : f32
    %193 = vector.broadcast %cst_68 : f32 to vector<2x32xf32>
    %194 = arith.mulf %193, %192 : vector<2x32xf32>
    %cst_69 = arith.constant 5.000000e-01 : f32
    %195 = vector.broadcast %cst_69 : f32 to vector<2x32xf32>
    %196 = arith.addf %194, %195 : vector<2x32xf32>
    %197 = vector.extract_strided_slice %188 {offsets = [0, 32], sizes = [2, 32], strides = [1, 1]} : vector<2x128xf32> to vector<2x32xf32>
    %cst_70 = arith.constant 5.000000e-01 : f32
    %198 = vector.broadcast %cst_70 : f32 to vector<2x32xf32>
    %199 = arith.mulf %198, %197 : vector<2x32xf32>
    %200 = math.tanh %199 : vector<2x32xf32>
    %cst_71 = arith.constant 5.000000e-01 : f32
    %201 = vector.broadcast %cst_71 : f32 to vector<2x32xf32>
    %202 = arith.mulf %201, %200 : vector<2x32xf32>
    %cst_72 = arith.constant 5.000000e-01 : f32
    %203 = vector.broadcast %cst_72 : f32 to vector<2x32xf32>
    %204 = arith.addf %202, %203 : vector<2x32xf32>
    %205 = vector.extract_strided_slice %188 {offsets = [0, 64], sizes = [2, 32], strides = [1, 1]} : vector<2x128xf32> to vector<2x32xf32>
    %206 = math.tanh %205 : vector<2x32xf32>
    %207 = vector.extract_strided_slice %188 {offsets = [0, 96], sizes = [2, 32], strides = [1, 1]} : vector<2x128xf32> to vector<2x32xf32>
    %cst_73 = arith.constant 5.000000e-01 : f32
    %208 = vector.broadcast %cst_73 : f32 to vector<2x32xf32>
    %209 = arith.mulf %208, %207 : vector<2x32xf32>
    %210 = math.tanh %209 : vector<2x32xf32>
    %cst_74 = arith.constant 5.000000e-01 : f32
    %211 = vector.broadcast %cst_74 : f32 to vector<2x32xf32>
    %212 = arith.mulf %211, %210 : vector<2x32xf32>
    %cst_75 = arith.constant 5.000000e-01 : f32
    %213 = vector.broadcast %cst_75 : f32 to vector<2x32xf32>
    %214 = arith.addf %212, %213 : vector<2x32xf32>
    %215 = arith.mulf %204, %182 : vector<2x32xf32>
    %216 = arith.mulf %196, %206 : vector<2x32xf32>
    %217 = arith.addf %215, %216 : vector<2x32xf32>
    %218 = math.tanh %217 : vector<2x32xf32>
    %219 = arith.mulf %214, %218 : vector<2x32xf32>
    %c10 = arith.constant 10 : index
    %c0_76 = arith.constant 0 : index
    %220 = vector.load %arg13[%c10, %c0_76] : memref<16x32xf32, #tpu.memory_space<vmem>>, vector<2x32xf32>
    tpu.vector_store %arg13[%c10, %c0_76], %219 {strides = array<i32>} : memref<16x32xf32, #tpu.memory_space<vmem>>, vector<2x32xf32>,
    %221 = vector.extract_strided_slice %7 {offsets = [12, 0], sizes = [2, 128], strides = [1, 1]} : vector<16x128xf32> to vector<2x128xf32>
    %cst_77 = arith.constant dense<0.000000e+00> : vector<2x128xf32>
    %222 = tpu.matmul %219, %8, %cst_77 {dimension_numbers = #tpu.dot_dimension_numbers<[1], [0], [0], [1], [0, 0, 1, 1], [], []>} : vector<2x32xf32>, vector<32x128xf32>, vector<2x128xf32> -> vector<2x128xf32>
    %223 = arith.addf %221, %222 : vector<2x128xf32>
    %224 = vector.extract_strided_slice %223 {offsets = [0, 0], sizes = [2, 32], strides = [1, 1]} : vector<2x128xf32> to vector<2x32xf32>
    %cst_78 = arith.constant 5.000000e-01 : f32
    %225 = vector.broadcast %cst_78 : f32 to vector<2x32xf32>
    %226 = arith.mulf %225, %224 : vector<2x32xf32>
    %227 = math.tanh %226 : vector<2x32xf32>
    %cst_79 = arith.constant 5.000000e-01 : f32
    %228 = vector.broadcast %cst_79 : f32 to vector<2x32xf32>
    %229 = arith.mulf %228, %227 : vector<2x32xf32>
    %cst_80 = arith.constant 5.000000e-01 : f32
    %230 = vector.broadcast %cst_80 : f32 to vector<2x32xf32>
    %231 = arith.addf %229, %230 : vector<2x32xf32>
    %232 = vector.extract_strided_slice %223 {offsets = [0, 32], sizes = [2, 32], strides = [1, 1]} : vector<2x128xf32> to vector<2x32xf32>
    %cst_81 = arith.constant 5.000000e-01 : f32
    %233 = vector.broadcast %cst_81 : f32 to vector<2x32xf32>
    %234 = arith.mulf %233, %232 : vector<2x32xf32>
    %235 = math.tanh %234 : vector<2x32xf32>
    %cst_82 = arith.constant 5.000000e-01 : f32
    %236 = vector.broadcast %cst_82 : f32 to vector<2x32xf32>
    %237 = arith.mulf %236, %235 : vector<2x32xf32>
    %cst_83 = arith.constant 5.000000e-01 : f32
    %238 = vector.broadcast %cst_83 : f32 to vector<2x32xf32>
    %239 = arith.addf %237, %238 : vector<2x32xf32>
    %240 = vector.extract_strided_slice %223 {offsets = [0, 64], sizes = [2, 32], strides = [1, 1]} : vector<2x128xf32> to vector<2x32xf32>
    %241 = math.tanh %240 : vector<2x32xf32>
    %242 = vector.extract_strided_slice %223 {offsets = [0, 96], sizes = [2, 32], strides = [1, 1]} : vector<2x128xf32> to vector<2x32xf32>
    %cst_84 = arith.constant 5.000000e-01 : f32
    %243 = vector.broadcast %cst_84 : f32 to vector<2x32xf32>
    %244 = arith.mulf %243, %242 : vector<2x32xf32>
    %245 = math.tanh %244 : vector<2x32xf32>
    %cst_85 = arith.constant 5.000000e-01 : f32
    %246 = vector.broadcast %cst_85 : f32 to vector<2x32xf32>
    %247 = arith.mulf %246, %245 : vector<2x32xf32>
    %cst_86 = arith.constant 5.000000e-01 : f32
    %248 = vector.broadcast %cst_86 : f32 to vector<2x32xf32>
    %249 = arith.addf %247, %248 : vector<2x32xf32>
    %250 = arith.mulf %239, %217 : vector<2x32xf32>
    %251 = arith.mulf %231, %241 : vector<2x32xf32>
    %252 = arith.addf %250, %251 : vector<2x32xf32>
    %253 = math.tanh %252 : vector<2x32xf32>
    %254 = arith.mulf %249, %253 : vector<2x32xf32>
    %c12 = arith.constant 12 : index
    %c0_87 = arith.constant 0 : index
    %255 = vector.load %arg13[%c12, %c0_87] : memref<16x32xf32, #tpu.memory_space<vmem>>, vector<2x32xf32>
    tpu.vector_store %arg13[%c12, %c0_87], %254 {strides = array<i32>} : memref<16x32xf32, #tpu.memory_space<vmem>>, vector<2x32xf32>,
    %256 = vector.extract_strided_slice %7 {offsets = [14, 0], sizes = [2, 128], strides = [1, 1]} : vector<16x128xf32> to vector<2x128xf32>
    %cst_88 = arith.constant dense<0.000000e+00> : vector<2x128xf32>
    %257 = tpu.matmul %254, %8, %cst_88 {dimension_numbers = #tpu.dot_dimension_numbers<[1], [0], [0], [1], [0, 0, 1, 1], [], []>} : vector<2x32xf32>, vector<32x128xf32>, vector<2x128xf32> -> vector<2x128xf32>
    %258 = arith.addf %256, %257 : vector<2x128xf32>
    %259 = vector.extract_strided_slice %258 {offsets = [0, 0], sizes = [2, 32], strides = [1, 1]} : vector<2x128xf32> to vector<2x32xf32>
    %cst_89 = arith.constant 5.000000e-01 : f32
    %260 = vector.broadcast %cst_89 : f32 to vector<2x32xf32>
    %261 = arith.mulf %260, %259 : vector<2x32xf32>
    %262 = math.tanh %261 : vector<2x32xf32>
    %cst_90 = arith.constant 5.000000e-01 : f32
    %263 = vector.broadcast %cst_90 : f32 to vector<2x32xf32>
    %264 = arith.mulf %263, %262 : vector<2x32xf32>
    %cst_91 = arith.constant 5.000000e-01 : f32
    %265 = vector.broadcast %cst_91 : f32 to vector<2x32xf32>
    %266 = arith.addf %264, %265 : vector<2x32xf32>
    %267 = vector.extract_strided_slice %258 {offsets = [0, 32], sizes = [2, 32], strides = [1, 1]} : vector<2x128xf32> to vector<2x32xf32>
    %cst_92 = arith.constant 5.000000e-01 : f32
    %268 = vector.broadcast %cst_92 : f32 to vector<2x32xf32>
    %269 = arith.mulf %268, %267 : vector<2x32xf32>
    %270 = math.tanh %269 : vector<2x32xf32>
    %cst_93 = arith.constant 5.000000e-01 : f32
    %271 = vector.broadcast %cst_93 : f32 to vector<2x32xf32>
    %272 = arith.mulf %271, %270 : vector<2x32xf32>
    %cst_94 = arith.constant 5.000000e-01 : f32
    %273 = vector.broadcast %cst_94 : f32 to vector<2x32xf32>
    %274 = arith.addf %272, %273 : vector<2x32xf32>
    %275 = vector.extract_strided_slice %258 {offsets = [0, 64], sizes = [2, 32], strides = [1, 1]} : vector<2x128xf32> to vector<2x32xf32>
    %276 = math.tanh %275 : vector<2x32xf32>
    %277 = vector.extract_strided_slice %258 {offsets = [0, 96], sizes = [2, 32], strides = [1, 1]} : vector<2x128xf32> to vector<2x32xf32>
    %cst_95 = arith.constant 5.000000e-01 : f32
    %278 = vector.broadcast %cst_95 : f32 to vector<2x32xf32>
    %279 = arith.mulf %278, %277 : vector<2x32xf32>
    %280 = math.tanh %279 : vector<2x32xf32>
    %cst_96 = arith.constant 5.000000e-01 : f32
    %281 = vector.broadcast %cst_96 : f32 to vector<2x32xf32>
    %282 = arith.mulf %281, %280 : vector<2x32xf32>
    %cst_97 = arith.constant 5.000000e-01 : f32
    %283 = vector.broadcast %cst_97 : f32 to vector<2x32xf32>
    %284 = arith.addf %282, %283 : vector<2x32xf32>
    %285 = arith.mulf %274, %252 : vector<2x32xf32>
    %286 = arith.mulf %266, %276 : vector<2x32xf32>
    %287 = arith.addf %285, %286 : vector<2x32xf32>
    %288 = math.tanh %287 : vector<2x32xf32>
    %289 = arith.mulf %284, %288 : vector<2x32xf32>
    %c14 = arith.constant 14 : index
    %c0_98 = arith.constant 0 : index
    %290 = vector.load %arg13[%c14, %c0_98] : memref<16x32xf32, #tpu.memory_space<vmem>>, vector<2x32xf32>
    tpu.vector_store %arg13[%c14, %c0_98], %289 {strides = array<i32>} : memref<16x32xf32, #tpu.memory_space<vmem>>, vector<2x32xf32>,
    %c0_99 = arith.constant 0 : index
    %c0_100 = arith.constant 0 : index
    %c0_101 = arith.constant 0 : index
    %291 = vector.load %arg11[%c0_99, %c0_100, %c0_101] : memref<2x2x32xf32, #tpu.memory_space<vmem>>, vector<1x2x32xf32>
    %292 = vector.shape_cast %291 : vector<1x2x32xf32> to vector<2x32xf32>
    %293 = vector.shape_cast %289 : vector<2x32xf32> to vector<1x2x32xf32>
    tpu.vector_store %arg11[%c0_99, %c0_100, %c0_101], %293 {strides = array<i32>} : memref<2x2x32xf32, #tpu.memory_space<vmem>>, vector<1x2x32xf32>,
    %c0_102 = arith.constant 0 : index
    %c0_103 = arith.constant 0 : index
    %c0_104 = arith.constant 0 : index
    %294 = vector.load %arg12[%c0_102, %c0_103, %c0_104] : memref<2x2x32xf32, #tpu.memory_space<vmem>>, vector<1x2x32xf32>
    %295 = vector.shape_cast %294 : vector<1x2x32xf32> to vector<2x32xf32>
    %296 = vector.shape_cast %287 : vector<2x32xf32> to vector<1x2x32xf32>
    tpu.vector_store %arg12[%c0_102, %c0_103, %c0_104], %296 {strides = array<i32>} : memref<2x2x32xf32, #tpu.memory_space<vmem>>, vector<1x2x32xf32>,
    %c0_105 = arith.constant 0 : index
    %c0_106 = arith.constant 0 : index
    %297 = vector.load %arg13[%c0_105, %c0_106] : memref<16x32xf32, #tpu.memory_space<vmem>>, vector<16x32xf32>
    %c0_107 = arith.constant 0 : index
    %c0_108 = arith.constant 0 : index
    %298 = vector.load %arg4[%c0_107, %c0_108] : memref<32x128xf32, #tpu.memory_space<vmem>>, vector<32x128xf32>
    %cst_109 = arith.constant dense<0.000000e+00> : vector<16x128xf32>
    %299 = tpu.matmul %297, %298, %cst_109 {dimension_numbers = #tpu.dot_dimension_numbers<[1], [0], [0], [1], [0, 0, 1, 1], [], []>} : vector<16x32xf32>, vector<32x128xf32>, vector<16x128xf32> -> vector<16x128xf32>
    %c0_110 = arith.constant 0 : index
    %c0_111 = arith.constant 0 : index
    %300 = vector.load %arg6[%c0_110, %c0_111] : memref<1x128xf32, #tpu.memory_space<vmem>>, vector<1x128xf32>
    %301 = vector.broadcast %300 : vector<1x128xf32> to vector<16x128xf32>
    %302 = arith.addf %299, %301 : vector<16x128xf32>
    %c0_112 = arith.constant 0 : index
    %c0_113 = arith.constant 0 : index
    %303 = vector.load %arg5[%c0_112, %c0_113] : memref<32x128xf32, #tpu.memory_space<vmem>>, vector<32x128xf32>
    %cst_114 = arith.constant 0.000000e+00 : f32
    %304 = vector.broadcast %cst_114 : f32 to vector<2x32xf32>
    %cst_115 = arith.constant 0.000000e+00 : f32
    %305 = vector.broadcast %cst_115 : f32 to vector<2x32xf32>
    %306 = vector.extract_strided_slice %302 {offsets = [0, 0], sizes = [2, 128], strides = [1, 1]} : vector<16x128xf32> to vector<2x128xf32>
    %cst_116 = arith.constant dense<0.000000e+00> : vector<2x128xf32>
    %307 = tpu.matmul %304, %303, %cst_116 {dimension_numbers = #tpu.dot_dimension_numbers<[1], [0], [0], [1], [0, 0, 1, 1], [], []>} : vector<2x32xf32>, vector<32x128xf32>, vector<2x128xf32> -> vector<2x128xf32>
    %308 = arith.addf %306, %307 : vector<2x128xf32>
    %309 = vector.extract_strided_slice %308 {offsets = [0, 0], sizes = [2, 32], strides = [1, 1]} : vector<2x128xf32> to vector<2x32xf32>
    %cst_117 = arith.constant 5.000000e-01 : f32
    %310 = vector.broadcast %cst_117 : f32 to vector<2x32xf32>
    %311 = arith.mulf %310, %309 : vector<2x32xf32>
    %312 = math.tanh %311 : vector<2x32xf32>
    %cst_118 = arith.constant 5.000000e-01 : f32
    %313 = vector.broadcast %cst_118 : f32 to vector<2x32xf32>
    %314 = arith.mulf %313, %312 : vector<2x32xf32>
    %cst_119 = arith.constant 5.000000e-01 : f32
    %315 = vector.broadcast %cst_119 : f32 to vector<2x32xf32>
    %316 = arith.addf %314, %315 : vector<2x32xf32>
    %317 = vector.extract_strided_slice %308 {offsets = [0, 32], sizes = [2, 32], strides = [1, 1]} : vector<2x128xf32> to vector<2x32xf32>
    %cst_120 = arith.constant 5.000000e-01 : f32
    %318 = vector.broadcast %cst_120 : f32 to vector<2x32xf32>
    %319 = arith.mulf %318, %317 : vector<2x32xf32>
    %320 = math.tanh %319 : vector<2x32xf32>
    %cst_121 = arith.constant 5.000000e-01 : f32
    %321 = vector.broadcast %cst_121 : f32 to vector<2x32xf32>
    %322 = arith.mulf %321, %320 : vector<2x32xf32>
    %cst_122 = arith.constant 5.000000e-01 : f32
    %323 = vector.broadcast %cst_122 : f32 to vector<2x32xf32>
    %324 = arith.addf %322, %323 : vector<2x32xf32>
    %325 = vector.extract_strided_slice %308 {offsets = [0, 64], sizes = [2, 32], strides = [1, 1]} : vector<2x128xf32> to vector<2x32xf32>
    %326 = math.tanh %325 : vector<2x32xf32>
    %327 = vector.extract_strided_slice %308 {offsets = [0, 96], sizes = [2, 32], strides = [1, 1]} : vector<2x128xf32> to vector<2x32xf32>
    %cst_123 = arith.constant 5.000000e-01 : f32
    %328 = vector.broadcast %cst_123 : f32 to vector<2x32xf32>
    %329 = arith.mulf %328, %327 : vector<2x32xf32>
    %330 = math.tanh %329 : vector<2x32xf32>
    %cst_124 = arith.constant 5.000000e-01 : f32
    %331 = vector.broadcast %cst_124 : f32 to vector<2x32xf32>
    %332 = arith.mulf %331, %330 : vector<2x32xf32>
    %cst_125 = arith.constant 5.000000e-01 : f32
    %333 = vector.broadcast %cst_125 : f32 to vector<2x32xf32>
    %334 = arith.addf %332, %333 : vector<2x32xf32>
    %335 = arith.mulf %324, %305 : vector<2x32xf32>
    %336 = arith.mulf %316, %326 : vector<2x32xf32>
    %337 = arith.addf %335, %336 : vector<2x32xf32>
    %338 = math.tanh %337 : vector<2x32xf32>
    %339 = arith.mulf %334, %338 : vector<2x32xf32>
    %c0_126 = arith.constant 0 : index
    %c0_127 = arith.constant 0 : index
    %340 = vector.load %arg9[%c0_126, %c0_127] : memref<16x32xf32, #tpu.memory_space<vmem>>, vector<2x32xf32>
    tpu.vector_store %arg9[%c0_126, %c0_127], %339 {strides = array<i32>} : memref<16x32xf32, #tpu.memory_space<vmem>>, vector<2x32xf32>,
    %341 = vector.extract_strided_slice %302 {offsets = [2, 0], sizes = [2, 128], strides = [1, 1]} : vector<16x128xf32> to vector<2x128xf32>
    %cst_128 = arith.constant dense<0.000000e+00> : vector<2x128xf32>
    %342 = tpu.matmul %339, %303, %cst_128 {dimension_numbers = #tpu.dot_dimension_numbers<[1], [0], [0], [1], [0, 0, 1, 1], [], []>} : vector<2x32xf32>, vector<32x128xf32>, vector<2x128xf32> -> vector<2x128xf32>
    %343 = arith.addf %341, %342 : vector<2x128xf32>
    %344 = vector.extract_strided_slice %343 {offsets = [0, 0], sizes = [2, 32], strides = [1, 1]} : vector<2x128xf32> to vector<2x32xf32>
    %cst_129 = arith.constant 5.000000e-01 : f32
    %345 = vector.broadcast %cst_129 : f32 to vector<2x32xf32>
    %346 = arith.mulf %345, %344 : vector<2x32xf32>
    %347 = math.tanh %346 : vector<2x32xf32>
    %cst_130 = arith.constant 5.000000e-01 : f32
    %348 = vector.broadcast %cst_130 : f32 to vector<2x32xf32>
    %349 = arith.mulf %348, %347 : vector<2x32xf32>
    %cst_131 = arith.constant 5.000000e-01 : f32
    %350 = vector.broadcast %cst_131 : f32 to vector<2x32xf32>
    %351 = arith.addf %349, %350 : vector<2x32xf32>
    %352 = vector.extract_strided_slice %343 {offsets = [0, 32], sizes = [2, 32], strides = [1, 1]} : vector<2x128xf32> to vector<2x32xf32>
    %cst_132 = arith.constant 5.000000e-01 : f32
    %353 = vector.broadcast %cst_132 : f32 to vector<2x32xf32>
    %354 = arith.mulf %353, %352 : vector<2x32xf32>
    %355 = math.tanh %354 : vector<2x32xf32>
    %cst_133 = arith.constant 5.000000e-01 : f32
    %356 = vector.broadcast %cst_133 : f32 to vector<2x32xf32>
    %357 = arith.mulf %356, %355 : vector<2x32xf32>
    %cst_134 = arith.constant 5.000000e-01 : f32
    %358 = vector.broadcast %cst_134 : f32 to vector<2x32xf32>
    %359 = arith.addf %357, %358 : vector<2x32xf32>
    %360 = vector.extract_strided_slice %343 {offsets = [0, 64], sizes = [2, 32], strides = [1, 1]} : vector<2x128xf32> to vector<2x32xf32>
    %361 = math.tanh %360 : vector<2x32xf32>
    %362 = vector.extract_strided_slice %343 {offsets = [0, 96], sizes = [2, 32], strides = [1, 1]} : vector<2x128xf32> to vector<2x32xf32>
    %cst_135 = arith.constant 5.000000e-01 : f32
    %363 = vector.broadcast %cst_135 : f32 to vector<2x32xf32>
    %364 = arith.mulf %363, %362 : vector<2x32xf32>
    %365 = math.tanh %364 : vector<2x32xf32>
    %cst_136 = arith.constant 5.000000e-01 : f32
    %366 = vector.broadcast %cst_136 : f32 to vector<2x32xf32>
    %367 = arith.mulf %366, %365 : vector<2x32xf32>
    %cst_137 = arith.constant 5.000000e-01 : f32
    %368 = vector.broadcast %cst_137 : f32 to vector<2x32xf32>
    %369 = arith.addf %367, %368 : vector<2x32xf32>
    %370 = arith.mulf %359, %337 : vector<2x32xf32>
    %371 = arith.mulf %351, %361 : vector<2x32xf32>
    %372 = arith.addf %370, %371 : vector<2x32xf32>
    %373 = math.tanh %372 : vector<2x32xf32>
    %374 = arith.mulf %369, %373 : vector<2x32xf32>
    %c2_138 = arith.constant 2 : index
    %c0_139 = arith.constant 0 : index
    %375 = vector.load %arg9[%c2_138, %c0_139] : memref<16x32xf32, #tpu.memory_space<vmem>>, vector<2x32xf32>
    tpu.vector_store %arg9[%c2_138, %c0_139], %374 {strides = array<i32>} : memref<16x32xf32, #tpu.memory_space<vmem>>, vector<2x32xf32>,
    %376 = vector.extract_strided_slice %302 {offsets = [4, 0], sizes = [2, 128], strides = [1, 1]} : vector<16x128xf32> to vector<2x128xf32>
    %cst_140 = arith.constant dense<0.000000e+00> : vector<2x128xf32>
    %377 = tpu.matmul %374, %303, %cst_140 {dimension_numbers = #tpu.dot_dimension_numbers<[1], [0], [0], [1], [0, 0, 1, 1], [], []>} : vector<2x32xf32>, vector<32x128xf32>, vector<2x128xf32> -> vector<2x128xf32>
    %378 = arith.addf %376, %377 : vector<2x128xf32>
    %379 = vector.extract_strided_slice %378 {offsets = [0, 0], sizes = [2, 32], strides = [1, 1]} : vector<2x128xf32> to vector<2x32xf32>
    %cst_141 = arith.constant 5.000000e-01 : f32
    %380 = vector.broadcast %cst_141 : f32 to vector<2x32xf32>
    %381 = arith.mulf %380, %379 : vector<2x32xf32>
    %382 = math.tanh %381 : vector<2x32xf32>
    %cst_142 = arith.constant 5.000000e-01 : f32
    %383 = vector.broadcast %cst_142 : f32 to vector<2x32xf32>
    %384 = arith.mulf %383, %382 : vector<2x32xf32>
    %cst_143 = arith.constant 5.000000e-01 : f32
    %385 = vector.broadcast %cst_143 : f32 to vector<2x32xf32>
    %386 = arith.addf %384, %385 : vector<2x32xf32>
    %387 = vector.extract_strided_slice %378 {offsets = [0, 32], sizes = [2, 32], strides = [1, 1]} : vector<2x128xf32> to vector<2x32xf32>
    %cst_144 = arith.constant 5.000000e-01 : f32
    %388 = vector.broadcast %cst_144 : f32 to vector<2x32xf32>
    %389 = arith.mulf %388, %387 : vector<2x32xf32>
    %390 = math.tanh %389 : vector<2x32xf32>
    %cst_145 = arith.constant 5.000000e-01 : f32
    %391 = vector.broadcast %cst_145 : f32 to vector<2x32xf32>
    %392 = arith.mulf %391, %390 : vector<2x32xf32>
    %cst_146 = arith.constant 5.000000e-01 : f32
    %393 = vector.broadcast %cst_146 : f32 to vector<2x32xf32>
    %394 = arith.addf %392, %393 : vector<2x32xf32>
    %395 = vector.extract_strided_slice %378 {offsets = [0, 64], sizes = [2, 32], strides = [1, 1]} : vector<2x128xf32> to vector<2x32xf32>
    %396 = math.tanh %395 : vector<2x32xf32>
    %397 = vector.extract_strided_slice %378 {offsets = [0, 96], sizes = [2, 32], strides = [1, 1]} : vector<2x128xf32> to vector<2x32xf32>
    %cst_147 = arith.constant 5.000000e-01 : f32
    %398 = vector.broadcast %cst_147 : f32 to vector<2x32xf32>
    %399 = arith.mulf %398, %397 : vector<2x32xf32>
    %400 = math.tanh %399 : vector<2x32xf32>
    %cst_148 = arith.constant 5.000000e-01 : f32
    %401 = vector.broadcast %cst_148 : f32 to vector<2x32xf32>
    %402 = arith.mulf %401, %400 : vector<2x32xf32>
    %cst_149 = arith.constant 5.000000e-01 : f32
    %403 = vector.broadcast %cst_149 : f32 to vector<2x32xf32>
    %404 = arith.addf %402, %403 : vector<2x32xf32>
    %405 = arith.mulf %394, %372 : vector<2x32xf32>
    %406 = arith.mulf %386, %396 : vector<2x32xf32>
    %407 = arith.addf %405, %406 : vector<2x32xf32>
    %408 = math.tanh %407 : vector<2x32xf32>
    %409 = arith.mulf %404, %408 : vector<2x32xf32>
    %c4_150 = arith.constant 4 : index
    %c0_151 = arith.constant 0 : index
    %410 = vector.load %arg9[%c4_150, %c0_151] : memref<16x32xf32, #tpu.memory_space<vmem>>, vector<2x32xf32>
    tpu.vector_store %arg9[%c4_150, %c0_151], %409 {strides = array<i32>} : memref<16x32xf32, #tpu.memory_space<vmem>>, vector<2x32xf32>,
    %411 = vector.extract_strided_slice %302 {offsets = [6, 0], sizes = [2, 128], strides = [1, 1]} : vector<16x128xf32> to vector<2x128xf32>
    %cst_152 = arith.constant dense<0.000000e+00> : vector<2x128xf32>
    %412 = tpu.matmul %409, %303, %cst_152 {dimension_numbers = #tpu.dot_dimension_numbers<[1], [0], [0], [1], [0, 0, 1, 1], [], []>} : vector<2x32xf32>, vector<32x128xf32>, vector<2x128xf32> -> vector<2x128xf32>
    %413 = arith.addf %411, %412 : vector<2x128xf32>
    %414 = vector.extract_strided_slice %413 {offsets = [0, 0], sizes = [2, 32], strides = [1, 1]} : vector<2x128xf32> to vector<2x32xf32>
    %cst_153 = arith.constant 5.000000e-01 : f32
    %415 = vector.broadcast %cst_153 : f32 to vector<2x32xf32>
    %416 = arith.mulf %415, %414 : vector<2x32xf32>
    %417 = math.tanh %416 : vector<2x32xf32>
    %cst_154 = arith.constant 5.000000e-01 : f32
    %418 = vector.broadcast %cst_154 : f32 to vector<2x32xf32>
    %419 = arith.mulf %418, %417 : vector<2x32xf32>
    %cst_155 = arith.constant 5.000000e-01 : f32
    %420 = vector.broadcast %cst_155 : f32 to vector<2x32xf32>
    %421 = arith.addf %419, %420 : vector<2x32xf32>
    %422 = vector.extract_strided_slice %413 {offsets = [0, 32], sizes = [2, 32], strides = [1, 1]} : vector<2x128xf32> to vector<2x32xf32>
    %cst_156 = arith.constant 5.000000e-01 : f32
    %423 = vector.broadcast %cst_156 : f32 to vector<2x32xf32>
    %424 = arith.mulf %423, %422 : vector<2x32xf32>
    %425 = math.tanh %424 : vector<2x32xf32>
    %cst_157 = arith.constant 5.000000e-01 : f32
    %426 = vector.broadcast %cst_157 : f32 to vector<2x32xf32>
    %427 = arith.mulf %426, %425 : vector<2x32xf32>
    %cst_158 = arith.constant 5.000000e-01 : f32
    %428 = vector.broadcast %cst_158 : f32 to vector<2x32xf32>
    %429 = arith.addf %427, %428 : vector<2x32xf32>
    %430 = vector.extract_strided_slice %413 {offsets = [0, 64], sizes = [2, 32], strides = [1, 1]} : vector<2x128xf32> to vector<2x32xf32>
    %431 = math.tanh %430 : vector<2x32xf32>
    %432 = vector.extract_strided_slice %413 {offsets = [0, 96], sizes = [2, 32], strides = [1, 1]} : vector<2x128xf32> to vector<2x32xf32>
    %cst_159 = arith.constant 5.000000e-01 : f32
    %433 = vector.broadcast %cst_159 : f32 to vector<2x32xf32>
    %434 = arith.mulf %433, %432 : vector<2x32xf32>
    %435 = math.tanh %434 : vector<2x32xf32>
    %cst_160 = arith.constant 5.000000e-01 : f32
    %436 = vector.broadcast %cst_160 : f32 to vector<2x32xf32>
    %437 = arith.mulf %436, %435 : vector<2x32xf32>
    %cst_161 = arith.constant 5.000000e-01 : f32
    %438 = vector.broadcast %cst_161 : f32 to vector<2x32xf32>
    %439 = arith.addf %437, %438 : vector<2x32xf32>
    %440 = arith.mulf %429, %407 : vector<2x32xf32>
    %441 = arith.mulf %421, %431 : vector<2x32xf32>
    %442 = arith.addf %440, %441 : vector<2x32xf32>
    %443 = math.tanh %442 : vector<2x32xf32>
    %444 = arith.mulf %439, %443 : vector<2x32xf32>
    %c6_162 = arith.constant 6 : index
    %c0_163 = arith.constant 0 : index
    %445 = vector.load %arg9[%c6_162, %c0_163] : memref<16x32xf32, #tpu.memory_space<vmem>>, vector<2x32xf32>
    tpu.vector_store %arg9[%c6_162, %c0_163], %444 {strides = array<i32>} : memref<16x32xf32, #tpu.memory_space<vmem>>, vector<2x32xf32>,
    %446 = vector.extract_strided_slice %302 {offsets = [8, 0], sizes = [2, 128], strides = [1, 1]} : vector<16x128xf32> to vector<2x128xf32>
    %cst_164 = arith.constant dense<0.000000e+00> : vector<2x128xf32>
    %447 = tpu.matmul %444, %303, %cst_164 {dimension_numbers = #tpu.dot_dimension_numbers<[1], [0], [0], [1], [0, 0, 1, 1], [], []>} : vector<2x32xf32>, vector<32x128xf32>, vector<2x128xf32> -> vector<2x128xf32>
    %448 = arith.addf %446, %447 : vector<2x128xf32>
    %449 = vector.extract_strided_slice %448 {offsets = [0, 0], sizes = [2, 32], strides = [1, 1]} : vector<2x128xf32> to vector<2x32xf32>
    %cst_165 = arith.constant 5.000000e-01 : f32
    %450 = vector.broadcast %cst_165 : f32 to vector<2x32xf32>
    %451 = arith.mulf %450, %449 : vector<2x32xf32>
    %452 = math.tanh %451 : vector<2x32xf32>
    %cst_166 = arith.constant 5.000000e-01 : f32
    %453 = vector.broadcast %cst_166 : f32 to vector<2x32xf32>
    %454 = arith.mulf %453, %452 : vector<2x32xf32>
    %cst_167 = arith.constant 5.000000e-01 : f32
    %455 = vector.broadcast %cst_167 : f32 to vector<2x32xf32>
    %456 = arith.addf %454, %455 : vector<2x32xf32>
    %457 = vector.extract_strided_slice %448 {offsets = [0, 32], sizes = [2, 32], strides = [1, 1]} : vector<2x128xf32> to vector<2x32xf32>
    %cst_168 = arith.constant 5.000000e-01 : f32
    %458 = vector.broadcast %cst_168 : f32 to vector<2x32xf32>
    %459 = arith.mulf %458, %457 : vector<2x32xf32>
    %460 = math.tanh %459 : vector<2x32xf32>
    %cst_169 = arith.constant 5.000000e-01 : f32
    %461 = vector.broadcast %cst_169 : f32 to vector<2x32xf32>
    %462 = arith.mulf %461, %460 : vector<2x32xf32>
    %cst_170 = arith.constant 5.000000e-01 : f32
    %463 = vector.broadcast %cst_170 : f32 to vector<2x32xf32>
    %464 = arith.addf %462, %463 : vector<2x32xf32>
    %465 = vector.extract_strided_slice %448 {offsets = [0, 64], sizes = [2, 32], strides = [1, 1]} : vector<2x128xf32> to vector<2x32xf32>
    %466 = math.tanh %465 : vector<2x32xf32>
    %467 = vector.extract_strided_slice %448 {offsets = [0, 96], sizes = [2, 32], strides = [1, 1]} : vector<2x128xf32> to vector<2x32xf32>
    %cst_171 = arith.constant 5.000000e-01 : f32
    %468 = vector.broadcast %cst_171 : f32 to vector<2x32xf32>
    %469 = arith.mulf %468, %467 : vector<2x32xf32>
    %470 = math.tanh %469 : vector<2x32xf32>
    %cst_172 = arith.constant 5.000000e-01 : f32
    %471 = vector.broadcast %cst_172 : f32 to vector<2x32xf32>
    %472 = arith.mulf %471, %470 : vector<2x32xf32>
    %cst_173 = arith.constant 5.000000e-01 : f32
    %473 = vector.broadcast %cst_173 : f32 to vector<2x32xf32>
    %474 = arith.addf %472, %473 : vector<2x32xf32>
    %475 = arith.mulf %464, %442 : vector<2x32xf32>
    %476 = arith.mulf %456, %466 : vector<2x32xf32>
    %477 = arith.addf %475, %476 : vector<2x32xf32>
    %478 = math.tanh %477 : vector<2x32xf32>
    %479 = arith.mulf %474, %478 : vector<2x32xf32>
    %c8_174 = arith.constant 8 : index
    %c0_175 = arith.constant 0 : index
    %480 = vector.load %arg9[%c8_174, %c0_175] : memref<16x32xf32, #tpu.memory_space<vmem>>, vector<2x32xf32>
    tpu.vector_store %arg9[%c8_174, %c0_175], %479 {strides = array<i32>} : memref<16x32xf32, #tpu.memory_space<vmem>>, vector<2x32xf32>,
    %481 = vector.extract_strided_slice %302 {offsets = [10, 0], sizes = [2, 128], strides = [1, 1]} : vector<16x128xf32> to vector<2x128xf32>
    %cst_176 = arith.constant dense<0.000000e+00> : vector<2x128xf32>
    %482 = tpu.matmul %479, %303, %cst_176 {dimension_numbers = #tpu.dot_dimension_numbers<[1], [0], [0], [1], [0, 0, 1, 1], [], []>} : vector<2x32xf32>, vector<32x128xf32>, vector<2x128xf32> -> vector<2x128xf32>
    %483 = arith.addf %481, %482 : vector<2x128xf32>
    %484 = vector.extract_strided_slice %483 {offsets = [0, 0], sizes = [2, 32], strides = [1, 1]} : vector<2x128xf32> to vector<2x32xf32>
    %cst_177 = arith.constant 5.000000e-01 : f32
    %485 = vector.broadcast %cst_177 : f32 to vector<2x32xf32>
    %486 = arith.mulf %485, %484 : vector<2x32xf32>
    %487 = math.tanh %486 : vector<2x32xf32>
    %cst_178 = arith.constant 5.000000e-01 : f32
    %488 = vector.broadcast %cst_178 : f32 to vector<2x32xf32>
    %489 = arith.mulf %488, %487 : vector<2x32xf32>
    %cst_179 = arith.constant 5.000000e-01 : f32
    %490 = vector.broadcast %cst_179 : f32 to vector<2x32xf32>
    %491 = arith.addf %489, %490 : vector<2x32xf32>
    %492 = vector.extract_strided_slice %483 {offsets = [0, 32], sizes = [2, 32], strides = [1, 1]} : vector<2x128xf32> to vector<2x32xf32>
    %cst_180 = arith.constant 5.000000e-01 : f32
    %493 = vector.broadcast %cst_180 : f32 to vector<2x32xf32>
    %494 = arith.mulf %493, %492 : vector<2x32xf32>
    %495 = math.tanh %494 : vector<2x32xf32>
    %cst_181 = arith.constant 5.000000e-01 : f32
    %496 = vector.broadcast %cst_181 : f32 to vector<2x32xf32>
    %497 = arith.mulf %496, %495 : vector<2x32xf32>
    %cst_182 = arith.constant 5.000000e-01 : f32
    %498 = vector.broadcast %cst_182 : f32 to vector<2x32xf32>
    %499 = arith.addf %497, %498 : vector<2x32xf32>
    %500 = vector.extract_strided_slice %483 {offsets = [0, 64], sizes = [2, 32], strides = [1, 1]} : vector<2x128xf32> to vector<2x32xf32>
    %501 = math.tanh %500 : vector<2x32xf32>
    %502 = vector.extract_strided_slice %483 {offsets = [0, 96], sizes = [2, 32], strides = [1, 1]} : vector<2x128xf32> to vector<2x32xf32>
    %cst_183 = arith.constant 5.000000e-01 : f32
    %503 = vector.broadcast %cst_183 : f32 to vector<2x32xf32>
    %504 = arith.mulf %503, %502 : vector<2x32xf32>
    %505 = math.tanh %504 : vector<2x32xf32>
    %cst_184 = arith.constant 5.000000e-01 : f32
    %506 = vector.broadcast %cst_184 : f32 to vector<2x32xf32>
    %507 = arith.mulf %506, %505 : vector<2x32xf32>
    %cst_185 = arith.constant 5.000000e-01 : f32
    %508 = vector.broadcast %cst_185 : f32 to vector<2x32xf32>
    %509 = arith.addf %507, %508 : vector<2x32xf32>
    %510 = arith.mulf %499, %477 : vector<2x32xf32>
    %511 = arith.mulf %491, %501 : vector<2x32xf32>
    %512 = arith.addf %510, %511 : vector<2x32xf32>
    %513 = math.tanh %512 : vector<2x32xf32>
    %514 = arith.mulf %509, %513 : vector<2x32xf32>
    %c10_186 = arith.constant 10 : index
    %c0_187 = arith.constant 0 : index
    %515 = vector.load %arg9[%c10_186, %c0_187] : memref<16x32xf32, #tpu.memory_space<vmem>>, vector<2x32xf32>
    tpu.vector_store %arg9[%c10_186, %c0_187], %514 {strides = array<i32>} : memref<16x32xf32, #tpu.memory_space<vmem>>, vector<2x32xf32>,
    %516 = vector.extract_strided_slice %302 {offsets = [12, 0], sizes = [2, 128], strides = [1, 1]} : vector<16x128xf32> to vector<2x128xf32>
    %cst_188 = arith.constant dense<0.000000e+00> : vector<2x128xf32>
    %517 = tpu.matmul %514, %303, %cst_188 {dimension_numbers = #tpu.dot_dimension_numbers<[1], [0], [0], [1], [0, 0, 1, 1], [], []>} : vector<2x32xf32>, vector<32x128xf32>, vector<2x128xf32> -> vector<2x128xf32>
    %518 = arith.addf %516, %517 : vector<2x128xf32>
    %519 = vector.extract_strided_slice %518 {offsets = [0, 0], sizes = [2, 32], strides = [1, 1]} : vector<2x128xf32> to vector<2x32xf32>
    %cst_189 = arith.constant 5.000000e-01 : f32
    %520 = vector.broadcast %cst_189 : f32 to vector<2x32xf32>
    %521 = arith.mulf %520, %519 : vector<2x32xf32>
    %522 = math.tanh %521 : vector<2x32xf32>
    %cst_190 = arith.constant 5.000000e-01 : f32
    %523 = vector.broadcast %cst_190 : f32 to vector<2x32xf32>
    %524 = arith.mulf %523, %522 : vector<2x32xf32>
    %cst_191 = arith.constant 5.000000e-01 : f32
    %525 = vector.broadcast %cst_191 : f32 to vector<2x32xf32>
    %526 = arith.addf %524, %525 : vector<2x32xf32>
    %527 = vector.extract_strided_slice %518 {offsets = [0, 32], sizes = [2, 32], strides = [1, 1]} : vector<2x128xf32> to vector<2x32xf32>
    %cst_192 = arith.constant 5.000000e-01 : f32
    %528 = vector.broadcast %cst_192 : f32 to vector<2x32xf32>
    %529 = arith.mulf %528, %527 : vector<2x32xf32>
    %530 = math.tanh %529 : vector<2x32xf32>
    %cst_193 = arith.constant 5.000000e-01 : f32
    %531 = vector.broadcast %cst_193 : f32 to vector<2x32xf32>
    %532 = arith.mulf %531, %530 : vector<2x32xf32>
    %cst_194 = arith.constant 5.000000e-01 : f32
    %533 = vector.broadcast %cst_194 : f32 to vector<2x32xf32>
    %534 = arith.addf %532, %533 : vector<2x32xf32>
    %535 = vector.extract_strided_slice %518 {offsets = [0, 64], sizes = [2, 32], strides = [1, 1]} : vector<2x128xf32> to vector<2x32xf32>
    %536 = math.tanh %535 : vector<2x32xf32>
    %537 = vector.extract_strided_slice %518 {offsets = [0, 96], sizes = [2, 32], strides = [1, 1]} : vector<2x128xf32> to vector<2x32xf32>
    %cst_195 = arith.constant 5.000000e-01 : f32
    %538 = vector.broadcast %cst_195 : f32 to vector<2x32xf32>
    %539 = arith.mulf %538, %537 : vector<2x32xf32>
    %540 = math.tanh %539 : vector<2x32xf32>
    %cst_196 = arith.constant 5.000000e-01 : f32
    %541 = vector.broadcast %cst_196 : f32 to vector<2x32xf32>
    %542 = arith.mulf %541, %540 : vector<2x32xf32>
    %cst_197 = arith.constant 5.000000e-01 : f32
    %543 = vector.broadcast %cst_197 : f32 to vector<2x32xf32>
    %544 = arith.addf %542, %543 : vector<2x32xf32>
    %545 = arith.mulf %534, %512 : vector<2x32xf32>
    %546 = arith.mulf %526, %536 : vector<2x32xf32>
    %547 = arith.addf %545, %546 : vector<2x32xf32>
    %548 = math.tanh %547 : vector<2x32xf32>
    %549 = arith.mulf %544, %548 : vector<2x32xf32>
    %c12_198 = arith.constant 12 : index
    %c0_199 = arith.constant 0 : index
    %550 = vector.load %arg9[%c12_198, %c0_199] : memref<16x32xf32, #tpu.memory_space<vmem>>, vector<2x32xf32>
    tpu.vector_store %arg9[%c12_198, %c0_199], %549 {strides = array<i32>} : memref<16x32xf32, #tpu.memory_space<vmem>>, vector<2x32xf32>,
    %551 = vector.extract_strided_slice %302 {offsets = [14, 0], sizes = [2, 128], strides = [1, 1]} : vector<16x128xf32> to vector<2x128xf32>
    %cst_200 = arith.constant dense<0.000000e+00> : vector<2x128xf32>
    %552 = tpu.matmul %549, %303, %cst_200 {dimension_numbers = #tpu.dot_dimension_numbers<[1], [0], [0], [1], [0, 0, 1, 1], [], []>} : vector<2x32xf32>, vector<32x128xf32>, vector<2x128xf32> -> vector<2x128xf32>
    %553 = arith.addf %551, %552 : vector<2x128xf32>
    %554 = vector.extract_strided_slice %553 {offsets = [0, 0], sizes = [2, 32], strides = [1, 1]} : vector<2x128xf32> to vector<2x32xf32>
    %cst_201 = arith.constant 5.000000e-01 : f32
    %555 = vector.broadcast %cst_201 : f32 to vector<2x32xf32>
    %556 = arith.mulf %555, %554 : vector<2x32xf32>
    %557 = math.tanh %556 : vector<2x32xf32>
    %cst_202 = arith.constant 5.000000e-01 : f32
    %558 = vector.broadcast %cst_202 : f32 to vector<2x32xf32>
    %559 = arith.mulf %558, %557 : vector<2x32xf32>
    %cst_203 = arith.constant 5.000000e-01 : f32
    %560 = vector.broadcast %cst_203 : f32 to vector<2x32xf32>
    %561 = arith.addf %559, %560 : vector<2x32xf32>
    %562 = vector.extract_strided_slice %553 {offsets = [0, 32], sizes = [2, 32], strides = [1, 1]} : vector<2x128xf32> to vector<2x32xf32>
    %cst_204 = arith.constant 5.000000e-01 : f32
    %563 = vector.broadcast %cst_204 : f32 to vector<2x32xf32>
    %564 = arith.mulf %563, %562 : vector<2x32xf32>
    %565 = math.tanh %564 : vector<2x32xf32>
    %cst_205 = arith.constant 5.000000e-01 : f32
    %566 = vector.broadcast %cst_205 : f32 to vector<2x32xf32>
    %567 = arith.mulf %566, %565 : vector<2x32xf32>
    %cst_206 = arith.constant 5.000000e-01 : f32
    %568 = vector.broadcast %cst_206 : f32 to vector<2x32xf32>
    %569 = arith.addf %567, %568 : vector<2x32xf32>
    %570 = vector.extract_strided_slice %553 {offsets = [0, 64], sizes = [2, 32], strides = [1, 1]} : vector<2x128xf32> to vector<2x32xf32>
    %571 = math.tanh %570 : vector<2x32xf32>
    %572 = vector.extract_strided_slice %553 {offsets = [0, 96], sizes = [2, 32], strides = [1, 1]} : vector<2x128xf32> to vector<2x32xf32>
    %cst_207 = arith.constant 5.000000e-01 : f32
    %573 = vector.broadcast %cst_207 : f32 to vector<2x32xf32>
    %574 = arith.mulf %573, %572 : vector<2x32xf32>
    %575 = math.tanh %574 : vector<2x32xf32>
    %cst_208 = arith.constant 5.000000e-01 : f32
    %576 = vector.broadcast %cst_208 : f32 to vector<2x32xf32>
    %577 = arith.mulf %576, %575 : vector<2x32xf32>
    %cst_209 = arith.constant 5.000000e-01 : f32
    %578 = vector.broadcast %cst_209 : f32 to vector<2x32xf32>
    %579 = arith.addf %577, %578 : vector<2x32xf32>
    %580 = arith.mulf %569, %547 : vector<2x32xf32>
    %581 = arith.mulf %561, %571 : vector<2x32xf32>
    %582 = arith.addf %580, %581 : vector<2x32xf32>
    %583 = math.tanh %582 : vector<2x32xf32>
    %584 = arith.mulf %579, %583 : vector<2x32xf32>
    %c14_210 = arith.constant 14 : index
    %c0_211 = arith.constant 0 : index
    %585 = vector.load %arg9[%c14_210, %c0_211] : memref<16x32xf32, #tpu.memory_space<vmem>>, vector<2x32xf32>
    tpu.vector_store %arg9[%c14_210, %c0_211], %584 {strides = array<i32>} : memref<16x32xf32, #tpu.memory_space<vmem>>, vector<2x32xf32>,
    %c1 = arith.constant 1 : index
    %c0_212 = arith.constant 0 : index
    %c0_213 = arith.constant 0 : index
    %586 = vector.load %arg11[%c1, %c0_212, %c0_213] : memref<2x2x32xf32, #tpu.memory_space<vmem>>, vector<1x2x32xf32>
    %587 = vector.shape_cast %586 : vector<1x2x32xf32> to vector<2x32xf32>
    %588 = vector.shape_cast %584 : vector<2x32xf32> to vector<1x2x32xf32>
    tpu.vector_store %arg11[%c1, %c0_212, %c0_213], %588 {strides = array<i32>} : memref<2x2x32xf32, #tpu.memory_space<vmem>>, vector<1x2x32xf32>,
    %c1_214 = arith.constant 1 : index
    %c0_215 = arith.constant 0 : index
    %c0_216 = arith.constant 0 : index
    %589 = vector.load %arg12[%c1_214, %c0_215, %c0_216] : memref<2x2x32xf32, #tpu.memory_space<vmem>>, vector<1x2x32xf32>
    %590 = vector.shape_cast %589 : vector<1x2x32xf32> to vector<2x32xf32>
    %591 = vector.shape_cast %582 : vector<2x32xf32> to vector<1x2x32xf32>
    tpu.vector_store %arg12[%c1_214, %c0_215, %c0_216], %591 {strides = array<i32>} : memref<2x2x32xf32, #tpu.memory_space<vmem>>, vector<1x2x32xf32>,
    %c0_217 = arith.constant 0 : index
    %c0_218 = arith.constant 0 : index
    %592 = vector.load %arg9[%c0_217, %c0_218] : memref<16x32xf32, #tpu.memory_space<vmem>>, vector<16x32xf32>
    %c0_219 = arith.constant 0 : index
    %c0_220 = arith.constant 0 : index
    %593 = vector.load %arg7[%c0_219, %c0_220] : memref<32x9xf32, #tpu.memory_space<vmem>>, vector<32x9xf32>
    %cst_221 = arith.constant dense<0.000000e+00> : vector<16x9xf32>
    %594 = tpu.matmul %592, %593, %cst_221 {dimension_numbers = #tpu.dot_dimension_numbers<[1], [0], [0], [1], [0, 0, 1, 1], [], []>} : vector<16x32xf32>, vector<32x9xf32>, vector<16x9xf32> -> vector<16x9xf32>
    %c0_222 = arith.constant 0 : index
    %c0_223 = arith.constant 0 : index
    %595 = vector.load %arg8[%c0_222, %c0_223] : memref<1x9xf32, #tpu.memory_space<vmem>>, vector<1x9xf32>
    %596 = vector.broadcast %595 : vector<1x9xf32> to vector<16x9xf32>
    %597 = arith.addf %594, %596 : vector<16x9xf32>
    %598 = vector.extract_strided_slice %597 {offsets = [0, 0], sizes = [2, 9], strides = [1, 1]} : vector<16x9xf32> to vector<2x9xf32>
    %599 = vector.extract_strided_slice %597 {offsets = [2, 0], sizes = [2, 9], strides = [1, 1]} : vector<16x9xf32> to vector<2x9xf32>
    %600 = arith.maximumf %598, %599 : vector<2x9xf32>
    %601 = vector.extract_strided_slice %597 {offsets = [4, 0], sizes = [2, 9], strides = [1, 1]} : vector<16x9xf32> to vector<2x9xf32>
    %602 = arith.maximumf %600, %601 : vector<2x9xf32>
    %603 = vector.extract_strided_slice %597 {offsets = [6, 0], sizes = [2, 9], strides = [1, 1]} : vector<16x9xf32> to vector<2x9xf32>
    %604 = arith.maximumf %602, %603 : vector<2x9xf32>
    %605 = vector.extract_strided_slice %597 {offsets = [8, 0], sizes = [2, 9], strides = [1, 1]} : vector<16x9xf32> to vector<2x9xf32>
    %606 = arith.maximumf %604, %605 : vector<2x9xf32>
    %607 = vector.extract_strided_slice %597 {offsets = [10, 0], sizes = [2, 9], strides = [1, 1]} : vector<16x9xf32> to vector<2x9xf32>
    %608 = arith.maximumf %606, %607 : vector<2x9xf32>
    %609 = vector.extract_strided_slice %597 {offsets = [12, 0], sizes = [2, 9], strides = [1, 1]} : vector<16x9xf32> to vector<2x9xf32>
    %610 = arith.maximumf %608, %609 : vector<2x9xf32>
    %611 = vector.extract_strided_slice %597 {offsets = [14, 0], sizes = [2, 9], strides = [1, 1]} : vector<16x9xf32> to vector<2x9xf32>
    %612 = arith.maximumf %610, %611 : vector<2x9xf32>
    %cst_224 = arith.constant 0.000000e+00 : f32
    %613 = vector.broadcast %cst_224 : f32 to vector<2x9xf32>
    %614 = vector.extract_strided_slice %597 {offsets = [0, 0], sizes = [2, 9], strides = [1, 1]} : vector<16x9xf32> to vector<2x9xf32>
    %615 = arith.subf %614, %612 : vector<2x9xf32>
    %616 = math.exp %615 : vector<2x9xf32>
    %617 = arith.addf %613, %616 : vector<2x9xf32>
    %618 = vector.extract_strided_slice %597 {offsets = [2, 0], sizes = [2, 9], strides = [1, 1]} : vector<16x9xf32> to vector<2x9xf32>
    %619 = arith.subf %618, %612 : vector<2x9xf32>
    %620 = math.exp %619 : vector<2x9xf32>
    %621 = arith.addf %617, %620 : vector<2x9xf32>
    %622 = vector.extract_strided_slice %597 {offsets = [4, 0], sizes = [2, 9], strides = [1, 1]} : vector<16x9xf32> to vector<2x9xf32>
    %623 = arith.subf %622, %612 : vector<2x9xf32>
    %624 = math.exp %623 : vector<2x9xf32>
    %625 = arith.addf %621, %624 : vector<2x9xf32>
    %626 = vector.extract_strided_slice %597 {offsets = [6, 0], sizes = [2, 9], strides = [1, 1]} : vector<16x9xf32> to vector<2x9xf32>
    %627 = arith.subf %626, %612 : vector<2x9xf32>
    %628 = math.exp %627 : vector<2x9xf32>
    %629 = arith.addf %625, %628 : vector<2x9xf32>
    %630 = vector.extract_strided_slice %597 {offsets = [8, 0], sizes = [2, 9], strides = [1, 1]} : vector<16x9xf32> to vector<2x9xf32>
    %631 = arith.subf %630, %612 : vector<2x9xf32>
    %632 = math.exp %631 : vector<2x9xf32>
    %633 = arith.addf %629, %632 : vector<2x9xf32>
    %634 = vector.extract_strided_slice %597 {offsets = [10, 0], sizes = [2, 9], strides = [1, 1]} : vector<16x9xf32> to vector<2x9xf32>
    %635 = arith.subf %634, %612 : vector<2x9xf32>
    %636 = math.exp %635 : vector<2x9xf32>
    %637 = arith.addf %633, %636 : vector<2x9xf32>
    %638 = vector.extract_strided_slice %597 {offsets = [12, 0], sizes = [2, 9], strides = [1, 1]} : vector<16x9xf32> to vector<2x9xf32>
    %639 = arith.subf %638, %612 : vector<2x9xf32>
    %640 = math.exp %639 : vector<2x9xf32>
    %641 = arith.addf %637, %640 : vector<2x9xf32>
    %642 = vector.extract_strided_slice %597 {offsets = [14, 0], sizes = [2, 9], strides = [1, 1]} : vector<16x9xf32> to vector<2x9xf32>
    %643 = arith.subf %642, %612 : vector<2x9xf32>
    %644 = math.exp %643 : vector<2x9xf32>
    %645 = arith.addf %641, %644 : vector<2x9xf32>
    %646 = math.log %645 : vector<2x9xf32>
    %647 = arith.addf %612, %646 : vector<2x9xf32>
    %648 = vector.extract_strided_slice %597 {offsets = [0, 0], sizes = [2, 9], strides = [1, 1]} : vector<16x9xf32> to vector<2x9xf32>
    %649 = arith.subf %648, %647 : vector<2x9xf32>
    %c0_225 = arith.constant 0 : index
    %c0_226 = arith.constant 0 : index
    %650 = vector.load %arg10[%c0_225, %c0_226] : memref<16x9xf32, #tpu.memory_space<vmem>>, vector<2x9xf32>
    tpu.vector_store %arg10[%c0_225, %c0_226], %649 {strides = array<i32>} : memref<16x9xf32, #tpu.memory_space<vmem>>, vector<2x9xf32>,
    %651 = vector.extract_strided_slice %597 {offsets = [2, 0], sizes = [2, 9], strides = [1, 1]} : vector<16x9xf32> to vector<2x9xf32>
    %652 = arith.subf %651, %647 : vector<2x9xf32>
    %c2_227 = arith.constant 2 : index
    %c0_228 = arith.constant 0 : index
    %653 = vector.load %arg10[%c2_227, %c0_228] : memref<16x9xf32, #tpu.memory_space<vmem>>, vector<2x9xf32>
    tpu.vector_store %arg10[%c2_227, %c0_228], %652 {strides = array<i32>} : memref<16x9xf32, #tpu.memory_space<vmem>>, vector<2x9xf32>,
    %654 = vector.extract_strided_slice %597 {offsets = [4, 0], sizes = [2, 9], strides = [1, 1]} : vector<16x9xf32> to vector<2x9xf32>
    %655 = arith.subf %654, %647 : vector<2x9xf32>
    %c4_229 = arith.constant 4 : index
    %c0_230 = arith.constant 0 : index
    %656 = vector.load %arg10[%c4_229, %c0_230] : memref<16x9xf32, #tpu.memory_space<vmem>>, vector<2x9xf32>
    tpu.vector_store %arg10[%c4_229, %c0_230], %655 {strides = array<i32>} : memref<16x9xf32, #tpu.memory_space<vmem>>, vector<2x9xf32>,
    %657 = vector.extract_strided_slice %597 {offsets = [6, 0], sizes = [2, 9], strides = [1, 1]} : vector<16x9xf32> to vector<2x9xf32>
    %658 = arith.subf %657, %647 : vector<2x9xf32>
    %c6_231 = arith.constant 6 : index
    %c0_232 = arith.constant 0 : index
    %659 = vector.load %arg10[%c6_231, %c0_232] : memref<16x9xf32, #tpu.memory_space<vmem>>, vector<2x9xf32>
    tpu.vector_store %arg10[%c6_231, %c0_232], %658 {strides = array<i32>} : memref<16x9xf32, #tpu.memory_space<vmem>>, vector<2x9xf32>,
    %660 = vector.extract_strided_slice %597 {offsets = [8, 0], sizes = [2, 9], strides = [1, 1]} : vector<16x9xf32> to vector<2x9xf32>
    %661 = arith.subf %660, %647 : vector<2x9xf32>
    %c8_233 = arith.constant 8 : index
    %c0_234 = arith.constant 0 : index
    %662 = vector.load %arg10[%c8_233, %c0_234] : memref<16x9xf32, #tpu.memory_space<vmem>>, vector<2x9xf32>
    tpu.vector_store %arg10[%c8_233, %c0_234], %661 {strides = array<i32>} : memref<16x9xf32, #tpu.memory_space<vmem>>, vector<2x9xf32>,
    %663 = vector.extract_strided_slice %597 {offsets = [10, 0], sizes = [2, 9], strides = [1, 1]} : vector<16x9xf32> to vector<2x9xf32>
    %664 = arith.subf %663, %647 : vector<2x9xf32>
    %c10_235 = arith.constant 10 : index
    %c0_236 = arith.constant 0 : index
    %665 = vector.load %arg10[%c10_235, %c0_236] : memref<16x9xf32, #tpu.memory_space<vmem>>, vector<2x9xf32>
    tpu.vector_store %arg10[%c10_235, %c0_236], %664 {strides = array<i32>} : memref<16x9xf32, #tpu.memory_space<vmem>>, vector<2x9xf32>,
    %666 = vector.extract_strided_slice %597 {offsets = [12, 0], sizes = [2, 9], strides = [1, 1]} : vector<16x9xf32> to vector<2x9xf32>
    %667 = arith.subf %666, %647 : vector<2x9xf32>
    %c12_237 = arith.constant 12 : index
    %c0_238 = arith.constant 0 : index
    %668 = vector.load %arg10[%c12_237, %c0_238] : memref<16x9xf32, #tpu.memory_space<vmem>>, vector<2x9xf32>
    tpu.vector_store %arg10[%c12_237, %c0_238], %667 {strides = array<i32>} : memref<16x9xf32, #tpu.memory_space<vmem>>, vector<2x9xf32>,
    %669 = vector.extract_strided_slice %597 {offsets = [14, 0], sizes = [2, 9], strides = [1, 1]} : vector<16x9xf32> to vector<2x9xf32>
    %670 = arith.subf %669, %647 : vector<2x9xf32>
    %c14_239 = arith.constant 14 : index
    %c0_240 = arith.constant 0 : index
    %671 = vector.load %arg10[%c14_239, %c0_240] : memref<16x9xf32, #tpu.memory_space<vmem>>, vector<2x9xf32>
    tpu.vector_store %arg10[%c14_239, %c0_240], %670 {strides = array<i32>} : memref<16x9xf32, #tpu.memory_space<vmem>>, vector<2x9xf32>,
    return
  }
}

</mosaic_0001>

<llo_original>
// kernel: decoder_rnn_forward.1
$region0: #{decoder_rnn_forward.1}
  #allocation0 [shape = 'u32[]', space=smem, size = 0x4, offset = 0x4, fixed_abs, tag = 'smem constant byte address 0x4 - core index']
  #allocation1 [shape = 'u32[144,128]{1,0:T(1,128)}', space=vmem, size = 0x12000, scoped, tag = 'internal scratch']
  #allocation2 [shape = 'f32[16,32]{1,0:T(8,128)}', space=vmem, size = 0x2000, scoped, tag = 'scratch operand']
  %s0 = inlined_call_operand.vmem [shape: f32[16,32], index: 0, kind: input, shape index: {}]
  %s1 = inlined_call_operand.vmem [shape: f32[32,128], index: 1, kind: input, shape index: {}]
  %s2 = inlined_call_operand.vmem [shape: f32[32,128], index: 2, kind: input, shape index: {}]
  %s3 = inlined_call_operand.vmem [shape: f32[1,128], index: 3, kind: input, shape index: {}]
  %s4 = inlined_call_operand.vmem [shape: f32[32,128], index: 4, kind: input, shape index: {}]
  %s5 = inlined_call_operand.hbm [shape: f32[32,128], index: 5, kind: input, shape index: {}]
  %s6 = inlined_call_operand.vmem [shape: f32[1,128], index: 6, kind: input, shape index: {}]
  %s7 = inlined_call_operand.vmem [shape: f32[32,9], index: 7, kind: input, shape index: {}]
  %s8 = inlined_call_operand.hbm [shape: f32[1,9], index: 8, kind: input, shape index: {}]
  %s9 = inlined_call_operand.vmem [shape: f32[16,32], index: 9, kind: output, shape index: {0}]
  %s10 = inlined_call_operand.vmem [shape: f32[16,9], index: 10, kind: output, shape index: {1}]
  %s11 = inlined_call_operand.hbm [shape: f32[2,2,32], index: 11, kind: output, shape index: {2}]
  %s12 = inlined_call_operand.hbm [shape: f32[2,2,32], index: 12, kind: output, shape index: {3}]
  %13 = xla_tuple %s9, %s10, %s11, %s12
  %s14 = sld [smem:[#allocation0]]
  $region78: #{decoder_rnn_forward.1} parent=0
    _
  %s16 = ssub.s32 1, %s14
  %s17 = scalar_select 0, %s16, %s14
  $region1: #{decoder_rnn_forward.1} parent=0
    #allocation3 [shape = 'u8[16384]{0}', space=vmem, size = 0x4000, scoped, tag = 'input window, operand 5, single buffered']
    #allocation4 [shape = 's32[1]{0}', space=sflag, size = 0x4, scoped, tag = 'scoped memory for decoder_rnn_forward.1']
    #allocation5 [shape = 's32[1]{0}', space=sflag, size = 0x4, scoped, tag = 'scoped memory for decoder_rnn_forward.1']
    #allocation6 [shape = 'u8[512]{0}', space=vmem, size = 0x400, scoped, tag = 'input window, operand 8, single buffered']
    #allocation7 [shape = 's32[1]{0}', space=sflag, size = 0x4, scoped, tag = 'scoped memory for decoder_rnn_forward.1']
    #allocation8 [shape = 'u8[2048]{0}', space=vmem, size = 0x800, scoped, tag = 'output window, operand 2, single buffered']
    #allocation9 [shape = 'u8[2048]{0}', space=vmem, size = 0x800, scoped, tag = 'output window, operand 3, single buffered']
    #allocation10 [shape = 's32[1]{0}', space=sflag, size = 0x4, scoped, tag = 'scoped memory for decoder_rnn_forward.1']
    %18 = vsyncpa [#allocation4], 0
    %19 = vsyncpa [#allocation7], 0
    %20 = vsyncpa [#allocation5], 0
    %21 = vsyncpa [#allocation10], 0
    // Predicated region
    $region2: #{decoder_rnn_forward.1} parent=1 // pred_check
      _
    $region3: #{decoder_rnn_forward.1} parent=1 // pred_check_branch
      %23 = sbr.rel (0) target = $region5
    $region4: #{decoder_rnn_forward.1} parent=1 // pred_region
      _
    $region5: #{decoder_rnn_forward.1} parent=1 // pred_fallthru
      _
    // Predicated region
    $region6: #{decoder_rnn_forward.1} parent=1 // pred_check
      _
    $region7: #{decoder_rnn_forward.1} parent=1 // pred_check_branch
      %25 = sbr.rel (0) target = $region9
    $region8: #{decoder_rnn_forward.1} parent=1 // pred_region
      _
    $region9: #{decoder_rnn_forward.1} parent=1 // pred_fallthru
      _
    // Predicated region
    $region10: #{decoder_rnn_forward.1} parent=1 // pred_check
      _
    $region11: #{decoder_rnn_forward.1} parent=1 // pred_check_branch
      %27 = sbr.rel (0) target = $region13
    $region12: #{decoder_rnn_forward.1} parent=1 // pred_region
      _
    $region13: #{decoder_rnn_forward.1} parent=1 // pred_fallthru
      _
    // Predicated region
    $region14: #{decoder_rnn_forward.1} parent=1 // pred_check
      _
    $region15: #{decoder_rnn_forward.1} parent=1 // pred_check_branch
      %29 = sbr.rel (0) target = $region17
    $region16: #{decoder_rnn_forward.1} parent=1 // pred_region
      _
    $region17: #{decoder_rnn_forward.1} parent=1 // pred_fallthru
      _
    // Predicated region
    $region18: #{decoder_rnn_forward.1} parent=1 // pred_check
      _
    $region19: #{decoder_rnn_forward.1} parent=1 // pred_check_branch
      %31 = sbr.rel (0) target = $region21
    $region20: #{decoder_rnn_forward.1} parent=1 // pred_region
      _
    $region21: #{decoder_rnn_forward.1} parent=1 // pred_fallthru
      _
    // Predicated region
    $region22: #{decoder_rnn_forward.1} parent=1 // pred_check
      _
    $region23: #{decoder_rnn_forward.1} parent=1 // pred_check_branch
      %33 = sbr.rel (0) target = $region25
    $region24: #{decoder_rnn_forward.1} parent=1 // pred_region
      %s35 = ssub.s32 512, 512
      %36 = vsyncadd [#allocation4], %s35
      %s37 = sshll.u32 [#allocation3], 4
      %s38 = int_to_ptr.vmem [resolvable:$true] %s37
      %43 = dma.hbm_to_vmem [thread:$0]  %s5, 512, %s38, [#allocation4], 128, 128, 8
    $region25: #{decoder_rnn_forward.1} parent=1 // pred_fallthru
      _
    // Predicated region
    $region26: #{decoder_rnn_forward.1} parent=1 // pred_check
      _
    $region27: #{decoder_rnn_forward.1} parent=1 // pred_check_branch
      %45 = sbr.rel (0) target = $region29
    $region28: #{decoder_rnn_forward.1} parent=1 // pred_region
      _
    $region29: #{decoder_rnn_forward.1} parent=1 // pred_fallthru
      _
    // Predicated region
    $region30: #{decoder_rnn_forward.1} parent=1 // pred_check
      _
    $region31: #{decoder_rnn_forward.1} parent=1 // pred_check_branch
      %47 = sbr.rel (0) target = $region33
    $region32: #{decoder_rnn_forward.1} parent=1 // pred_region
      _
    $region33: #{decoder_rnn_forward.1} parent=1 // pred_fallthru
      _
    // Predicated region
    $region34: #{decoder_rnn_forward.1} parent=1 // pred_check
      _
    $region35: #{decoder_rnn_forward.1} parent=1 // pred_check_branch
      %49 = sbr.rel (0) target = $region37
    $region36: #{decoder_rnn_forward.1} parent=1 // pred_region
      %s51 = ssub.s32 16, 16
      %52 = vsyncadd [#allocation7], %s51
      %s54 = sshll.u32 [#allocation6], 4
      %s55 = int_to_ptr.vmem [resolvable:$true] %s54
      %57 = dma.hbm_to_vmem [thread:$0]  %s8, 16, %s55, [#allocation7]
    $region37: #{decoder_rnn_forward.1} parent=1 // pred_fallthru
      _
    // Predicated region
    $region38: #{decoder_rnn_forward.1} parent=1 // pred_check
      _
    $region39: #{decoder_rnn_forward.1} parent=1 // pred_check_branch
      %59 = sbr.rel (0) target = $region41
    $region40: #{decoder_rnn_forward.1} parent=1 // pred_region
      %60 = dma.done [#allocation4], 512
    $region41: #{decoder_rnn_forward.1} parent=1 // pred_fallthru
      _
    // Predicated region
    $region42: #{decoder_rnn_forward.1} parent=1 // pred_check
      _
    $region43: #{decoder_rnn_forward.1} parent=1 // pred_check_branch
      %62 = sbr.rel (0) target = $region45
    $region44: #{decoder_rnn_forward.1} parent=1 // pred_region
      %63 = dma.done [#allocation7], 16
    $region45: #{decoder_rnn_forward.1} parent=1 // pred_fallthru
      _
    %v64 = vld [vmem:[%s0] sm:$0xff]
    %v65 = vld [vmem:[%s0 + $0x8] sm:$0xff]
    %v66 = vmax.f32 %v64, 0.0
    %v67 = vmax.f32 %v65, 0.0
    %v68 = vld [vmem:[%s1] sm:$0xff]
    %v69 = vld [vmem:[%s1 + $0x8] sm:$0xff]
    %v70 = vld [vmem:[%s1 + $0x10] sm:$0xff]
    %v71 = vld [vmem:[%s1 + $0x18] sm:$0xff]
    %v72 = vld [vmem:[%s3] sm:$0x1]
    %v74 = vlaneseq
    %v75 = vshrl.u32 %v74, 7
    %v76 = vsub.s32 0, %v75
    %v77 = vrot.slane %v72, %v76
    %vm79 = vcmask 261120
    %v81 = vsel %vm79, %v66, 0
    %v84 = vsel %vm79, %v67, 0
    %86 = vmatprep.subr.mxu0 0.0
    %87 = vmatpush1.msra.mxu0 0.0
    %88 = vmatprep.subr.mxu0 0.0
    %89 = vmatpush1.msra.mxu0 0.0
    %90 = vmatprep.subr.mxu0 0.0
    %91 = vmatpush1.msra.mxu0 0.0
    %92 = vmatprep.subr.mxu0 0.0
    %93 = vmatpush1.msra.mxu0 0.0
    %94 = vmatprep.subr.mxu0 0.0
    %95 = vmatpush1.msra.mxu0 0.0
    %96 = vmatprep.subr.mxu0 0.0
    %97 = vmatpush1.msra.mxu0 0.0
    %98 = vmatprep.subr.mxu0 0.0
    %99 = vmatpush1.msra.mxu0 0.0
    %100 = vmatprep.subr.mxu0 0.0
    %101 = vmatpush1.msra.mxu0 0.0
    %102 = vmatprep.subr.mxu0 0.0
    %103 = vmatpush1.msra.mxu0 0.0
    %104 = vmatprep.subr.mxu0 0.0
    %105 = vmatpush1.msra.mxu0 0.0
    %106 = vmatprep.subr.mxu0 0.0
    %107 = vmatpush1.msra.mxu0 0.0
    %108 = vmatprep.subr.mxu0 0.0
    %109 = vmatpush1.msra.mxu0 0.0
    %110 = vmatprep.subr.mxu0 0.0
    %111 = vmatpush1.msra.mxu0 %v71
    %112 = vmatprep.subr.mxu0 0.0
    %113 = vmatpush1.msra.mxu0 %v70
    %114 = vmatprep.subr.mxu0 0.0
    %115 = vmatpush1.msra.mxu0 %v69
    %116 = vmatprep.subr.mxu0 0.0
    %117 = vmatpush1.msra.mxu0 %v68
    %118 = vmatprep.subr.mxu0 0.0
    %119 = vmatpush2.msra.mxu0 0.0
    %120 = vmatprep.subr.mxu0 0.0
    %121 = vmatpush2.msra.mxu0 0.0
    %122 = vmatprep.subr.mxu0 0.0
    %123 = vmatpush2.msra.mxu0 0.0
    %124 = vmatprep.subr.mxu0 0.0
    %125 = vmatpush2.msra.mxu0 0.0
    %126 = vmatprep.subr.mxu0 0.0
    %127 = vmatpush2.msra.mxu0 0.0
    %128 = vmatprep.subr.mxu0 0.0
    %129 = vmatpush2.msra.mxu0 0.0
    %130 = vmatprep.subr.mxu0 0.0
    %131 = vmatpush2.msra.mxu0 0.0
    %132 = vmatprep.subr.mxu0 0.0
    %133 = vmatpush2.msra.mxu0 0.0
    %134 = vmatprep.subr.mxu0 0.0
    %135 = vmatpush2.msra.mxu0 0.0
    %136 = vmatprep.subr.mxu0 0.0
    %137 = vmatpush2.msra.mxu0 0.0
    %138 = vmatprep.subr.mxu0 0.0
    %139 = vmatpush2.msra.mxu0 0.0
    %140 = vmatprep.subr.mxu0 0.0
    %141 = vmatpush2.msra.mxu0 0.0
    %142 = vmatprep.subr.mxu0 0.0
    %143 = vmatpush2.msra.mxu0 0.0
    %144 = vmatprep.subr.mxu0 0.0
    %145 = vmatpush2.msra.mxu0 0.0
    %146 = vmatprep.subr.mxu0 0.0
    %147 = vmatpush2.msra.mxu0 0.0
    %148 = vmatprep.subr.mxu0 0.0
    %149 = vmatpush2.msra.mxu0 0.0
    %150 = vmatprep.mubr.f32.mxu0 0.0
    %151 = vmatmul.mubr.f32.gmra.mxu0 %v81
    %v152 = vpop.f32.mrf.mxu0
    %v153 = vadd.f32 %v77, %v152
    %v154 = vpop.f32.mrf.mxu0
    %155 = vmatprep.mubr.f32.mxu0 0.0
    %156 = vmatmul.mubr.f32.gmra.mxu0 %v84
    %v157 = vpop.f32.mrf.mxu0
    %v158 = vadd.f32 %v77, %v157
    %v159 = vpop.f32.mrf.mxu0
    %160 = vdwg.mxu0
    %v161 = vld [vmem:[%s2] sm:$0xff]
    %v162 = vld [vmem:[%s2 + $0x8] sm:$0xff]
    %v163 = vld [vmem:[%s2 + $0x10] sm:$0xff]
    %v164 = vld [vmem:[%s2 + $0x18] sm:$0xff]
    %v166 = vsel %vm79, 0.0, 0
    %168 = vmatprep.subr.mxu0 0.0
    %169 = vmatpush1.msra.mxu0 0.0
    %170 = vmatprep.subr.mxu0 0.0
    %171 = vmatpush1.msra.mxu0 0.0
    %172 = vmatprep.subr.mxu0 0.0
    %173 = vmatpush1.msra.mxu0 0.0
    %174 = vmatprep.subr.mxu0 0.0
    %175 = vmatpush1.msra.mxu0 0.0
    %176 = vmatprep.subr.mxu0 0.0
    %177 = vmatpush1.msra.mxu0 0.0
    %178 = vmatprep.subr.mxu0 0.0
    %179 = vmatpush1.msra.mxu0 0.0
    %180 = vmatprep.subr.mxu0 0.0
    %181 = vmatpush1.msra.mxu0 0.0
    %182 = vmatprep.subr.mxu0 0.0
    %183 = vmatpush1.msra.mxu0 0.0
    %184 = vmatprep.subr.mxu0 0.0
    %185 = vmatpush1.msra.mxu0 0.0
    %186 = vmatprep.subr.mxu0 0.0
    %187 = vmatpush1.msra.mxu0 0.0
    %188 = vmatprep.subr.mxu0 0.0
    %189 = vmatpush1.msra.mxu0 0.0
    %190 = vmatprep.subr.mxu0 0.0
    %191 = vmatpush1.msra.mxu0 0.0
    %192 = vmatprep.subr.mxu0 0.0
    %193 = vmatpush1.msra.mxu0 %v164
    %194 = vmatprep.subr.mxu0 0.0
    %195 = vmatpush1.msra.mxu0 %v163
    %196 = vmatprep.subr.mxu0 0.0
    %197 = vmatpush1.msra.mxu0 %v162
    %198 = vmatprep.subr.mxu0 0.0
    %199 = vmatpush1.msra.mxu0 %v161
    %200 = vmatprep.subr.mxu0 0.0
    %201 = vmatpush2.msra.mxu0 0.0
    %202 = vmatprep.subr.mxu0 0.0
    %203 = vmatpush2.msra.mxu0 0.0
    %204 = vmatprep.subr.mxu0 0.0
    %205 = vmatpush2.msra.mxu0 0.0
    %206 = vmatprep.subr.mxu0 0.0
    %207 = vmatpush2.msra.mxu0 0.0
    %208 = vmatprep.subr.mxu0 0.0
    %209 = vmatpush2.msra.mxu0 0.0
    %210 = vmatprep.subr.mxu0 0.0
    %211 = vmatpush2.msra.mxu0 0.0
    %212 = vmatprep.subr.mxu0 0.0
    %213 = vmatpush2.msra.mxu0 0.0
    %214 = vmatprep.subr.mxu0 0.0
    %215 = vmatpush2.msra.mxu0 0.0
    %216 = vmatprep.subr.mxu0 0.0
    %217 = vmatpush2.msra.mxu0 0.0
    %218 = vmatprep.subr.mxu0 0.0
    %219 = vmatpush2.msra.mxu0 0.0
    %220 = vmatprep.subr.mxu0 0.0
    %221 = vmatpush2.msra.mxu0 0.0
    %222 = vmatprep.subr.mxu0 0.0
    %223 = vmatpush2.msra.mxu0 0.0
    %224 = vmatprep.subr.mxu0 0.0
    %225 = vmatpush2.msra.mxu0 0.0
    %226 = vmatprep.subr.mxu0 0.0
    %227 = vmatpush2.msra.mxu0 0.0
    %228 = vmatprep.subr.mxu0 0.0
    %229 = vmatpush2.msra.mxu0 0.0
    %230 = vmatprep.subr.mxu0 0.0
    %231 = vmatpush2.msra.mxu0 0.0
    %232 = vmatprep.mubr.f32.mxu0 0.0
    %233 = vmatmul.mubr.f32.gmra.mxu0 %v166
    %v234 = vpop.f32.mrf.mxu0
    %v235 = vadd.f32 0.0, %v234
    %v236 = vpop.f32.mrf.mxu0
    %237 = vdwg.mxu0
    %v238 = vadd.f32 %v153, %v235
    %v239 = vmul.f32 %v238, 0.5
    %v240 = vtanh.pop %v239
    %v241 = vmul.f32 %v240, 0.5
    %v242 = vadd.f32 %v241, 0.5
    %v243 = vtanh.pop %v238
    %v244 = vmul.f32 %v242, 0.0
    %246 = vrot.lane.b32.xlu0 %v243, 64
    %v247 = vpop.permute.xlu0 %246
    %v249 = vmul.f32 %v242, %v247
    %251 = vrot.lane.b32.xlu0 %v249, 32
    %v252 = vpop.permute.xlu0 %251
    %v254 = vadd.f32 %v244, %v252
    %v255 = vtanh.pop %v254
    %257 = vrot.lane.b32.xlu0 %v255, 64
    %v258 = vpop.permute.xlu0 %257
    %v260 = vmul.f32 %v242, %v258
    %262 = vrot.lane.b32.xlu0 %v260, 32
    %v263 = vpop.permute.xlu0 %262
    %vm265 = vcmask 254976
    %266 = vst.msk [vmem:[#allocation2] sm:$0x3] %vm265, %v263
    %v267 = vsel %vm79, %v263, 0
    %269 = vmatprep.subr.mxu0 0.0
    %270 = vmatpush1.msra.mxu0 0.0
    %271 = vmatprep.subr.mxu0 0.0
    %272 = vmatpush1.msra.mxu0 0.0
    %273 = vmatprep.subr.mxu0 0.0
    %274 = vmatpush1.msra.mxu0 0.0
    %275 = vmatprep.subr.mxu0 0.0
    %276 = vmatpush1.msra.mxu0 0.0
    %277 = vmatprep.subr.mxu0 0.0
    %278 = vmatpush1.msra.mxu0 0.0
    %279 = vmatprep.subr.mxu0 0.0
    %280 = vmatpush1.msra.mxu0 0.0
    %281 = vmatprep.subr.mxu0 0.0
    %282 = vmatpush1.msra.mxu0 0.0
    %283 = vmatprep.subr.mxu0 0.0
    %284 = vmatpush1.msra.mxu0 0.0
    %285 = vmatprep.subr.mxu0 0.0
    %286 = vmatpush1.msra.mxu0 0.0
    %287 = vmatprep.subr.mxu0 0.0
    %288 = vmatpush1.msra.mxu0 0.0
    %289 = vmatprep.subr.mxu0 0.0
    %290 = vmatpush1.msra.mxu0 0.0
    %291 = vmatprep.subr.mxu0 0.0
    %292 = vmatpush1.msra.mxu0 0.0
    %293 = vmatprep.subr.mxu0 0.0
    %294 = vmatpush1.msra.mxu0 %v164
    %295 = vmatprep.subr.mxu0 0.0
    %296 = vmatpush1.msra.mxu0 %v163
    %297 = vmatprep.subr.mxu0 0.0
    %298 = vmatpush1.msra.mxu0 %v162
    %299 = vmatprep.subr.mxu0 0.0
    %300 = vmatpush1.msra.mxu0 %v161
    %301 = vmatprep.subr.mxu0 0.0
    %302 = vmatpush2.msra.mxu0 0.0
    %303 = vmatprep.subr.mxu0 0.0
    %304 = vmatpush2.msra.mxu0 0.0
    %305 = vmatprep.subr.mxu0 0.0
    %306 = vmatpush2.msra.mxu0 0.0
    %307 = vmatprep.subr.mxu0 0.0
    %308 = vmatpush2.msra.mxu0 0.0
    %309 = vmatprep.subr.mxu0 0.0
    %310 = vmatpush2.msra.mxu0 0.0
    %311 = vmatprep.subr.mxu0 0.0
    %312 = vmatpush2.msra.mxu0 0.0
    %313 = vmatprep.subr.mxu0 0.0
    %314 = vmatpush2.msra.mxu0 0.0
    %315 = vmatprep.subr.mxu0 0.0
    %316 = vmatpush2.msra.mxu0 0.0
    %317 = vmatprep.subr.mxu0 0.0
    %318 = vmatpush2.msra.mxu0 0.0
    %319 = vmatprep.subr.mxu0 0.0
    %320 = vmatpush2.msra.mxu0 0.0
    %321 = vmatprep.subr.mxu0 0.0
    %322 = vmatpush2.msra.mxu0 0.0
    %323 = vmatprep.subr.mxu0 0.0
    %324 = vmatpush2.msra.mxu0 0.0
    %325 = vmatprep.subr.mxu0 0.0
    %326 = vmatpush2.msra.mxu0 0.0
    %327 = vmatprep.subr.mxu0 0.0
    %328 = vmatpush2.msra.mxu0 0.0
    %329 = vmatprep.subr.mxu0 0.0
    %330 = vmatpush2.msra.mxu0 0.0
    %331 = vmatprep.subr.mxu0 0.0
    %332 = vmatpush2.msra.mxu0 0.0
    %333 = vmatprep.mubr.f32.mxu0 0.0
    %334 = vmatmul.mubr.f32.gmra.mxu0 %v267
    %v335 = vpop.f32.mrf.mxu0
    %v336 = vadd.f32 0.0, %v335
    %v337 = vpop.f32.mrf.mxu0
    %338 = vdwg.mxu0
    %v340 = vrot.slane %v336, 6
    %v342 = vadd.f32 %v153, %v340
    %v343 = vmul.f32 %v342, 0.5
    %v344 = vtanh.pop %v343
    %v345 = vmul.f32 %v344, 0.5
    %v346 = vadd.f32 %v345, 0.5
    %v347 = vtanh.pop %v342
    %v349 = vrot.slane %v254, 6
    %v351 = vmul.f32 %v346, %v349
    %353 = vrot.lane.b32.xlu0 %v347, 64
    %v354 = vpop.permute.xlu0 %353
    %v356 = vmul.f32 %v346, %v354
    %358 = vrot.lane.b32.xlu0 %v356, 32
    %v359 = vpop.permute.xlu0 %358
    %v361 = vadd.f32 %v351, %v359
    %v362 = vtanh.pop %v361
    %364 = vrot.lane.b32.xlu0 %v362, 64
    %v365 = vpop.permute.xlu0 %364
    %v367 = vmul.f32 %v346, %v365
    %369 = vrot.lane.b32.xlu0 %v367, 32
    %v370 = vpop.permute.xlu0 %369
    %vm372 = vcmask 257026
    %373 = vst.msk [vmem:[#allocation2] sm:$0xc] %vm372, %v370
    %v374 = vrot.slane %v367, 2
    %375 = vrot.lane.b32.xlu0 %v374, 32
    %v376 = vpop.permute.xlu0 %375
    %v377 = vsel %vm79, %v376, 0
    %379 = vmatprep.subr.mxu0 0.0
    %380 = vmatpush1.msra.mxu0 0.0
    %381 = vmatprep.subr.mxu0 0.0
    %382 = vmatpush1.msra.mxu0 0.0
    %383 = vmatprep.subr.mxu0 0.0
    %384 = vmatpush1.msra.mxu0 0.0
    %385 = vmatprep.subr.mxu0 0.0
    %386 = vmatpush1.msra.mxu0 0.0
    %387 = vmatprep.subr.mxu0 0.0
    %388 = vmatpush1.msra.mxu0 0.0
    %389 = vmatprep.subr.mxu0 0.0
    %390 = vmatpush1.msra.mxu0 0.0
    %391 = vmatprep.subr.mxu0 0.0
    %392 = vmatpush1.msra.mxu0 0.0
    %393 = vmatprep.subr.mxu0 0.0
    %394 = vmatpush1.msra.mxu0 0.0
    %395 = vmatprep.subr.mxu0 0.0
    %396 = vmatpush1.msra.mxu0 0.0
    %397 = vmatprep.subr.mxu0 0.0
    %398 = vmatpush1.msra.mxu0 0.0
    %399 = vmatprep.subr.mxu0 0.0
    %400 = vmatpush1.msra.mxu0 0.0
    %401 = vmatprep.subr.mxu0 0.0
    %402 = vmatpush1.msra.mxu0 0.0
    %403 = vmatprep.subr.mxu0 0.0
    %404 = vmatpush1.msra.mxu0 %v164
    %405 = vmatprep.subr.mxu0 0.0
    %406 = vmatpush1.msra.mxu0 %v163
    %407 = vmatprep.subr.mxu0 0.0
    %408 = vmatpush1.msra.mxu0 %v162
    %409 = vmatprep.subr.mxu0 0.0
    %410 = vmatpush1.msra.mxu0 %v161
    %411 = vmatprep.subr.mxu0 0.0
    %412 = vmatpush2.msra.mxu0 0.0
    %413 = vmatprep.subr.mxu0 0.0
    %414 = vmatpush2.msra.mxu0 0.0
    %415 = vmatprep.subr.mxu0 0.0
    %416 = vmatpush2.msra.mxu0 0.0
    %417 = vmatprep.subr.mxu0 0.0
    %418 = vmatpush2.msra.mxu0 0.0
    %419 = vmatprep.subr.mxu0 0.0
    %420 = vmatpush2.msra.mxu0 0.0
    %421 = vmatprep.subr.mxu0 0.0
    %422 = vmatpush2.msra.mxu0 0.0
    %423 = vmatprep.subr.mxu0 0.0
    %424 = vmatpush2.msra.mxu0 0.0
    %425 = vmatprep.subr.mxu0 0.0
    %426 = vmatpush2.msra.mxu0 0.0
    %427 = vmatprep.subr.mxu0 0.0
    %428 = vmatpush2.msra.mxu0 0.0
    %429 = vmatprep.subr.mxu0 0.0
    %430 = vmatpush2.msra.mxu0 0.0
    %431 = vmatprep.subr.mxu0 0.0
    %432 = vmatpush2.msra.mxu0 0.0
    %433 = vmatprep.subr.mxu0 0.0
    %434 = vmatpush2.msra.mxu0 0.0
    %435 = vmatprep.subr.mxu0 0.0
    %436 = vmatpush2.msra.mxu0 0.0
    %437 = vmatprep.subr.mxu0 0.0
    %438 = vmatpush2.msra.mxu0 0.0
    %439 = vmatprep.subr.mxu0 0.0
    %440 = vmatpush2.msra.mxu0 0.0
    %441 = vmatprep.subr.mxu0 0.0
    %442 = vmatpush2.msra.mxu0 0.0
    %443 = vmatprep.mubr.f32.mxu0 0.0
    %444 = vmatmul.mubr.f32.gmra.mxu0 %v377
    %v445 = vpop.f32.mrf.mxu0
    %v446 = vadd.f32 0.0, %v445
    %v447 = vpop.f32.mrf.mxu0
    %448 = vdwg.mxu0
    %v450 = vrot.slane %v446, 4
    %v452 = vadd.f32 %v153, %v450
    %v453 = vmul.f32 %v452, 0.5
    %v454 = vtanh.pop %v453
    %v455 = vmul.f32 %v454, 0.5
    %v456 = vadd.f32 %v455, 0.5
    %v457 = vtanh.pop %v452
    %v459 = vrot.slane %v361, 6
    %v461 = vmul.f32 %v456, %v459
    %463 = vrot.lane.b32.xlu0 %v457, 64
    %v464 = vpop.permute.xlu0 %463
    %v466 = vmul.f32 %v456, %v464
    %468 = vrot.lane.b32.xlu0 %v466, 32
    %v469 = vpop.permute.xlu0 %468
    %v471 = vadd.f32 %v461, %v469
    %v472 = vtanh.pop %v471
    %474 = vrot.lane.b32.xlu0 %v472, 64
    %v475 = vpop.permute.xlu0 %474
    %v477 = vmul.f32 %v456, %v475
    %479 = vrot.lane.b32.xlu0 %v477, 32
    %v480 = vpop.permute.xlu0 %479
    %vm482 = vcmask 259076
    %483 = vst.msk [vmem:[#allocation2] sm:$0x30] %vm482, %v480
    %v484 = vrot.slane %v477, 4
    %485 = vrot.lane.b32.xlu0 %v484, 32
    %v486 = vpop.permute.xlu0 %485
    %v487 = vsel %vm79, %v486, 0
    %489 = vmatprep.subr.mxu0 0.0
    %490 = vmatpush1.msra.mxu0 0.0
    %491 = vmatprep.subr.mxu0 0.0
    %492 = vmatpush1.msra.mxu0 0.0
    %493 = vmatprep.subr.mxu0 0.0
    %494 = vmatpush1.msra.mxu0 0.0
    %495 = vmatprep.subr.mxu0 0.0
    %496 = vmatpush1.msra.mxu0 0.0
    %497 = vmatprep.subr.mxu0 0.0
    %498 = vmatpush1.msra.mxu0 0.0
    %499 = vmatprep.subr.mxu0 0.0
    %500 = vmatpush1.msra.mxu0 0.0
    %501 = vmatprep.subr.mxu0 0.0
    %502 = vmatpush1.msra.mxu0 0.0
    %503 = vmatprep.subr.mxu0 0.0
    %504 = vmatpush1.msra.mxu0 0.0
    %505 = vmatprep.subr.mxu0 0.0
    %506 = vmatpush1.msra.mxu0 0.0
    %507 = vmatprep.subr.mxu0 0.0
    %508 = vmatpush1.msra.mxu0 0.0
    %509 = vmatprep.subr.mxu0 0.0
    %510 = vmatpush1.msra.mxu0 0.0
    %511 = vmatprep.subr.mxu0 0.0
    %512 = vmatpush1.msra.mxu0 0.0
    %513 = vmatprep.subr.mxu0 0.0
    %514 = vmatpush1.msra.mxu0 %v164
    %515 = vmatprep.subr.mxu0 0.0
    %516 = vmatpush1.msra.mxu0 %v163
    %517 = vmatprep.subr.mxu0 0.0
    %518 = vmatpush1.msra.mxu0 %v162
    %519 = vmatprep.subr.mxu0 0.0
    %520 = vmatpush1.msra.mxu0 %v161
    %521 = vmatprep.subr.mxu0 0.0
    %522 = vmatpush2.msra.mxu0 0.0
    %523 = vmatprep.subr.mxu0 0.0
    %524 = vmatpush2.msra.mxu0 0.0
    %525 = vmatprep.subr.mxu0 0.0
    %526 = vmatpush2.msra.mxu0 0.0
    %527 = vmatprep.subr.mxu0 0.0
    %528 = vmatpush2.msra.mxu0 0.0
    %529 = vmatprep.subr.mxu0 0.0
    %530 = vmatpush2.msra.mxu0 0.0
    %531 = vmatprep.subr.mxu0 0.0
    %532 = vmatpush2.msra.mxu0 0.0
    %533 = vmatprep.subr.mxu0 0.0
    %534 = vmatpush2.msra.mxu0 0.0
    %535 = vmatprep.subr.mxu0 0.0
    %536 = vmatpush2.msra.mxu0 0.0
    %537 = vmatprep.subr.mxu0 0.0
    %538 = vmatpush2.msra.mxu0 0.0
    %539 = vmatprep.subr.mxu0 0.0
    %540 = vmatpush2.msra.mxu0 0.0
    %541 = vmatprep.subr.mxu0 0.0
    %542 = vmatpush2.msra.mxu0 0.0
    %543 = vmatprep.subr.mxu0 0.0
    %544 = vmatpush2.msra.mxu0 0.0
    %545 = vmatprep.subr.mxu0 0.0
    %546 = vmatpush2.msra.mxu0 0.0
    %547 = vmatprep.subr.mxu0 0.0
    %548 = vmatpush2.msra.mxu0 0.0
    %549 = vmatprep.subr.mxu0 0.0
    %550 = vmatpush2.msra.mxu0 0.0
    %551 = vmatprep.subr.mxu0 0.0
    %552 = vmatpush2.msra.mxu0 0.0
    %553 = vmatprep.mubr.f32.mxu0 0.0
    %554 = vmatmul.mubr.f32.gmra.mxu0 %v487
    %v555 = vpop.f32.mrf.mxu0
    %v556 = vadd.f32 0.0, %v555
    %v557 = vpop.f32.mrf.mxu0
    %558 = vdwg.mxu0
    %v560 = vrot.slane %v556, 2
    %v562 = vadd.f32 %v153, %v560
    %v563 = vmul.f32 %v562, 0.5
    %v564 = vtanh.pop %v563
    %v565 = vmul.f32 %v564, 0.5
    %v566 = vadd.f32 %v565, 0.5
    %v567 = vtanh.pop %v562
    %v569 = vrot.slane %v471, 6
    %v571 = vmul.f32 %v566, %v569
    %573 = vrot.lane.b32.xlu0 %v567, 64
    %v574 = vpop.permute.xlu0 %573
    %v576 = vmul.f32 %v566, %v574
    %578 = vrot.lane.b32.xlu0 %v576, 32
    %v579 = vpop.permute.xlu0 %578
    %v581 = vadd.f32 %v571, %v579
    %v582 = vtanh.pop %v581
    %584 = vrot.lane.b32.xlu0 %v582, 64
    %v585 = vpop.permute.xlu0 %584
    %v587 = vmul.f32 %v566, %v585
    %589 = vrot.lane.b32.xlu0 %v587, 32
    %v590 = vpop.permute.xlu0 %589
    %vm592 = vcmask 261126
    %593 = vst.msk [vmem:[#allocation2] sm:$0xc0] %vm592, %v590
    %v594 = vrot.slane %v587, 6
    %595 = vrot.lane.b32.xlu0 %v594, 32
    %v596 = vpop.permute.xlu0 %595
    %v597 = vsel %vm79, %v596, 0
    %599 = vmatprep.subr.mxu0 0.0
    %600 = vmatpush1.msra.mxu0 0.0
    %601 = vmatprep.subr.mxu0 0.0
    %602 = vmatpush1.msra.mxu0 0.0
    %603 = vmatprep.subr.mxu0 0.0
    %604 = vmatpush1.msra.mxu0 0.0
    %605 = vmatprep.subr.mxu0 0.0
    %606 = vmatpush1.msra.mxu0 0.0
    %607 = vmatprep.subr.mxu0 0.0
    %608 = vmatpush1.msra.mxu0 0.0
    %609 = vmatprep.subr.mxu0 0.0
    %610 = vmatpush1.msra.mxu0 0.0
    %611 = vmatprep.subr.mxu0 0.0
    %612 = vmatpush1.msra.mxu0 0.0
    %613 = vmatprep.subr.mxu0 0.0
    %614 = vmatpush1.msra.mxu0 0.0
    %615 = vmatprep.subr.mxu0 0.0
    %616 = vmatpush1.msra.mxu0 0.0
    %617 = vmatprep.subr.mxu0 0.0
    %618 = vmatpush1.msra.mxu0 0.0
    %619 = vmatprep.subr.mxu0 0.0
    %620 = vmatpush1.msra.mxu0 0.0
    %621 = vmatprep.subr.mxu0 0.0
    %622 = vmatpush1.msra.mxu0 0.0
    %623 = vmatprep.subr.mxu0 0.0
    %624 = vmatpush1.msra.mxu0 %v164
    %625 = vmatprep.subr.mxu0 0.0
    %626 = vmatpush1.msra.mxu0 %v163
    %627 = vmatprep.subr.mxu0 0.0
    %628 = vmatpush1.msra.mxu0 %v162
    %629 = vmatprep.subr.mxu0 0.0
    %630 = vmatpush1.msra.mxu0 %v161
    %631 = vmatprep.subr.mxu0 0.0
    %632 = vmatpush2.msra.mxu0 0.0
    %633 = vmatprep.subr.mxu0 0.0
    %634 = vmatpush2.msra.mxu0 0.0
    %635 = vmatprep.subr.mxu0 0.0
    %636 = vmatpush2.msra.mxu0 0.0
    %637 = vmatprep.subr.mxu0 0.0
    %638 = vmatpush2.msra.mxu0 0.0
    %639 = vmatprep.subr.mxu0 0.0
    %640 = vmatpush2.msra.mxu0 0.0
    %641 = vmatprep.subr.mxu0 0.0
    %642 = vmatpush2.msra.mxu0 0.0
    %643 = vmatprep.subr.mxu0 0.0
    %644 = vmatpush2.msra.mxu0 0.0
    %645 = vmatprep.subr.mxu0 0.0
    %646 = vmatpush2.msra.mxu0 0.0
    %647 = vmatprep.subr.mxu0 0.0
    %648 = vmatpush2.msra.mxu0 0.0
    %649 = vmatprep.subr.mxu0 0.0
    %650 = vmatpush2.msra.mxu0 0.0
    %651 = vmatprep.subr.mxu0 0.0
    %652 = vmatpush2.msra.mxu0 0.0
    %653 = vmatprep.subr.mxu0 0.0
    %654 = vmatpush2.msra.mxu0 0.0
    %655 = vmatprep.subr.mxu0 0.0
    %656 = vmatpush2.msra.mxu0 0.0
    %657 = vmatprep.subr.mxu0 0.0
    %658 = vmatpush2.msra.mxu0 0.0
    %659 = vmatprep.subr.mxu0 0.0
    %660 = vmatpush2.msra.mxu0 0.0
    %661 = vmatprep.subr.mxu0 0.0
    %662 = vmatpush2.msra.mxu0 0.0
    %663 = vmatprep.mubr.f32.mxu0 0.0
    %664 = vmatmul.mubr.f32.gmra.mxu0 %v597
    %v665 = vpop.f32.mrf.mxu0
    %v666 = vadd.f32 0.0, %v665
    %v667 = vpop.f32.mrf.mxu0
    %668 = vdwg.mxu0
    %v669 = vadd.f32 %v158, %v666
    %v670 = vmul.f32 %v669, 0.5
    %v671 = vtanh.pop %v670
    %v672 = vmul.f32 %v671, 0.5
    %v673 = vadd.f32 %v672, 0.5
    %v674 = vtanh.pop %v669
    %v676 = vrot.slane %v581, 6
    %v678 = vmul.f32 %v673, %v676
    %680 = vrot.lane.b32.xlu0 %v674, 64
    %v681 = vpop.permute.xlu0 %680
    %v683 = vmul.f32 %v673, %v681
    %685 = vrot.lane.b32.xlu0 %v683, 32
    %v686 = vpop.permute.xlu0 %685
    %v688 = vadd.f32 %v678, %v686
    %v689 = vtanh.pop %v688
    %691 = vrot.lane.b32.xlu0 %v689, 64
    %v692 = vpop.permute.xlu0 %691
    %v694 = vmul.f32 %v673, %v692
    %696 = vrot.lane.b32.xlu0 %v694, 32
    %v697 = vpop.permute.xlu0 %696
    %699 = vst.msk [vmem:[#allocation2 + $0x8] sm:$0x3] %vm265, %v697
    %v700 = vsel %vm79, %v697, 0
    %702 = vmatprep.subr.mxu0 0.0
    %703 = vmatpush1.msra.mxu0 0.0
    %704 = vmatprep.subr.mxu0 0.0
    %705 = vmatpush1.msra.mxu0 0.0
    %706 = vmatprep.subr.mxu0 0.0
    %707 = vmatpush1.msra.mxu0 0.0
    %708 = vmatprep.subr.mxu0 0.0
    %709 = vmatpush1.msra.mxu0 0.0
    %710 = vmatprep.subr.mxu0 0.0
    %711 = vmatpush1.msra.mxu0 0.0
    %712 = vmatprep.subr.mxu0 0.0
    %713 = vmatpush1.msra.mxu0 0.0
    %714 = vmatprep.subr.mxu0 0.0
    %715 = vmatpush1.msra.mxu0 0.0
    %716 = vmatprep.subr.mxu0 0.0
    %717 = vmatpush1.msra.mxu0 0.0
    %718 = vmatprep.subr.mxu0 0.0
    %719 = vmatpush1.msra.mxu0 0.0
    %720 = vmatprep.subr.mxu0 0.0
    %721 = vmatpush1.msra.mxu0 0.0
    %722 = vmatprep.subr.mxu0 0.0
    %723 = vmatpush1.msra.mxu0 0.0
    %724 = vmatprep.subr.mxu0 0.0
    %725 = vmatpush1.msra.mxu0 0.0
    %726 = vmatprep.subr.mxu0 0.0
    %727 = vmatpush1.msra.mxu0 %v164
    %728 = vmatprep.subr.mxu0 0.0
    %729 = vmatpush1.msra.mxu0 %v163
    %730 = vmatprep.subr.mxu0 0.0
    %731 = vmatpush1.msra.mxu0 %v162
    %732 = vmatprep.subr.mxu0 0.0
    %733 = vmatpush1.msra.mxu0 %v161
    %734 = vmatprep.subr.mxu0 0.0
    %735 = vmatpush2.msra.mxu0 0.0
    %736 = vmatprep.subr.mxu0 0.0
    %737 = vmatpush2.msra.mxu0 0.0
    %738 = vmatprep.subr.mxu0 0.0
    %739 = vmatpush2.msra.mxu0 0.0
    %740 = vmatprep.subr.mxu0 0.0
    %741 = vmatpush2.msra.mxu0 0.0
    %742 = vmatprep.subr.mxu0 0.0
    %743 = vmatpush2.msra.mxu0 0.0
    %744 = vmatprep.subr.mxu0 0.0
    %745 = vmatpush2.msra.mxu0 0.0
    %746 = vmatprep.subr.mxu0 0.0
    %747 = vmatpush2.msra.mxu0 0.0
    %748 = vmatprep.subr.mxu0 0.0
    %749 = vmatpush2.msra.mxu0 0.0
    %750 = vmatprep.subr.mxu0 0.0
    %751 = vmatpush2.msra.mxu0 0.0
    %752 = vmatprep.subr.mxu0 0.0
    %753 = vmatpush2.msra.mxu0 0.0
    %754 = vmatprep.subr.mxu0 0.0
    %755 = vmatpush2.msra.mxu0 0.0
    %756 = vmatprep.subr.mxu0 0.0
    %757 = vmatpush2.msra.mxu0 0.0
    %758 = vmatprep.subr.mxu0 0.0
    %759 = vmatpush2.msra.mxu0 0.0
    %760 = vmatprep.subr.mxu0 0.0
    %761 = vmatpush2.msra.mxu0 0.0
    %762 = vmatprep.subr.mxu0 0.0
    %763 = vmatpush2.msra.mxu0 0.0
    %764 = vmatprep.subr.mxu0 0.0
    %765 = vmatpush2.msra.mxu0 0.0
    %766 = vmatprep.mubr.f32.mxu0 0.0
    %767 = vmatmul.mubr.f32.gmra.mxu0 %v700
    %v768 = vpop.f32.mrf.mxu0
    %v769 = vadd.f32 0.0, %v768
    %v770 = vpop.f32.mrf.mxu0
    %771 = vdwg.mxu0
    %v773 = vrot.slane %v769, 6
    %v775 = vadd.f32 %v158, %v773
    %v776 = vmul.f32 %v775, 0.5
    %v777 = vtanh.pop %v776
    %v778 = vmul.f32 %v777, 0.5
    %v779 = vadd.f32 %v778, 0.5
    %v780 = vtanh.pop %v775
    %v782 = vrot.slane %v688, 6
    %v784 = vmul.f32 %v779, %v782
    %786 = vrot.lane.b32.xlu0 %v780, 64
    %v787 = vpop.permute.xlu0 %786
    %v789 = vmul.f32 %v779, %v787
    %791 = vrot.lane.b32.xlu0 %v789, 32
    %v792 = vpop.permute.xlu0 %791
    %v794 = vadd.f32 %v784, %v792
    %v795 = vtanh.pop %v794
    %797 = vrot.lane.b32.xlu0 %v795, 64
    %v798 = vpop.permute.xlu0 %797
    %v800 = vmul.f32 %v779, %v798
    %802 = vrot.lane.b32.xlu0 %v800, 32
    %v803 = vpop.permute.xlu0 %802
    %805 = vst.msk [vmem:[#allocation2 + $0x8] sm:$0xc] %vm372, %v803
    %v806 = vrot.slane %v800, 2
    %807 = vrot.lane.b32.xlu0 %v806, 32
    %v808 = vpop.permute.xlu0 %807
    %v809 = vsel %vm79, %v808, 0
    %811 = vmatprep.subr.mxu0 0.0
    %812 = vmatpush1.msra.mxu0 0.0
    %813 = vmatprep.subr.mxu0 0.0
    %814 = vmatpush1.msra.mxu0 0.0
    %815 = vmatprep.subr.mxu0 0.0
    %816 = vmatpush1.msra.mxu0 0.0
    %817 = vmatprep.subr.mxu0 0.0
    %818 = vmatpush1.msra.mxu0 0.0
    %819 = vmatprep.subr.mxu0 0.0
    %820 = vmatpush1.msra.mxu0 0.0
    %821 = vmatprep.subr.mxu0 0.0
    %822 = vmatpush1.msra.mxu0 0.0
    %823 = vmatprep.subr.mxu0 0.0
    %824 = vmatpush1.msra.mxu0 0.0
    %825 = vmatprep.subr.mxu0 0.0
    %826 = vmatpush1.msra.mxu0 0.0
    %827 = vmatprep.subr.mxu0 0.0
    %828 = vmatpush1.msra.mxu0 0.0
    %829 = vmatprep.subr.mxu0 0.0
    %830 = vmatpush1.msra.mxu0 0.0
    %831 = vmatprep.subr.mxu0 0.0
    %832 = vmatpush1.msra.mxu0 0.0
    %833 = vmatprep.subr.mxu0 0.0
    %834 = vmatpush1.msra.mxu0 0.0
    %835 = vmatprep.subr.mxu0 0.0
    %836 = vmatpush1.msra.mxu0 %v164
    %837 = vmatprep.subr.mxu0 0.0
    %838 = vmatpush1.msra.mxu0 %v163
    %839 = vmatprep.subr.mxu0 0.0
    %840 = vmatpush1.msra.mxu0 %v162
    %841 = vmatprep.subr.mxu0 0.0
    %842 = vmatpush1.msra.mxu0 %v161
    %843 = vmatprep.subr.mxu0 0.0
    %844 = vmatpush2.msra.mxu0 0.0
    %845 = vmatprep.subr.mxu0 0.0
    %846 = vmatpush2.msra.mxu0 0.0
    %847 = vmatprep.subr.mxu0 0.0
    %848 = vmatpush2.msra.mxu0 0.0
    %849 = vmatprep.subr.mxu0 0.0
    %850 = vmatpush2.msra.mxu0 0.0
    %851 = vmatprep.subr.mxu0 0.0
    %852 = vmatpush2.msra.mxu0 0.0
    %853 = vmatprep.subr.mxu0 0.0
    %854 = vmatpush2.msra.mxu0 0.0
    %855 = vmatprep.subr.mxu0 0.0
    %856 = vmatpush2.msra.mxu0 0.0
    %857 = vmatprep.subr.mxu0 0.0
    %858 = vmatpush2.msra.mxu0 0.0
    %859 = vmatprep.subr.mxu0 0.0
    %860 = vmatpush2.msra.mxu0 0.0
    %861 = vmatprep.subr.mxu0 0.0
    %862 = vmatpush2.msra.mxu0 0.0
    %863 = vmatprep.subr.mxu0 0.0
    %864 = vmatpush2.msra.mxu0 0.0
    %865 = vmatprep.subr.mxu0 0.0
    %866 = vmatpush2.msra.mxu0 0.0
    %867 = vmatprep.subr.mxu0 0.0
    %868 = vmatpush2.msra.mxu0 0.0
    %869 = vmatprep.subr.mxu0 0.0
    %870 = vmatpush2.msra.mxu0 0.0
    %871 = vmatprep.subr.mxu0 0.0
    %872 = vmatpush2.msra.mxu0 0.0
    %873 = vmatprep.subr.mxu0 0.0
    %874 = vmatpush2.msra.mxu0 0.0
    %875 = vmatprep.mubr.f32.mxu0 0.0
    %876 = vmatmul.mubr.f32.gmra.mxu0 %v809
    %v877 = vpop.f32.mrf.mxu0
    %v878 = vadd.f32 0.0, %v877
    %v879 = vpop.f32.mrf.mxu0
    %880 = vdwg.mxu0
    %v882 = vrot.slane %v878, 4
    %v884 = vadd.f32 %v158, %v882
    %v885 = vmul.f32 %v884, 0.5
    %v886 = vtanh.pop %v885
    %v887 = vmul.f32 %v886, 0.5
    %v888 = vadd.f32 %v887, 0.5
    %v889 = vtanh.pop %v884
    %v891 = vrot.slane %v794, 6
    %v893 = vmul.f32 %v888, %v891
    %895 = vrot.lane.b32.xlu0 %v889, 64
    %v896 = vpop.permute.xlu0 %895
    %v898 = vmul.f32 %v888, %v896
    %900 = vrot.lane.b32.xlu0 %v898, 32
    %v901 = vpop.permute.xlu0 %900
    %v903 = vadd.f32 %v893, %v901
    %v904 = vtanh.pop %v903
    %906 = vrot.lane.b32.xlu0 %v904, 64
    %v907 = vpop.permute.xlu0 %906
    %v909 = vmul.f32 %v888, %v907
    %911 = vrot.lane.b32.xlu0 %v909, 32
    %v912 = vpop.permute.xlu0 %911
    %914 = vst.msk [vmem:[#allocation2 + $0x8] sm:$0x30] %vm482, %v912
    %v915 = vrot.slane %v909, 4
    %916 = vrot.lane.b32.xlu0 %v915, 32
    %v917 = vpop.permute.xlu0 %916
    %v918 = vsel %vm79, %v917, 0
    %920 = vmatprep.subr.mxu0 0.0
    %921 = vmatpush1.msra.mxu0 0.0
    %922 = vmatprep.subr.mxu0 0.0
    %923 = vmatpush1.msra.mxu0 0.0
    %924 = vmatprep.subr.mxu0 0.0
    %925 = vmatpush1.msra.mxu0 0.0
    %926 = vmatprep.subr.mxu0 0.0
    %927 = vmatpush1.msra.mxu0 0.0
    %928 = vmatprep.subr.mxu0 0.0
    %929 = vmatpush1.msra.mxu0 0.0
    %930 = vmatprep.subr.mxu0 0.0
    %931 = vmatpush1.msra.mxu0 0.0
    %932 = vmatprep.subr.mxu0 0.0
    %933 = vmatpush1.msra.mxu0 0.0
    %934 = vmatprep.subr.mxu0 0.0
    %935 = vmatpush1.msra.mxu0 0.0
    %936 = vmatprep.subr.mxu0 0.0
    %937 = vmatpush1.msra.mxu0 0.0
    %938 = vmatprep.subr.mxu0 0.0
    %939 = vmatpush1.msra.mxu0 0.0
    %940 = vmatprep.subr.mxu0 0.0
    %941 = vmatpush1.msra.mxu0 0.0
    %942 = vmatprep.subr.mxu0 0.0
    %943 = vmatpush1.msra.mxu0 0.0
    %944 = vmatprep.subr.mxu0 0.0
    %945 = vmatpush1.msra.mxu0 %v164
    %946 = vmatprep.subr.mxu0 0.0
    %947 = vmatpush1.msra.mxu0 %v163
    %948 = vmatprep.subr.mxu0 0.0
    %949 = vmatpush1.msra.mxu0 %v162
    %950 = vmatprep.subr.mxu0 0.0
    %951 = vmatpush1.msra.mxu0 %v161
    %952 = vmatprep.subr.mxu0 0.0
    %953 = vmatpush2.msra.mxu0 0.0
    %954 = vmatprep.subr.mxu0 0.0
    %955 = vmatpush2.msra.mxu0 0.0
    %956 = vmatprep.subr.mxu0 0.0
    %957 = vmatpush2.msra.mxu0 0.0
    %958 = vmatprep.subr.mxu0 0.0
    %959 = vmatpush2.msra.mxu0 0.0
    %960 = vmatprep.subr.mxu0 0.0
    %961 = vmatpush2.msra.mxu0 0.0
    %962 = vmatprep.subr.mxu0 0.0
    %963 = vmatpush2.msra.mxu0 0.0
    %964 = vmatprep.subr.mxu0 0.0
    %965 = vmatpush2.msra.mxu0 0.0
    %966 = vmatprep.subr.mxu0 0.0
    %967 = vmatpush2.msra.mxu0 0.0
    %968 = vmatprep.subr.mxu0 0.0
    %969 = vmatpush2.msra.mxu0 0.0
    %970 = vmatprep.subr.mxu0 0.0
    %971 = vmatpush2.msra.mxu0 0.0
    %972 = vmatprep.subr.mxu0 0.0
    %973 = vmatpush2.msra.mxu0 0.0
    %974 = vmatprep.subr.mxu0 0.0
    %975 = vmatpush2.msra.mxu0 0.0
    %976 = vmatprep.subr.mxu0 0.0
    %977 = vmatpush2.msra.mxu0 0.0
    %978 = vmatprep.subr.mxu0 0.0
    %979 = vmatpush2.msra.mxu0 0.0
    %980 = vmatprep.subr.mxu0 0.0
    %981 = vmatpush2.msra.mxu0 0.0
    %982 = vmatprep.subr.mxu0 0.0
    %983 = vmatpush2.msra.mxu0 0.0
    %984 = vmatprep.mubr.f32.mxu0 0.0
    %985 = vmatmul.mubr.f32.gmra.mxu0 %v918
    %v986 = vpop.f32.mrf.mxu0
    %v987 = vadd.f32 0.0, %v986
    %v988 = vpop.f32.mrf.mxu0
    %989 = vdwg.mxu0
    %v991 = vrot.slane %v987, 2
    %v993 = vadd.f32 %v158, %v991
    %v994 = vmul.f32 %v993, 0.5
    %v995 = vtanh.pop %v994
    %v996 = vmul.f32 %v995, 0.5
    %v997 = vadd.f32 %v996, 0.5
    %v998 = vtanh.pop %v993
    %v1000 = vrot.slane %v903, 6
    %v1002 = vmul.f32 %v997, %v1000
    %1004 = vrot.lane.b32.xlu0 %v998, 64
    %v1005 = vpop.permute.xlu0 %1004
    %v1007 = vmul.f32 %v997, %v1005
    %1009 = vrot.lane.b32.xlu0 %v1007, 32
    %v1010 = vpop.permute.xlu0 %1009
    %v1012 = vadd.f32 %v1002, %v1010
    %v1013 = vtanh.pop %v1012
    %1015 = vrot.lane.b32.xlu0 %v1013, 64
    %v1016 = vpop.permute.xlu0 %1015
    %v1018 = vmul.f32 %v997, %v1016
    %1020 = vrot.lane.b32.xlu0 %v1018, 32
    %v1021 = vpop.permute.xlu0 %1020
    %1023 = vst.msk [vmem:[#allocation2 + $0x8] sm:$0xc0] %vm592, %v1021
    %1024 = vst.msk [vmem:[#allocation8 - $0x6] sm:$0xc0] %vm592, %v1021
    %1026 = vrot.lane.b32.xlu0 %v1012, 96
    %v1027 = vpop.permute.xlu0 %1026
    %1029 = vst.msk [vmem:[#allocation9 - $0x6] sm:$0xc0] %vm592, %v1027
    %v1030 = vld [vmem:[#allocation2] sm:$0xff]
    %v1031 = vld [vmem:[#allocation2 + $0x8] sm:$0xff]
    %v1032 = vld [vmem:[%s4] sm:$0xff]
    %v1033 = vld [vmem:[%s4 + $0x8] sm:$0xff]
    %v1034 = vld [vmem:[%s4 + $0x10] sm:$0xff]
    %v1035 = vld [vmem:[%s4 + $0x18] sm:$0xff]
    %v1036 = vld [vmem:[%s6] sm:$0x1]
    %v1038 = vlaneseq
    %v1039 = vshrl.u32 %v1038, 7
    %v1040 = vsub.s32 0, %v1039
    %v1041 = vrot.slane %v1036, %v1040
    %v1044 = vsel %vm79, %v1030, 0
    %v1047 = vsel %vm79, %v1031, 0
    %1049 = vmatprep.subr.mxu0 0.0
    %1050 = vmatpush1.msra.mxu0 0.0
    %1051 = vmatprep.subr.mxu0 0.0
    %1052 = vmatpush1.msra.mxu0 0.0
    %1053 = vmatprep.subr.mxu0 0.0
    %1054 = vmatpush1.msra.mxu0 0.0
    %1055 = vmatprep.subr.mxu0 0.0
    %1056 = vmatpush1.msra.mxu0 0.0
    %1057 = vmatprep.subr.mxu0 0.0
    %1058 = vmatpush1.msra.mxu0 0.0
    %1059 = vmatprep.subr.mxu0 0.0
    %1060 = vmatpush1.msra.mxu0 0.0
    %1061 = vmatprep.subr.mxu0 0.0
    %1062 = vmatpush1.msra.mxu0 0.0
    %1063 = vmatprep.subr.mxu0 0.0
    %1064 = vmatpush1.msra.mxu0 0.0
    %1065 = vmatprep.subr.mxu0 0.0
    %1066 = vmatpush1.msra.mxu0 0.0
    %1067 = vmatprep.subr.mxu0 0.0
    %1068 = vmatpush1.msra.mxu0 0.0
    %1069 = vmatprep.subr.mxu0 0.0
    %1070 = vmatpush1.msra.mxu0 0.0
    %1071 = vmatprep.subr.mxu0 0.0
    %1072 = vmatpush1.msra.mxu0 0.0
    %1073 = vmatprep.subr.mxu0 0.0
    %1074 = vmatpush1.msra.mxu0 %v1035
    %1075 = vmatprep.subr.mxu0 0.0
    %1076 = vmatpush1.msra.mxu0 %v1034
    %1077 = vmatprep.subr.mxu0 0.0
    %1078 = vmatpush1.msra.mxu0 %v1033
    %1079 = vmatprep.subr.mxu0 0.0
    %1080 = vmatpush1.msra.mxu0 %v1032
    %1081 = vmatprep.subr.mxu0 0.0
    %1082 = vmatpush2.msra.mxu0 0.0
    %1083 = vmatprep.subr.mxu0 0.0
    %1084 = vmatpush2.msra.mxu0 0.0
    %1085 = vmatprep.subr.mxu0 0.0
    %1086 = vmatpush2.msra.mxu0 0.0
    %1087 = vmatprep.subr.mxu0 0.0
    %1088 = vmatpush2.msra.mxu0 0.0
    %1089 = vmatprep.subr.mxu0 0.0
    %1090 = vmatpush2.msra.mxu0 0.0
    %1091 = vmatprep.subr.mxu0 0.0
    %1092 = vmatpush2.msra.mxu0 0.0
    %1093 = vmatprep.subr.mxu0 0.0
    %1094 = vmatpush2.msra.mxu0 0.0
    %1095 = vmatprep.subr.mxu0 0.0
    %1096 = vmatpush2.msra.mxu0 0.0
    %1097 = vmatprep.subr.mxu0 0.0
    %1098 = vmatpush2.msra.mxu0 0.0
    %1099 = vmatprep.subr.mxu0 0.0
    %1100 = vmatpush2.msra.mxu0 0.0
    %1101 = vmatprep.subr.mxu0 0.0
    %1102 = vmatpush2.msra.mxu0 0.0
    %1103 = vmatprep.subr.mxu0 0.0
    %1104 = vmatpush2.msra.mxu0 0.0
    %1105 = vmatprep.subr.mxu0 0.0
    %1106 = vmatpush2.msra.mxu0 0.0
    %1107 = vmatprep.subr.mxu0 0.0
    %1108 = vmatpush2.msra.mxu0 0.0
    %1109 = vmatprep.subr.mxu0 0.0
    %1110 = vmatpush2.msra.mxu0 0.0
    %1111 = vmatprep.subr.mxu0 0.0
    %1112 = vmatpush2.msra.mxu0 0.0
    %1113 = vmatprep.mubr.f32.mxu0 0.0
    %1114 = vmatmul.mubr.f32.gmra.mxu0 %v1044
    %v1115 = vpop.f32.mrf.mxu0
    %v1116 = vadd.f32 %v1041, %v1115
    %v1117 = vpop.f32.mrf.mxu0
    %1118 = vmatprep.mubr.f32.mxu0 0.0
    %1119 = vmatmul.mubr.f32.gmra.mxu0 %v1047
    %v1120 = vpop.f32.mrf.mxu0
    %v1121 = vadd.f32 %v1041, %v1120
    %v1122 = vpop.f32.mrf.mxu0
    %1123 = vdwg.mxu0
    %v1124 = vld [vmem:[#allocation3] sm:$0xff]
    %v1125 = vld [vmem:[#allocation3 + $0x8] sm:$0xff]
    %v1126 = vld [vmem:[#allocation3 + $0x10] sm:$0xff]
    %v1127 = vld [vmem:[#allocation3 + $0x18] sm:$0xff]
    %1128 = vmatprep.subr.mxu0 0.0
    %1129 = vmatpush1.msra.mxu0 0.0
    %1130 = vmatprep.subr.mxu0 0.0
    %1131 = vmatpush1.msra.mxu0 0.0
    %1132 = vmatprep.subr.mxu0 0.0
    %1133 = vmatpush1.msra.mxu0 0.0
    %1134 = vmatprep.subr.mxu0 0.0
    %1135 = vmatpush1.msra.mxu0 0.0
    %1136 = vmatprep.subr.mxu0 0.0
    %1137 = vmatpush1.msra.mxu0 0.0
    %1138 = vmatprep.subr.mxu0 0.0
    %1139 = vmatpush1.msra.mxu0 0.0
    %1140 = vmatprep.subr.mxu0 0.0
    %1141 = vmatpush1.msra.mxu0 0.0
    %1142 = vmatprep.subr.mxu0 0.0
    %1143 = vmatpush1.msra.mxu0 0.0
    %1144 = vmatprep.subr.mxu0 0.0
    %1145 = vmatpush1.msra.mxu0 0.0
    %1146 = vmatprep.subr.mxu0 0.0
    %1147 = vmatpush1.msra.mxu0 0.0
    %1148 = vmatprep.subr.mxu0 0.0
    %1149 = vmatpush1.msra.mxu0 0.0
    %1150 = vmatprep.subr.mxu0 0.0
    %1151 = vmatpush1.msra.mxu0 0.0
    %1152 = vmatprep.subr.mxu0 0.0
    %1153 = vmatpush1.msra.mxu0 %v1127
    %1154 = vmatprep.subr.mxu0 0.0
    %1155 = vmatpush1.msra.mxu0 %v1126
    %1156 = vmatprep.subr.mxu0 0.0
    %1157 = vmatpush1.msra.mxu0 %v1125
    %1158 = vmatprep.subr.mxu0 0.0
    %1159 = vmatpush1.msra.mxu0 %v1124
    %1160 = vmatprep.subr.mxu0 0.0
    %1161 = vmatpush2.msra.mxu0 0.0
    %1162 = vmatprep.subr.mxu0 0.0
    %1163 = vmatpush2.msra.mxu0 0.0
    %1164 = vmatprep.subr.mxu0 0.0
    %1165 = vmatpush2.msra.mxu0 0.0
    %1166 = vmatprep.subr.mxu0 0.0
    %1167 = vmatpush2.msra.mxu0 0.0
    %1168 = vmatprep.subr.mxu0 0.0
    %1169 = vmatpush2.msra.mxu0 0.0
    %1170 = vmatprep.subr.mxu0 0.0
    %1171 = vmatpush2.msra.mxu0 0.0
    %1172 = vmatprep.subr.mxu0 0.0
    %1173 = vmatpush2.msra.mxu0 0.0
    %1174 = vmatprep.subr.mxu0 0.0
    %1175 = vmatpush2.msra.mxu0 0.0
    %1176 = vmatprep.subr.mxu0 0.0
    %1177 = vmatpush2.msra.mxu0 0.0
    %1178 = vmatprep.subr.mxu0 0.0
    %1179 = vmatpush2.msra.mxu0 0.0
    %1180 = vmatprep.subr.mxu0 0.0
    %1181 = vmatpush2.msra.mxu0 0.0
    %1182 = vmatprep.subr.mxu0 0.0
    %1183 = vmatpush2.msra.mxu0 0.0
    %1184 = vmatprep.subr.mxu0 0.0
    %1185 = vmatpush2.msra.mxu0 0.0
    %1186 = vmatprep.subr.mxu0 0.0
    %1187 = vmatpush2.msra.mxu0 0.0
    %1188 = vmatprep.subr.mxu0 0.0
    %1189 = vmatpush2.msra.mxu0 0.0
    %1190 = vmatprep.subr.mxu0 0.0
    %1191 = vmatpush2.msra.mxu0 0.0
    %1192 = vmatprep.mubr.f32.mxu0 0.0
    %1193 = vmatmul.mubr.f32.gmra.mxu0 %v166
    %v1194 = vpop.f32.mrf.mxu0
    %v1195 = vadd.f32 0.0, %v1194
    %v1196 = vpop.f32.mrf.mxu0
    %1197 = vdwg.mxu0
    %v1198 = vadd.f32 %v1116, %v1195
    %v1199 = vmul.f32 %v1198, 0.5
    %v1200 = vtanh.pop %v1199
    %v1201 = vmul.f32 %v1200, 0.5
    %v1202 = vadd.f32 %v1201, 0.5
    %v1203 = vtanh.pop %v1198
    %v1204 = vmul.f32 %v1202, 0.0
    %1206 = vrot.lane.b32.xlu0 %v1203, 64
    %v1207 = vpop.permute.xlu0 %1206
    %v1209 = vmul.f32 %v1202, %v1207
    %1211 = vrot.lane.b32.xlu0 %v1209, 32
    %v1212 = vpop.permute.xlu0 %1211
    %v1214 = vadd.f32 %v1204, %v1212
    %v1215 = vtanh.pop %v1214
    %1217 = vrot.lane.b32.xlu0 %v1215, 64
    %v1218 = vpop.permute.xlu0 %1217
    %v1220 = vmul.f32 %v1202, %v1218
    %1222 = vrot.lane.b32.xlu0 %v1220, 32
    %v1223 = vpop.permute.xlu0 %1222
    %1225 = vst.msk [vmem:[%s9] sm:$0x3] %vm265, %v1223
    %v1226 = vsel %vm79, %v1223, 0
    %1228 = vmatprep.subr.mxu0 0.0
    %1229 = vmatpush1.msra.mxu0 0.0
    %1230 = vmatprep.subr.mxu0 0.0
    %1231 = vmatpush1.msra.mxu0 0.0
    %1232 = vmatprep.subr.mxu0 0.0
    %1233 = vmatpush1.msra.mxu0 0.0
    %1234 = vmatprep.subr.mxu0 0.0
    %1235 = vmatpush1.msra.mxu0 0.0
    %1236 = vmatprep.subr.mxu0 0.0
    %1237 = vmatpush1.msra.mxu0 0.0
    %1238 = vmatprep.subr.mxu0 0.0
    %1239 = vmatpush1.msra.mxu0 0.0
    %1240 = vmatprep.subr.mxu0 0.0
    %1241 = vmatpush1.msra.mxu0 0.0
    %1242 = vmatprep.subr.mxu0 0.0
    %1243 = vmatpush1.msra.mxu0 0.0
    %1244 = vmatprep.subr.mxu0 0.0
    %1245 = vmatpush1.msra.mxu0 0.0
    %1246 = vmatprep.subr.mxu0 0.0
    %1247 = vmatpush1.msra.mxu0 0.0
    %1248 = vmatprep.subr.mxu0 0.0
    %1249 = vmatpush1.msra.mxu0 0.0
    %1250 = vmatprep.subr.mxu0 0.0
    %1251 = vmatpush1.msra.mxu0 0.0
    %1252 = vmatprep.subr.mxu0 0.0
    %1253 = vmatpush1.msra.mxu0 %v1127
    %1254 = vmatprep.subr.mxu0 0.0
    %1255 = vmatpush1.msra.mxu0 %v1126
    %1256 = vmatprep.subr.mxu0 0.0
    %1257 = vmatpush1.msra.mxu0 %v1125
    %1258 = vmatprep.subr.mxu0 0.0
    %1259 = vmatpush1.msra.mxu0 %v1124
    %1260 = vmatprep.subr.mxu0 0.0
    %1261 = vmatpush2.msra.mxu0 0.0
    %1262 = vmatprep.subr.mxu0 0.0
    %1263 = vmatpush2.msra.mxu0 0.0
    %1264 = vmatprep.subr.mxu0 0.0
    %1265 = vmatpush2.msra.mxu0 0.0
    %1266 = vmatprep.subr.mxu0 0.0
    %1267 = vmatpush2.msra.mxu0 0.0
    %1268 = vmatprep.subr.mxu0 0.0
    %1269 = vmatpush2.msra.mxu0 0.0
    %1270 = vmatprep.subr.mxu0 0.0
    %1271 = vmatpush2.msra.mxu0 0.0
    %1272 = vmatprep.subr.mxu0 0.0
    %1273 = vmatpush2.msra.mxu0 0.0
    %1274 = vmatprep.subr.mxu0 0.0
    %1275 = vmatpush2.msra.mxu0 0.0
    %1276 = vmatprep.subr.mxu0 0.0
    %1277 = vmatpush2.msra.mxu0 0.0
    %1278 = vmatprep.subr.mxu0 0.0
    %1279 = vmatpush2.msra.mxu0 0.0
    %1280 = vmatprep.subr.mxu0 0.0
    %1281 = vmatpush2.msra.mxu0 0.0
    %1282 = vmatprep.subr.mxu0 0.0
    %1283 = vmatpush2.msra.mxu0 0.0
    %1284 = vmatprep.subr.mxu0 0.0
    %1285 = vmatpush2.msra.mxu0 0.0
    %1286 = vmatprep.subr.mxu0 0.0
    %1287 = vmatpush2.msra.mxu0 0.0
    %1288 = vmatprep.subr.mxu0 0.0
    %1289 = vmatpush2.msra.mxu0 0.0
    %1290 = vmatprep.subr.mxu0 0.0
    %1291 = vmatpush2.msra.mxu0 0.0
    %1292 = vmatprep.mubr.f32.mxu0 0.0
    %1293 = vmatmul.mubr.f32.gmra.mxu0 %v1226
    %v1294 = vpop.f32.mrf.mxu0
    %v1295 = vadd.f32 0.0, %v1294
    %v1296 = vpop.f32.mrf.mxu0
    %1297 = vdwg.mxu0
    %v1299 = vrot.slane %v1295, 6
    %v1301 = vadd.f32 %v1116, %v1299
    %v1302 = vmul.f32 %v1301, 0.5
    %v1303 = vtanh.pop %v1302
    %v1304 = vmul.f32 %v1303, 0.5
    %v1305 = vadd.f32 %v1304, 0.5
    %v1306 = vtanh.pop %v1301
    %v1308 = vrot.slane %v1214, 6
    %v1310 = vmul.f32 %v1305, %v1308
    %1312 = vrot.lane.b32.xlu0 %v1306, 64
    %v1313 = vpop.permute.xlu0 %1312
    %v1315 = vmul.f32 %v1305, %v1313
    %1317 = vrot.lane.b32.xlu0 %v1315, 32
    %v1318 = vpop.permute.xlu0 %1317
    %v1320 = vadd.f32 %v1310, %v1318
    %v1321 = vtanh.pop %v1320
    %1323 = vrot.lane.b32.xlu0 %v1321, 64
    %v1324 = vpop.permute.xlu0 %1323
    %v1326 = vmul.f32 %v1305, %v1324
    %1328 = vrot.lane.b32.xlu0 %v1326, 32
    %v1329 = vpop.permute.xlu0 %1328
    %1331 = vst.msk [vmem:[%s9] sm:$0xc] %vm372, %v1329
    %v1332 = vrot.slane %v1326, 2
    %1333 = vrot.lane.b32.xlu0 %v1332, 32
    %v1334 = vpop.permute.xlu0 %1333
    %v1335 = vsel %vm79, %v1334, 0
    %1337 = vmatprep.subr.mxu0 0.0
    %1338 = vmatpush1.msra.mxu0 0.0
    %1339 = vmatprep.subr.mxu0 0.0
    %1340 = vmatpush1.msra.mxu0 0.0
    %1341 = vmatprep.subr.mxu0 0.0
    %1342 = vmatpush1.msra.mxu0 0.0
    %1343 = vmatprep.subr.mxu0 0.0
    %1344 = vmatpush1.msra.mxu0 0.0
    %1345 = vmatprep.subr.mxu0 0.0
    %1346 = vmatpush1.msra.mxu0 0.0
    %1347 = vmatprep.subr.mxu0 0.0
    %1348 = vmatpush1.msra.mxu0 0.0
    %1349 = vmatprep.subr.mxu0 0.0
    %1350 = vmatpush1.msra.mxu0 0.0
    %1351 = vmatprep.subr.mxu0 0.0
    %1352 = vmatpush1.msra.mxu0 0.0
    %1353 = vmatprep.subr.mxu0 0.0
    %1354 = vmatpush1.msra.mxu0 0.0
    %1355 = vmatprep.subr.mxu0 0.0
    %1356 = vmatpush1.msra.mxu0 0.0
    %1357 = vmatprep.subr.mxu0 0.0
    %1358 = vmatpush1.msra.mxu0 0.0
    %1359 = vmatprep.subr.mxu0 0.0
    %1360 = vmatpush1.msra.mxu0 0.0
    %1361 = vmatprep.subr.mxu0 0.0
    %1362 = vmatpush1.msra.mxu0 %v1127
    %1363 = vmatprep.subr.mxu0 0.0
    %1364 = vmatpush1.msra.mxu0 %v1126
    %1365 = vmatprep.subr.mxu0 0.0
    %1366 = vmatpush1.msra.mxu0 %v1125
    %1367 = vmatprep.subr.mxu0 0.0
    %1368 = vmatpush1.msra.mxu0 %v1124
    %1369 = vmatprep.subr.mxu0 0.0
    %1370 = vmatpush2.msra.mxu0 0.0
    %1371 = vmatprep.subr.mxu0 0.0
    %1372 = vmatpush2.msra.mxu0 0.0
    %1373 = vmatprep.subr.mxu0 0.0
    %1374 = vmatpush2.msra.mxu0 0.0
    %1375 = vmatprep.subr.mxu0 0.0
    %1376 = vmatpush2.msra.mxu0 0.0
    %1377 = vmatprep.subr.mxu0 0.0
    %1378 = vmatpush2.msra.mxu0 0.0
    %1379 = vmatprep.subr.mxu0 0.0
    %1380 = vmatpush2.msra.mxu0 0.0
    %1381 = vmatprep.subr.mxu0 0.0
    %1382 = vmatpush2.msra.mxu0 0.0
    %1383 = vmatprep.subr.mxu0 0.0
    %1384 = vmatpush2.msra.mxu0 0.0
    %1385 = vmatprep.subr.mxu0 0.0
    %1386 = vmatpush2.msra.mxu0 0.0
    %1387 = vmatprep.subr.mxu0 0.0
    %1388 = vmatpush2.msra.mxu0 0.0
    %1389 = vmatprep.subr.mxu0 0.0
    %1390 = vmatpush2.msra.mxu0 0.0
    %1391 = vmatprep.subr.mxu0 0.0
    %1392 = vmatpush2.msra.mxu0 0.0
    %1393 = vmatprep.subr.mxu0 0.0
    %1394 = vmatpush2.msra.mxu0 0.0
    %1395 = vmatprep.subr.mxu0 0.0
    %1396 = vmatpush2.msra.mxu0 0.0
    %1397 = vmatprep.subr.mxu0 0.0
    %1398 = vmatpush2.msra.mxu0 0.0
    %1399 = vmatprep.subr.mxu0 0.0
    %1400 = vmatpush2.msra.mxu0 0.0
    %1401 = vmatprep.mubr.f32.mxu0 0.0
    %1402 = vmatmul.mubr.f32.gmra.mxu0 %v1335
    %v1403 = vpop.f32.mrf.mxu0
    %v1404 = vadd.f32 0.0, %v1403
    %v1405 = vpop.f32.mrf.mxu0
    %1406 = vdwg.mxu0
    %v1408 = vrot.slane %v1404, 4
    %v1410 = vadd.f32 %v1116, %v1408
    %v1411 = vmul.f32 %v1410, 0.5
    %v1412 = vtanh.pop %v1411
    %v1413 = vmul.f32 %v1412, 0.5
    %v1414 = vadd.f32 %v1413, 0.5
    %v1415 = vtanh.pop %v1410
    %v1417 = vrot.slane %v1320, 6
    %v1419 = vmul.f32 %v1414, %v1417
    %1421 = vrot.lane.b32.xlu0 %v1415, 64
    %v1422 = vpop.permute.xlu0 %1421
    %v1424 = vmul.f32 %v1414, %v1422
    %1426 = vrot.lane.b32.xlu0 %v1424, 32
    %v1427 = vpop.permute.xlu0 %1426
    %v1429 = vadd.f32 %v1419, %v1427
    %v1430 = vtanh.pop %v1429
    %1432 = vrot.lane.b32.xlu0 %v1430, 64
    %v1433 = vpop.permute.xlu0 %1432
    %v1435 = vmul.f32 %v1414, %v1433
    %1437 = vrot.lane.b32.xlu0 %v1435, 32
    %v1438 = vpop.permute.xlu0 %1437
    %1440 = vst.msk [vmem:[%s9] sm:$0x30] %vm482, %v1438
    %v1441 = vrot.slane %v1435, 4
    %1442 = vrot.lane.b32.xlu0 %v1441, 32
    %v1443 = vpop.permute.xlu0 %1442
    %v1444 = vsel %vm79, %v1443, 0
    %1446 = vmatprep.subr.mxu0 0.0
    %1447 = vmatpush1.msra.mxu0 0.0
    %1448 = vmatprep.subr.mxu0 0.0
    %1449 = vmatpush1.msra.mxu0 0.0
    %1450 = vmatprep.subr.mxu0 0.0
    %1451 = vmatpush1.msra.mxu0 0.0
    %1452 = vmatprep.subr.mxu0 0.0
    %1453 = vmatpush1.msra.mxu0 0.0
    %1454 = vmatprep.subr.mxu0 0.0
    %1455 = vmatpush1.msra.mxu0 0.0
    %1456 = vmatprep.subr.mxu0 0.0
    %1457 = vmatpush1.msra.mxu0 0.0
    %1458 = vmatprep.subr.mxu0 0.0
    %1459 = vmatpush1.msra.mxu0 0.0
    %1460 = vmatprep.subr.mxu0 0.0
    %1461 = vmatpush1.msra.mxu0 0.0
    %1462 = vmatprep.subr.mxu0 0.0
    %1463 = vmatpush1.msra.mxu0 0.0
    %1464 = vmatprep.subr.mxu0 0.0
    %1465 = vmatpush1.msra.mxu0 0.0
    %1466 = vmatprep.subr.mxu0 0.0
    %1467 = vmatpush1.msra.mxu0 0.0
    %1468 = vmatprep.subr.mxu0 0.0
    %1469 = vmatpush1.msra.mxu0 0.0
    %1470 = vmatprep.subr.mxu0 0.0
    %1471 = vmatpush1.msra.mxu0 %v1127
    %1472 = vmatprep.subr.mxu0 0.0
    %1473 = vmatpush1.msra.mxu0 %v1126
    %1474 = vmatprep.subr.mxu0 0.0
    %1475 = vmatpush1.msra.mxu0 %v1125
    %1476 = vmatprep.subr.mxu0 0.0
    %1477 = vmatpush1.msra.mxu0 %v1124
    %1478 = vmatprep.subr.mxu0 0.0
    %1479 = vmatpush2.msra.mxu0 0.0
    %1480 = vmatprep.subr.mxu0 0.0
    %1481 = vmatpush2.msra.mxu0 0.0
    %1482 = vmatprep.subr.mxu0 0.0
    %1483 = vmatpush2.msra.mxu0 0.0
    %1484 = vmatprep.subr.mxu0 0.0
    %1485 = vmatpush2.msra.mxu0 0.0
    %1486 = vmatprep.subr.mxu0 0.0
    %1487 = vmatpush2.msra.mxu0 0.0
    %1488 = vmatprep.subr.mxu0 0.0
    %1489 = vmatpush2.msra.mxu0 0.0
    %1490 = vmatprep.subr.mxu0 0.0
    %1491 = vmatpush2.msra.mxu0 0.0
    %1492 = vmatprep.subr.mxu0 0.0
    %1493 = vmatpush2.msra.mxu0 0.0
    %1494 = vmatprep.subr.mxu0 0.0
    %1495 = vmatpush2.msra.mxu0 0.0
    %1496 = vmatprep.subr.mxu0 0.0
    %1497 = vmatpush2.msra.mxu0 0.0
    %1498 = vmatprep.subr.mxu0 0.0
    %1499 = vmatpush2.msra.mxu0 0.0
    %1500 = vmatprep.subr.mxu0 0.0
    %1501 = vmatpush2.msra.mxu0 0.0
    %1502 = vmatprep.subr.mxu0 0.0
    %1503 = vmatpush2.msra.mxu0 0.0
    %1504 = vmatprep.subr.mxu0 0.0
    %1505 = vmatpush2.msra.mxu0 0.0
    %1506 = vmatprep.subr.mxu0 0.0
    %1507 = vmatpush2.msra.mxu0 0.0
    %1508 = vmatprep.subr.mxu0 0.0
    %1509 = vmatpush2.msra.mxu0 0.0
    %1510 = vmatprep.mubr.f32.mxu0 0.0
    %1511 = vmatmul.mubr.f32.gmra.mxu0 %v1444
    %v1512 = vpop.f32.mrf.mxu0
    %v1513 = vadd.f32 0.0, %v1512
    %v1514 = vpop.f32.mrf.mxu0
    %1515 = vdwg.mxu0
    %v1517 = vrot.slane %v1513, 2
    %v1519 = vadd.f32 %v1116, %v1517
    %v1520 = vmul.f32 %v1519, 0.5
    %v1521 = vtanh.pop %v1520
    %v1522 = vmul.f32 %v1521, 0.5
    %v1523 = vadd.f32 %v1522, 0.5
    %v1524 = vtanh.pop %v1519
    %v1526 = vrot.slane %v1429, 6
    %v1528 = vmul.f32 %v1523, %v1526
    %1530 = vrot.lane.b32.xlu0 %v1524, 64
    %v1531 = vpop.permute.xlu0 %1530
    %v1533 = vmul.f32 %v1523, %v1531
    %1535 = vrot.lane.b32.xlu0 %v1533, 32
    %v1536 = vpop.permute.xlu0 %1535
    %v1538 = vadd.f32 %v1528, %v1536
    %v1539 = vtanh.pop %v1538
    %1541 = vrot.lane.b32.xlu0 %v1539, 64
    %v1542 = vpop.permute.xlu0 %1541
    %v1544 = vmul.f32 %v1523, %v1542
    %1546 = vrot.lane.b32.xlu0 %v1544, 32
    %v1547 = vpop.permute.xlu0 %1546
    %1549 = vst.msk [vmem:[%s9] sm:$0xc0] %vm592, %v1547
    %v1550 = vrot.slane %v1544, 6
    %1551 = vrot.lane.b32.xlu0 %v1550, 32
    %v1552 = vpop.permute.xlu0 %1551
    %v1553 = vsel %vm79, %v1552, 0
    %1555 = vmatprep.subr.mxu0 0.0
    %1556 = vmatpush1.msra.mxu0 0.0
    %1557 = vmatprep.subr.mxu0 0.0
    %1558 = vmatpush1.msra.mxu0 0.0
    %1559 = vmatprep.subr.mxu0 0.0
    %1560 = vmatpush1.msra.mxu0 0.0
    %1561 = vmatprep.subr.mxu0 0.0
    %1562 = vmatpush1.msra.mxu0 0.0
    %1563 = vmatprep.subr.mxu0 0.0
    %1564 = vmatpush1.msra.mxu0 0.0
    %1565 = vmatprep.subr.mxu0 0.0
    %1566 = vmatpush1.msra.mxu0 0.0
    %1567 = vmatprep.subr.mxu0 0.0
    %1568 = vmatpush1.msra.mxu0 0.0
    %1569 = vmatprep.subr.mxu0 0.0
    %1570 = vmatpush1.msra.mxu0 0.0
    %1571 = vmatprep.subr.mxu0 0.0
    %1572 = vmatpush1.msra.mxu0 0.0
    %1573 = vmatprep.subr.mxu0 0.0
    %1574 = vmatpush1.msra.mxu0 0.0
    %1575 = vmatprep.subr.mxu0 0.0
    %1576 = vmatpush1.msra.mxu0 0.0
    %1577 = vmatprep.subr.mxu0 0.0
    %1578 = vmatpush1.msra.mxu0 0.0
    %1579 = vmatprep.subr.mxu0 0.0
    %1580 = vmatpush1.msra.mxu0 %v1127
    %1581 = vmatprep.subr.mxu0 0.0
    %1582 = vmatpush1.msra.mxu0 %v1126
    %1583 = vmatprep.subr.mxu0 0.0
    %1584 = vmatpush1.msra.mxu0 %v1125
    %1585 = vmatprep.subr.mxu0 0.0
    %1586 = vmatpush1.msra.mxu0 %v1124
    %1587 = vmatprep.subr.mxu0 0.0
    %1588 = vmatpush2.msra.mxu0 0.0
    %1589 = vmatprep.subr.mxu0 0.0
    %1590 = vmatpush2.msra.mxu0 0.0
    %1591 = vmatprep.subr.mxu0 0.0
    %1592 = vmatpush2.msra.mxu0 0.0
    %1593 = vmatprep.subr.mxu0 0.0
    %1594 = vmatpush2.msra.mxu0 0.0
    %1595 = vmatprep.subr.mxu0 0.0
    %1596 = vmatpush2.msra.mxu0 0.0
    %1597 = vmatprep.subr.mxu0 0.0
    %1598 = vmatpush2.msra.mxu0 0.0
    %1599 = vmatprep.subr.mxu0 0.0
    %1600 = vmatpush2.msra.mxu0 0.0
    %1601 = vmatprep.subr.mxu0 0.0
    %1602 = vmatpush2.msra.mxu0 0.0
    %1603 = vmatprep.subr.mxu0 0.0
    %1604 = vmatpush2.msra.mxu0 0.0
    %1605 = vmatprep.subr.mxu0 0.0
    %1606 = vmatpush2.msra.mxu0 0.0
    %1607 = vmatprep.subr.mxu0 0.0
    %1608 = vmatpush2.msra.mxu0 0.0
    %1609 = vmatprep.subr.mxu0 0.0
    %1610 = vmatpush2.msra.mxu0 0.0
    %1611 = vmatprep.subr.mxu0 0.0
    %1612 = vmatpush2.msra.mxu0 0.0
    %1613 = vmatprep.subr.mxu0 0.0
    %1614 = vmatpush2.msra.mxu0 0.0
    %1615 = vmatprep.subr.mxu0 0.0
    %1616 = vmatpush2.msra.mxu0 0.0
    %1617 = vmatprep.subr.mxu0 0.0
    %1618 = vmatpush2.msra.mxu0 0.0
    %1619 = vmatprep.mubr.f32.mxu0 0.0
    %1620 = vmatmul.mubr.f32.gmra.mxu0 %v1553
    %v1621 = vpop.f32.mrf.mxu0
    %v1622 = vadd.f32 0.0, %v1621
    %v1623 = vpop.f32.mrf.mxu0
    %1624 = vdwg.mxu0
    %v1625 = vadd.f32 %v1121, %v1622
    %v1626 = vmul.f32 %v1625, 0.5
    %v1627 = vtanh.pop %v1626
    %v1628 = vmul.f32 %v1627, 0.5
    %v1629 = vadd.f32 %v1628, 0.5
    %v1630 = vtanh.pop %v1625
    %v1632 = vrot.slane %v1538, 6
    %v1634 = vmul.f32 %v1629, %v1632
    %1636 = vrot.lane.b32.xlu0 %v1630, 64
    %v1637 = vpop.permute.xlu0 %1636
    %v1639 = vmul.f32 %v1629, %v1637
    %1641 = vrot.lane.b32.xlu0 %v1639, 32
    %v1642 = vpop.permute.xlu0 %1641
    %v1644 = vadd.f32 %v1634, %v1642
    %v1645 = vtanh.pop %v1644
    %1647 = vrot.lane.b32.xlu0 %v1645, 64
    %v1648 = vpop.permute.xlu0 %1647
    %v1650 = vmul.f32 %v1629, %v1648
    %1652 = vrot.lane.b32.xlu0 %v1650, 32
    %v1653 = vpop.permute.xlu0 %1652
    %1655 = vst.msk [vmem:[%s9 + $0x8] sm:$0x3] %vm265, %v1653
    %v1656 = vsel %vm79, %v1653, 0
    %1658 = vmatprep.subr.mxu0 0.0
    %1659 = vmatpush1.msra.mxu0 0.0
    %1660 = vmatprep.subr.mxu0 0.0
    %1661 = vmatpush1.msra.mxu0 0.0
    %1662 = vmatprep.subr.mxu0 0.0
    %1663 = vmatpush1.msra.mxu0 0.0
    %1664 = vmatprep.subr.mxu0 0.0
    %1665 = vmatpush1.msra.mxu0 0.0
    %1666 = vmatprep.subr.mxu0 0.0
    %1667 = vmatpush1.msra.mxu0 0.0
    %1668 = vmatprep.subr.mxu0 0.0
    %1669 = vmatpush1.msra.mxu0 0.0
    %1670 = vmatprep.subr.mxu0 0.0
    %1671 = vmatpush1.msra.mxu0 0.0
    %1672 = vmatprep.subr.mxu0 0.0
    %1673 = vmatpush1.msra.mxu0 0.0
    %1674 = vmatprep.subr.mxu0 0.0
    %1675 = vmatpush1.msra.mxu0 0.0
    %1676 = vmatprep.subr.mxu0 0.0
    %1677 = vmatpush1.msra.mxu0 0.0
    %1678 = vmatprep.subr.mxu0 0.0
    %1679 = vmatpush1.msra.mxu0 0.0
    %1680 = vmatprep.subr.mxu0 0.0
    %1681 = vmatpush1.msra.mxu0 0.0
    %1682 = vmatprep.subr.mxu0 0.0
    %1683 = vmatpush1.msra.mxu0 %v1127
    %1684 = vmatprep.subr.mxu0 0.0
    %1685 = vmatpush1.msra.mxu0 %v1126
    %1686 = vmatprep.subr.mxu0 0.0
    %1687 = vmatpush1.msra.mxu0 %v1125
    %1688 = vmatprep.subr.mxu0 0.0
    %1689 = vmatpush1.msra.mxu0 %v1124
    %1690 = vmatprep.subr.mxu0 0.0
    %1691 = vmatpush2.msra.mxu0 0.0
    %1692 = vmatprep.subr.mxu0 0.0
    %1693 = vmatpush2.msra.mxu0 0.0
    %1694 = vmatprep.subr.mxu0 0.0
    %1695 = vmatpush2.msra.mxu0 0.0
    %1696 = vmatprep.subr.mxu0 0.0
    %1697 = vmatpush2.msra.mxu0 0.0
    %1698 = vmatprep.subr.mxu0 0.0
    %1699 = vmatpush2.msra.mxu0 0.0
    %1700 = vmatprep.subr.mxu0 0.0
    %1701 = vmatpush2.msra.mxu0 0.0
    %1702 = vmatprep.subr.mxu0 0.0
    %1703 = vmatpush2.msra.mxu0 0.0
    %1704 = vmatprep.subr.mxu0 0.0
    %1705 = vmatpush2.msra.mxu0 0.0
    %1706 = vmatprep.subr.mxu0 0.0
    %1707 = vmatpush2.msra.mxu0 0.0
    %1708 = vmatprep.subr.mxu0 0.0
    %1709 = vmatpush2.msra.mxu0 0.0
    %1710 = vmatprep.subr.mxu0 0.0
    %1711 = vmatpush2.msra.mxu0 0.0
    %1712 = vmatprep.subr.mxu0 0.0
    %1713 = vmatpush2.msra.mxu0 0.0
    %1714 = vmatprep.subr.mxu0 0.0
    %1715 = vmatpush2.msra.mxu0 0.0
    %1716 = vmatprep.subr.mxu0 0.0
    %1717 = vmatpush2.msra.mxu0 0.0
    %1718 = vmatprep.subr.mxu0 0.0
    %1719 = vmatpush2.msra.mxu0 0.0
    %1720 = vmatprep.subr.mxu0 0.0
    %1721 = vmatpush2.msra.mxu0 0.0
    %1722 = vmatprep.mubr.f32.mxu0 0.0
    %1723 = vmatmul.mubr.f32.gmra.mxu0 %v1656
    %v1724 = vpop.f32.mrf.mxu0
    %v1725 = vadd.f32 0.0, %v1724
    %v1726 = vpop.f32.mrf.mxu0
    %1727 = vdwg.mxu0
    %v1729 = vrot.slane %v1725, 6
    %v1731 = vadd.f32 %v1121, %v1729
    %v1732 = vmul.f32 %v1731, 0.5
    %v1733 = vtanh.pop %v1732
    %v1734 = vmul.f32 %v1733, 0.5
    %v1735 = vadd.f32 %v1734, 0.5
    %v1736 = vtanh.pop %v1731
    %v1738 = vrot.slane %v1644, 6
    %v1740 = vmul.f32 %v1735, %v1738
    %1742 = vrot.lane.b32.xlu0 %v1736, 64
    %v1743 = vpop.permute.xlu0 %1742
    %v1745 = vmul.f32 %v1735, %v1743
    %1747 = vrot.lane.b32.xlu0 %v1745, 32
    %v1748 = vpop.permute.xlu0 %1747
    %v1750 = vadd.f32 %v1740, %v1748
    %v1751 = vtanh.pop %v1750
    %1753 = vrot.lane.b32.xlu0 %v1751, 64
    %v1754 = vpop.permute.xlu0 %1753
    %v1756 = vmul.f32 %v1735, %v1754
    %1758 = vrot.lane.b32.xlu0 %v1756, 32
    %v1759 = vpop.permute.xlu0 %1758
    %1761 = vst.msk [vmem:[%s9 + $0x8] sm:$0xc] %vm372, %v1759
    %v1762 = vrot.slane %v1756, 2
    %1763 = vrot.lane.b32.xlu0 %v1762, 32
    %v1764 = vpop.permute.xlu0 %1763
    %v1765 = vsel %vm79, %v1764, 0
    %1767 = vmatprep.subr.mxu0 0.0
    %1768 = vmatpush1.msra.mxu0 0.0
    %1769 = vmatprep.subr.mxu0 0.0
    %1770 = vmatpush1.msra.mxu0 0.0
    %1771 = vmatprep.subr.mxu0 0.0
    %1772 = vmatpush1.msra.mxu0 0.0
    %1773 = vmatprep.subr.mxu0 0.0
    %1774 = vmatpush1.msra.mxu0 0.0
    %1775 = vmatprep.subr.mxu0 0.0
    %1776 = vmatpush1.msra.mxu0 0.0
    %1777 = vmatprep.subr.mxu0 0.0
    %1778 = vmatpush1.msra.mxu0 0.0
    %1779 = vmatprep.subr.mxu0 0.0
    %1780 = vmatpush1.msra.mxu0 0.0
    %1781 = vmatprep.subr.mxu0 0.0
    %1782 = vmatpush1.msra.mxu0 0.0
    %1783 = vmatprep.subr.mxu0 0.0
    %1784 = vmatpush1.msra.mxu0 0.0
    %1785 = vmatprep.subr.mxu0 0.0
    %1786 = vmatpush1.msra.mxu0 0.0
    %1787 = vmatprep.subr.mxu0 0.0
    %1788 = vmatpush1.msra.mxu0 0.0
    %1789 = vmatprep.subr.mxu0 0.0
    %1790 = vmatpush1.msra.mxu0 0.0
    %1791 = vmatprep.subr.mxu0 0.0
    %1792 = vmatpush1.msra.mxu0 %v1127
    %1793 = vmatprep.subr.mxu0 0.0
    %1794 = vmatpush1.msra.mxu0 %v1126
    %1795 = vmatprep.subr.mxu0 0.0
    %1796 = vmatpush1.msra.mxu0 %v1125
    %1797 = vmatprep.subr.mxu0 0.0
    %1798 = vmatpush1.msra.mxu0 %v1124
    %1799 = vmatprep.subr.mxu0 0.0
    %1800 = vmatpush2.msra.mxu0 0.0
    %1801 = vmatprep.subr.mxu0 0.0
    %1802 = vmatpush2.msra.mxu0 0.0
    %1803 = vmatprep.subr.mxu0 0.0
    %1804 = vmatpush2.msra.mxu0 0.0
    %1805 = vmatprep.subr.mxu0 0.0
    %1806 = vmatpush2.msra.mxu0 0.0
    %1807 = vmatprep.subr.mxu0 0.0
    %1808 = vmatpush2.msra.mxu0 0.0
    %1809 = vmatprep.subr.mxu0 0.0
    %1810 = vmatpush2.msra.mxu0 0.0
    %1811 = vmatprep.subr.mxu0 0.0
    %1812 = vmatpush2.msra.mxu0 0.0
    %1813 = vmatprep.subr.mxu0 0.0
    %1814 = vmatpush2.msra.mxu0 0.0
    %1815 = vmatprep.subr.mxu0 0.0
    %1816 = vmatpush2.msra.mxu0 0.0
    %1817 = vmatprep.subr.mxu0 0.0
    %1818 = vmatpush2.msra.mxu0 0.0
    %1819 = vmatprep.subr.mxu0 0.0
    %1820 = vmatpush2.msra.mxu0 0.0
    %1821 = vmatprep.subr.mxu0 0.0
    %1822 = vmatpush2.msra.mxu0 0.0
    %1823 = vmatprep.subr.mxu0 0.0
    %1824 = vmatpush2.msra.mxu0 0.0
    %1825 = vmatprep.subr.mxu0 0.0
    %1826 = vmatpush2.msra.mxu0 0.0
    %1827 = vmatprep.subr.mxu0 0.0
    %1828 = vmatpush2.msra.mxu0 0.0
    %1829 = vmatprep.subr.mxu0 0.0
    %1830 = vmatpush2.msra.mxu0 0.0
    %1831 = vmatprep.mubr.f32.mxu0 0.0
    %1832 = vmatmul.mubr.f32.gmra.mxu0 %v1765
    %v1833 = vpop.f32.mrf.mxu0
    %v1834 = vadd.f32 0.0, %v1833
    %v1835 = vpop.f32.mrf.mxu0
    %1836 = vdwg.mxu0
    %v1838 = vrot.slane %v1834, 4
    %v1840 = vadd.f32 %v1121, %v1838
    %v1841 = vmul.f32 %v1840, 0.5
    %v1842 = vtanh.pop %v1841
    %v1843 = vmul.f32 %v1842, 0.5
    %v1844 = vadd.f32 %v1843, 0.5
    %v1845 = vtanh.pop %v1840
    %v1847 = vrot.slane %v1750, 6
    %v1849 = vmul.f32 %v1844, %v1847
    %1851 = vrot.lane.b32.xlu0 %v1845, 64
    %v1852 = vpop.permute.xlu0 %1851
    %v1854 = vmul.f32 %v1844, %v1852
    %1856 = vrot.lane.b32.xlu0 %v1854, 32
    %v1857 = vpop.permute.xlu0 %1856
    %v1859 = vadd.f32 %v1849, %v1857
    %v1860 = vtanh.pop %v1859
    %1862 = vrot.lane.b32.xlu0 %v1860, 64
    %v1863 = vpop.permute.xlu0 %1862
    %v1865 = vmul.f32 %v1844, %v1863
    %1867 = vrot.lane.b32.xlu0 %v1865, 32
    %v1868 = vpop.permute.xlu0 %1867
    %1870 = vst.msk [vmem:[%s9 + $0x8] sm:$0x30] %vm482, %v1868
    %v1871 = vrot.slane %v1865, 4
    %1872 = vrot.lane.b32.xlu0 %v1871, 32
    %v1873 = vpop.permute.xlu0 %1872
    %v1874 = vsel %vm79, %v1873, 0
    %1876 = vmatprep.subr.mxu0 0.0
    %1877 = vmatpush1.msra.mxu0 0.0
    %1878 = vmatprep.subr.mxu0 0.0
    %1879 = vmatpush1.msra.mxu0 0.0
    %1880 = vmatprep.subr.mxu0 0.0
    %1881 = vmatpush1.msra.mxu0 0.0
    %1882 = vmatprep.subr.mxu0 0.0
    %1883 = vmatpush1.msra.mxu0 0.0
    %1884 = vmatprep.subr.mxu0 0.0
    %1885 = vmatpush1.msra.mxu0 0.0
    %1886 = vmatprep.subr.mxu0 0.0
    %1887 = vmatpush1.msra.mxu0 0.0
    %1888 = vmatprep.subr.mxu0 0.0
    %1889 = vmatpush1.msra.mxu0 0.0
    %1890 = vmatprep.subr.mxu0 0.0
    %1891 = vmatpush1.msra.mxu0 0.0
    %1892 = vmatprep.subr.mxu0 0.0
    %1893 = vmatpush1.msra.mxu0 0.0
    %1894 = vmatprep.subr.mxu0 0.0
    %1895 = vmatpush1.msra.mxu0 0.0
    %1896 = vmatprep.subr.mxu0 0.0
    %1897 = vmatpush1.msra.mxu0 0.0
    %1898 = vmatprep.subr.mxu0 0.0
    %1899 = vmatpush1.msra.mxu0 0.0
    %1900 = vmatprep.subr.mxu0 0.0
    %1901 = vmatpush1.msra.mxu0 %v1127
    %1902 = vmatprep.subr.mxu0 0.0
    %1903 = vmatpush1.msra.mxu0 %v1126
    %1904 = vmatprep.subr.mxu0 0.0
    %1905 = vmatpush1.msra.mxu0 %v1125
    %1906 = vmatprep.subr.mxu0 0.0
    %1907 = vmatpush1.msra.mxu0 %v1124
    %1908 = vmatprep.subr.mxu0 0.0
    %1909 = vmatpush2.msra.mxu0 0.0
    %1910 = vmatprep.subr.mxu0 0.0
    %1911 = vmatpush2.msra.mxu0 0.0
    %1912 = vmatprep.subr.mxu0 0.0
    %1913 = vmatpush2.msra.mxu0 0.0
    %1914 = vmatprep.subr.mxu0 0.0
    %1915 = vmatpush2.msra.mxu0 0.0
    %1916 = vmatprep.subr.mxu0 0.0
    %1917 = vmatpush2.msra.mxu0 0.0
    %1918 = vmatprep.subr.mxu0 0.0
    %1919 = vmatpush2.msra.mxu0 0.0
    %1920 = vmatprep.subr.mxu0 0.0
    %1921 = vmatpush2.msra.mxu0 0.0
    %1922 = vmatprep.subr.mxu0 0.0
    %1923 = vmatpush2.msra.mxu0 0.0
    %1924 = vmatprep.subr.mxu0 0.0
    %1925 = vmatpush2.msra.mxu0 0.0
    %1926 = vmatprep.subr.mxu0 0.0
    %1927 = vmatpush2.msra.mxu0 0.0
    %1928 = vmatprep.subr.mxu0 0.0
    %1929 = vmatpush2.msra.mxu0 0.0
    %1930 = vmatprep.subr.mxu0 0.0
    %1931 = vmatpush2.msra.mxu0 0.0
    %1932 = vmatprep.subr.mxu0 0.0
    %1933 = vmatpush2.msra.mxu0 0.0
    %1934 = vmatprep.subr.mxu0 0.0
    %1935 = vmatpush2.msra.mxu0 0.0
    %1936 = vmatprep.subr.mxu0 0.0
    %1937 = vmatpush2.msra.mxu0 0.0
    %1938 = vmatprep.subr.mxu0 0.0
    %1939 = vmatpush2.msra.mxu0 0.0
    %1940 = vmatprep.mubr.f32.mxu0 0.0
    %1941 = vmatmul.mubr.f32.gmra.mxu0 %v1874
    %v1942 = vpop.f32.mrf.mxu0
    %v1943 = vadd.f32 0.0, %v1942
    %v1944 = vpop.f32.mrf.mxu0
    %1945 = vdwg.mxu0
    %v1947 = vrot.slane %v1943, 2
    %v1949 = vadd.f32 %v1121, %v1947
    %v1950 = vmul.f32 %v1949, 0.5
    %v1951 = vtanh.pop %v1950
    %v1952 = vmul.f32 %v1951, 0.5
    %v1953 = vadd.f32 %v1952, 0.5
    %v1954 = vtanh.pop %v1949
    %v1956 = vrot.slane %v1859, 6
    %v1958 = vmul.f32 %v1953, %v1956
    %1960 = vrot.lane.b32.xlu0 %v1954, 64
    %v1961 = vpop.permute.xlu0 %1960
    %v1963 = vmul.f32 %v1953, %v1961
    %1965 = vrot.lane.b32.xlu0 %v1963, 32
    %v1966 = vpop.permute.xlu0 %1965
    %v1968 = vadd.f32 %v1958, %v1966
    %v1969 = vtanh.pop %v1968
    %1971 = vrot.lane.b32.xlu0 %v1969, 64
    %v1972 = vpop.permute.xlu0 %1971
    %v1974 = vmul.f32 %v1953, %v1972
    %1976 = vrot.lane.b32.xlu0 %v1974, 32
    %v1977 = vpop.permute.xlu0 %1976
    %1979 = vst.msk [vmem:[%s9 + $0x8] sm:$0xc0] %vm592, %v1977
    %s1980 = scalar_lea.vmem [#allocation8], 2
    %1981 = vst.msk [vmem:[%s1980 - $0x6] sm:$0xc0] %vm592, %v1977
    %1983 = vrot.lane.b32.xlu0 %v1968, 96
    %v1984 = vpop.permute.xlu0 %1983
    %s1986 = scalar_lea.vmem [#allocation9], 2
    %1987 = vst.msk [vmem:[%s1986 - $0x6] sm:$0xc0] %vm592, %v1984
    %v1988 = vld [vmem:[%s9] sm:$0xff]
    %v1989 = vld [vmem:[%s9 + $0x8] sm:$0xff]
    %v1990 = vld [vmem:[%s7] sm:$0xff]
    %v1991 = vld [vmem:[%s7 + $0x8] sm:$0xff]
    %v1992 = vld [vmem:[%s7 + $0x10] sm:$0xff]
    %v1993 = vld [vmem:[%s7 + $0x18] sm:$0xff]
    %v1994 = vld [vmem:[#allocation6] sm:$0x1]
    %v1996 = vlaneseq
    %v1997 = vshrl.u32 %v1996, 7
    %v1998 = vsub.s32 0, %v1997
    %v1999 = vrot.slane %v1994, %v1998
    %v2002 = vsel %vm79, %v1988, 0
    %v2005 = vsel %vm79, %v1989, 0
    %2007 = vmatprep.subr.mxu0 0.0
    %2008 = vmatpush1.msra.mxu0 0.0
    %2009 = vmatprep.subr.mxu0 0.0
    %2010 = vmatpush1.msra.mxu0 0.0
    %2011 = vmatprep.subr.mxu0 0.0
    %2012 = vmatpush1.msra.mxu0 0.0
    %2013 = vmatprep.subr.mxu0 0.0
    %2014 = vmatpush1.msra.mxu0 0.0
    %2015 = vmatprep.subr.mxu0 0.0
    %2016 = vmatpush1.msra.mxu0 0.0
    %2017 = vmatprep.subr.mxu0 0.0
    %2018 = vmatpush1.msra.mxu0 0.0
    %2019 = vmatprep.subr.mxu0 0.0
    %2020 = vmatpush1.msra.mxu0 0.0
    %2021 = vmatprep.subr.mxu0 0.0
    %2022 = vmatpush1.msra.mxu0 0.0
    %2023 = vmatprep.subr.mxu0 0.0
    %2024 = vmatpush1.msra.mxu0 0.0
    %2025 = vmatprep.subr.mxu0 0.0
    %2026 = vmatpush1.msra.mxu0 0.0
    %2027 = vmatprep.subr.mxu0 0.0
    %2028 = vmatpush1.msra.mxu0 0.0
    %2029 = vmatprep.subr.mxu0 0.0
    %2030 = vmatpush1.msra.mxu0 0.0
    %2031 = vmatprep.subr.mxu0 0.0
    %2032 = vmatpush1.msra.mxu0 %v1993
    %2033 = vmatprep.subr.mxu0 0.0
    %2034 = vmatpush1.msra.mxu0 %v1992
    %2035 = vmatprep.subr.mxu0 0.0
    %2036 = vmatpush1.msra.mxu0 %v1991
    %2037 = vmatprep.subr.mxu0 0.0
    %2038 = vmatpush1.msra.mxu0 %v1990
    %2039 = vmatprep.subr.mxu0 0.0
    %2040 = vmatpush2.msra.mxu0 0.0
    %2041 = vmatprep.subr.mxu0 0.0
    %2042 = vmatpush2.msra.mxu0 0.0
    %2043 = vmatprep.subr.mxu0 0.0
    %2044 = vmatpush2.msra.mxu0 0.0
    %2045 = vmatprep.subr.mxu0 0.0
    %2046 = vmatpush2.msra.mxu0 0.0
    %2047 = vmatprep.subr.mxu0 0.0
    %2048 = vmatpush2.msra.mxu0 0.0
    %2049 = vmatprep.subr.mxu0 0.0
    %2050 = vmatpush2.msra.mxu0 0.0
    %2051 = vmatprep.subr.mxu0 0.0
    %2052 = vmatpush2.msra.mxu0 0.0
    %2053 = vmatprep.subr.mxu0 0.0
    %2054 = vmatpush2.msra.mxu0 0.0
    %2055 = vmatprep.subr.mxu0 0.0
    %2056 = vmatpush2.msra.mxu0 0.0
    %2057 = vmatprep.subr.mxu0 0.0
    %2058 = vmatpush2.msra.mxu0 0.0
    %2059 = vmatprep.subr.mxu0 0.0
    %2060 = vmatpush2.msra.mxu0 0.0
    %2061 = vmatprep.subr.mxu0 0.0
    %2062 = vmatpush2.msra.mxu0 0.0
    %2063 = vmatprep.subr.mxu0 0.0
    %2064 = vmatpush2.msra.mxu0 0.0
    %2065 = vmatprep.subr.mxu0 0.0
    %2066 = vmatpush2.msra.mxu0 0.0
    %2067 = vmatprep.subr.mxu0 0.0
    %2068 = vmatpush2.msra.mxu0 0.0
    %2069 = vmatprep.subr.mxu0 0.0
    %2070 = vmatpush2.msra.mxu0 0.0
    %2071 = vmatprep.mubr.f32.mxu0 0.0
    %2072 = vmatmul.mubr.f32.gmra.mxu0 %v2002
    %v2073 = vpop.f32.mrf.mxu0
    %v2074 = vadd.f32 %v1999, %v2073
    %v2075 = vpop.f32.mrf.mxu0
    %2076 = vmatprep.mubr.f32.mxu0 0.0
    %2077 = vmatmul.mubr.f32.gmra.mxu0 %v2005
    %v2078 = vpop.f32.mrf.mxu0
    %v2079 = vadd.f32 %v1999, %v2078
    %v2080 = vpop.f32.mrf.mxu0
    %2081 = vdwg.mxu0
    %v2083 = vrot.slane %v2074, 2
    %v2085 = vmax.f32 %v2074, %v2083
    %v2086 = vrot.slane %v2074, 4
    %v2088 = vmax.f32 %v2085, %v2086
    %v2089 = vrot.slane %v2074, 6
    %v2091 = vmax.f32 %v2088, %v2089
    %v2092 = vmax.f32 %v2091, %v2079
    %v2094 = vrot.slane %v2079, 2
    %v2096 = vmax.f32 %v2092, %v2094
    %v2097 = vrot.slane %v2079, 4
    %v2099 = vmax.f32 %v2096, %v2097
    %v2100 = vrot.slane %v2079, 6
    %v2102 = vmax.f32 %v2099, %v2100
    %v2103 = vsub.f32 %v2074, %v2102
    %v2104 = vmul.f32 %v2103, 1.442695
    %v2105 = vpow.pop %v2104
    %v2106 = vadd.f32 %v2105, 0.0
    %v2108 = vrot.slane %v2102, 6
    %v2110 = vsub.f32 %v2074, %v2108
    %v2111 = vmul.f32 %v2110, 1.442695
    %v2112 = vpow.pop %v2111
    %v2114 = vrot.slane %v2112, 2
    %v2116 = vadd.f32 %v2106, %v2114
    %v2117 = vrot.slane %v2102, 4
    %v2119 = vsub.f32 %v2074, %v2117
    %v2120 = vmul.f32 %v2119, 1.442695
    %v2121 = vpow.pop %v2120
    %v2123 = vrot.slane %v2121, 4
    %v2125 = vadd.f32 %v2116, %v2123
    %v2126 = vrot.slane %v2102, 2
    %v2128 = vsub.f32 %v2074, %v2126
    %v2129 = vmul.f32 %v2128, 1.442695
    %v2130 = vpow.pop %v2129
    %v2132 = vrot.slane %v2130, 6
    %v2134 = vadd.f32 %v2125, %v2132
    %v2135 = vsub.f32 %v2079, %v2102
    %v2136 = vmul.f32 %v2135, 1.442695
    %v2137 = vpow.pop %v2136
    %v2138 = vadd.f32 %v2134, %v2137
    %v2139 = vsub.f32 %v2079, %v2108
    %v2140 = vmul.f32 %v2139, 1.442695
    %v2141 = vpow.pop %v2140
    %v2143 = vrot.slane %v2141, 2
    %v2145 = vadd.f32 %v2138, %v2143
    %v2146 = vsub.f32 %v2079, %v2117
    %v2147 = vmul.f32 %v2146, 1.442695
    %v2148 = vpow.pop %v2147
    %v2150 = vrot.slane %v2148, 4
    %v2152 = vadd.f32 %v2145, %v2150
    %v2153 = vsub.f32 %v2079, %v2126
    %v2154 = vmul.f32 %v2153, 1.442695
    %v2155 = vpow.pop %v2154
    %v2157 = vrot.slane %v2155, 6
    %v2159 = vadd.f32 %v2152, %v2157
    %v2160 = vlog2.pop %v2159
    %v2161 = vmul.f32 %v2160, 0.6931472
    %v2162 = vadd.f32 %v2102, %v2161
    %v2163 = vsub.f32 %v2074, %v2162
    %vm2164 = vcmask 66560
    %2165 = vst.msk [vmem:[%s10] sm:$0x3] %vm2164, %v2163
    %v2167 = vrot.slane %v2162, 6
    %v2169 = vsub.f32 %v2074, %v2167
    %vm2170 = vcmask 68610
    %2171 = vst.msk [vmem:[%s10] sm:$0xc] %vm2170, %v2169
    %v2172 = vrot.slane %v2162, 4
    %v2174 = vsub.f32 %v2074, %v2172
    %vm2175 = vcmask 70660
    %2176 = vst.msk [vmem:[%s10] sm:$0x30] %vm2175, %v2174
    %v2177 = vrot.slane %v2162, 2
    %v2179 = vsub.f32 %v2074, %v2177
    %vm2180 = vcmask 72710
    %2181 = vst.msk [vmem:[%s10] sm:$0xc0] %vm2180, %v2179
    %v2182 = vsub.f32 %v2079, %v2162
    %2183 = vst.msk [vmem:[%s10 + $0x8] sm:$0x3] %vm2164, %v2182
    %v2184 = vsub.f32 %v2079, %v2167
    %2185 = vst.msk [vmem:[%s10 + $0x8] sm:$0xc] %vm2170, %v2184
    %v2186 = vsub.f32 %v2079, %v2172
    %2187 = vst.msk [vmem:[%s10 + $0x8] sm:$0x30] %vm2175, %v2186
    %v2188 = vsub.f32 %v2079, %v2177
    %2189 = vst.msk [vmem:[%s10 + $0x8] sm:$0xc0] %vm2180, %v2188
    // Predicated region
    $region46: #{decoder_rnn_forward.1} parent=1 // pred_check
      _
    $region47: #{decoder_rnn_forward.1} parent=1 // pred_check_branch
      %2191 = sbr.rel (0) target = $region49
    $region48: #{decoder_rnn_forward.1} parent=1 // pred_region
      _
    $region49: #{decoder_rnn_forward.1} parent=1 // pred_fallthru
      _
    // Predicated region
    $region50: #{decoder_rnn_forward.1} parent=1 // pred_check
      _
    $region51: #{decoder_rnn_forward.1} parent=1 // pred_check_branch
      %2193 = sbr.rel (0) target = $region53
    $region52: #{decoder_rnn_forward.1} parent=1 // pred_region
      _
    $region53: #{decoder_rnn_forward.1} parent=1 // pred_fallthru
      _
    // Predicated region
    $region54: #{decoder_rnn_forward.1} parent=1 // pred_check
      _
    $region55: #{decoder_rnn_forward.1} parent=1 // pred_check_branch
      %2195 = sbr.rel (0) target = $region57
    $region56: #{decoder_rnn_forward.1} parent=1 // pred_region
      %s2197 = ssub.s32 64, 64
      %2198 = vsyncadd [#allocation5], %s2197
      %s2199 = sshll.u32 [#allocation8], 4
      %s2200 = int_to_ptr.vmem [resolvable:$true] %s2199
      %2205 = dma.vmem_to_hbm [thread:$0]  %s2200, 64, %s11, [#allocation5], 32, 32, 2
    $region57: #{decoder_rnn_forward.1} parent=1 // pred_fallthru
      _
    // Predicated region
    $region58: #{decoder_rnn_forward.1} parent=1 // pred_check
      _
    $region59: #{decoder_rnn_forward.1} parent=1 // pred_check_branch
      %2207 = sbr.rel (0) target = $region61
    $region60: #{decoder_rnn_forward.1} parent=1 // pred_region
      %s2209 = ssub.s32 64, 64
      %2210 = vsyncadd [#allocation10], %s2209
      %s2211 = sshll.u32 [#allocation9], 4
      %s2212 = int_to_ptr.vmem [resolvable:$true] %s2211
      %2217 = dma.vmem_to_hbm [thread:$0]  %s2212, 64, %s12, [#allocation10], 32, 32, 2
    $region61: #{decoder_rnn_forward.1} parent=1 // pred_fallthru
      _
    // Predicated region
    $region62: #{decoder_rnn_forward.1} parent=1 // pred_check
      _
    $region63: #{decoder_rnn_forward.1} parent=1 // pred_check_branch
      %2219 = sbr.rel (0) target = $region65
    $region64: #{decoder_rnn_forward.1} parent=1 // pred_region
      _
    $region65: #{decoder_rnn_forward.1} parent=1 // pred_fallthru
      _
    // Predicated region
    $region66: #{decoder_rnn_forward.1} parent=1 // pred_check
      _
    $region67: #{decoder_rnn_forward.1} parent=1 // pred_check_branch
      %2221 = sbr.rel (0) target = $region69
    $region68: #{decoder_rnn_forward.1} parent=1 // pred_region
      _
    $region69: #{decoder_rnn_forward.1} parent=1 // pred_fallthru
      _
    // Predicated region
    $region70: #{decoder_rnn_forward.1} parent=1 // pred_check
      _
    $region71: #{decoder_rnn_forward.1} parent=1 // pred_check_branch
      %2223 = sbr.rel (0) target = $region73
    $region72: #{decoder_rnn_forward.1} parent=1 // pred_region
      %2224 = dma.done [#allocation5], 64
    $region73: #{decoder_rnn_forward.1} parent=1 // pred_fallthru
      _
    // Predicated region
    $region74: #{decoder_rnn_forward.1} parent=1 // pred_check
      _
    $region75: #{decoder_rnn_forward.1} parent=1 // pred_check_branch
      %2226 = sbr.rel (0) target = $region77
    $region76: #{decoder_rnn_forward.1} parent=1 // pred_region
      %2227 = dma.done [#allocation10], 64
    $region77: #{decoder_rnn_forward.1} parent=1 // pred_fallthru
      _
    %2228 = vsyncpa [#allocation4], 1
    %2229 = vsyncpa [#allocation7], 1
    %2230 = vsyncpa [#allocation5], 1
    %2231 = vsyncpa [#allocation10], 1

</llo_original>
